<compile_context>
chip_gen: v7x
topology: tpu7x:2x2x1
jax: 0.10.0
libtpu: 0.0.40
codegen_flags: <defaults>
</compile_context>

<pallas_src>
import functools

import jax
import jax.numpy as jnp
from jax.experimental import pallas as pl
from jax.experimental.pallas import tpu as pltpu

_VOCAB_TILE = 512            # decoder vocab tile (review: 512 on v5e/v6e, 256-512 on v7x)
_VMEM_LIMIT = 64 * 1024 * 1024


# -----------------------------------------------------------------------------
# K1: LSTM recurrence (sequential over T, streamed in T-chunks by the grid).
# -----------------------------------------------------------------------------
def lstm_kernel(
    x_ref,        # (TC*Bp, Hp) bf16   embedded inputs, rows = t*Bp + b
    wih_ref,      # (Hp, 4Hp)  bf16    fused W_ih^T, gate order [i, f, o, g]
    whh_ref,      # (Hp, 4Hp)  bf16    fused W_hh^T, gate order [i, f, o, g]
    b_ref,        # (1, 4Hp)   f32     fused b_ih + b_hh
    h_out_ref,    # (TC*Bp, Hp) bf16   hidden states
    h_s, c_s,     # (Bp, Hp)   f32     carried LSTM state
    gx_s,         # (TC*Bp, 4Hp) f32   hoisted input projections for the chunk
    *, t_chunk, bp, hp,
):
    @pl.when(pl.program_id(0) == 0)
    def _():
        h_s[...] = jnp.zeros_like(h_s)
        c_s[...] = jnp.zeros_like(c_s)

    # One batched MXU pass for the whole chunk's input projections (off the
    # serial path).
    gx_s[...] = (
        jnp.dot(x_ref[...], wih_ref[...], preferred_element_type=jnp.float32)
        + b_ref[...]
    )

    whh = whh_ref[...]            # loop-invariant weight load
    h = h_s[...]
    c = c_s[...]
    for tt in range(t_chunk):     # short fixed chunk, fully unrolled
        row = pl.ds(tt * bp, bp)
        # Single fused recurrent matmul per step: (Bp, Hp) @ (Hp, 4Hp).
        gates = gx_s[row, :] + jnp.dot(
            h.astype(jnp.bfloat16), whh, preferred_element_type=jnp.float32)
        sig = jax.nn.sigmoid(gates[:, : 3 * hp])      # contiguous i, f, o slab
        i_g = sig[:, :hp]
        f_g = sig[:, hp:2 * hp]
        o_g = sig[:, 2 * hp:3 * hp]
        g_g = jnp.tanh(gates[:, 3 * hp:])
        c = f_g * c + i_g * g_g
        h = o_g * jnp.tanh(c)
        h_out_ref[row, :] = h.astype(jnp.bfloat16)    # per-step store, no list

    h_s[...] = h
    c_s[...] = c


# -----------------------------------------------------------------------------
# K2: attention scores + causal prefix-softmax context + concat layer,
#     tiled over T with (m, den, num) carried across chunks (online softmax).
# -----------------------------------------------------------------------------
def attn_concat_kernel(
    h_ref,        # (TC*Bp, Hp) bf16   LSTM hidden states chunk
    w1_ref,       # (Hp, Hp) bf16      attn_1.weight^T
    b1_ref,       # (1, Hp)  f32       attn_1.bias
    w2_ref,       # (1, Hp)  f32       attn_2.weight
    b2_ref,       # (1, 1)   f32       attn_2.bias
    wcc_ref,      # (Hp, Hp) bf16      concat-layer weight^T (context half)
    wco_ref,      # (Hp, Hp) bf16      concat-layer weight^T (lstm-output half)
    bc_ref,       # (1, Hp)  f32       concat-layer bias
    comb_ref,     # (TC*Bp, Hp) bf16   out: tanh(concat layer)
    s_ref,        # (TC*Bp, 1)  f32    out: raw attention scores
    m_s, den_s,   # (Bp, 1)  f32       carried online-softmax state
    num_s,        # (Bp, Hp) f32       carried weighted sum
    ctx_s,        # (TC*Bp, Hp) bf16   per-chunk context scratch
    *, t_chunk, bp,
):
    @pl.when(pl.program_id(0) == 0)
    def _():
        m_s[...] = jnp.full(m_s.shape, -jnp.inf, dtype=m_s.dtype)
        den_s[...] = jnp.zeros_like(den_s)
        num_s[...] = jnp.zeros_like(num_s)

    # Batched attention scores for the whole chunk.
    a1 = jnp.tanh(
        jnp.dot(h_ref[...], w1_ref[...], preferred_element_type=jnp.float32)
        + b1_ref[...])
    s = jnp.sum(a1 * w2_ref[...], axis=1, keepdims=True) + b2_ref[...]  # (TC*Bp,1)
    s_ref[...] = s

    # Sequential online-softmax prefix pass; live state is only (m, den, num).
    m = m_s[...]
    den = den_s[...]
    num = num_s[...]
    for tt in range(t_chunk):
        row = pl.ds(tt * bp, bp)
        s_t = s[tt * bp:(tt + 1) * bp]                         # (Bp, 1)
        h_t = h_ref[row, :].astype(jnp.float32)                # (Bp, Hp)
        m_new = jnp.maximum(m, s_t)
        alpha = jnp.exp(m - m_new)
        p = jnp.exp(s_t - m_new)
        den = alpha * den + p
        num = alpha * num + p * h_t
        ctx_s[row, :] = (num * pl.reciprocal(den, approx=True)).astype(jnp.bfloat16)
        m = m_new
    m_s[...] = m
    den_s[...] = den
    num_s[...] = num

    # Batched concat layer for the chunk: tanh([ctx, h] @ Wc^T + bc).
    comb_ref[...] = jnp.tanh(
        jnp.dot(ctx_s[...], wcc_ref[...], preferred_element_type=jnp.float32)
        + jnp.dot(h_ref[...], wco_ref[...], preferred_element_type=jnp.float32)
        + bc_ref[...]
    ).astype(jnp.bfloat16)


# -----------------------------------------------------------------------------
# K3: tied decoder, tiled over vocabulary (and rows when R is large).
# -----------------------------------------------------------------------------
def decoder_kernel(comb_ref, dw_ref, db_ref, out_ref):
    out_ref[...] = (
        jnp.dot(comb_ref[...], dw_ref[...], preferred_element_type=jnp.float32)
        + db_ref[...]
    )


# -----------------------------------------------------------------------------
# One-time weight preprocessing (transpose / pad / cast / gate fusion).
# Call once, reuse the returned dict for every forward step.
# -----------------------------------------------------------------------------
def prepare_params(params):
    E = params["E"].astype(jnp.float32)
    V, H = E.shape
    Hp = ((H + 127) // 128) * 128
    Vp = ((V + _VOCAB_TILE - 1) // _VOCAB_TILE) * _VOCAB_TILE

    def pad2(w, r, c):
        return jnp.pad(w, ((0, r - w.shape[0]), (0, c - w.shape[1])))

    def pad1(v, n):
        return jnp.pad(v, (0, n - v.shape[0]))

    order = (0, 1, 3, 2)   # PyTorch gate order (i, f, g, o) -> fused (i, f, o, g)

    def fuse_w(w):         # (4H, H) -> fused, padded W^T of shape (Hp, 4Hp), bf16
        cols = [pad2(w[k * H:(k + 1) * H].T, Hp, Hp) for k in order]
        return jnp.concatenate(cols, axis=1).astype(jnp.bfloat16)

    b = (params["b_ih"] + params["b_hh"]).astype(jnp.float32)
    b_fused = jnp.concatenate(
        [pad1(b[k * H:(k + 1) * H], Hp) for k in order]).reshape(1, 4 * Hp)

    return {
        "emb": pad2(E, V, Hp).astype(jnp.bfloat16),                   # (V, Hp)
        "wih": fuse_w(params["W_ih"]),                                # (Hp, 4Hp)
        "whh": fuse_w(params["W_hh"]),                                # (Hp, 4Hp)
        "b_lstm": b_fused,                                            # (1, 4Hp)
        "w1": pad2(params["W1"].T, Hp, Hp).astype(jnp.bfloat16),
        "b1": pad1(params["b1"], Hp).reshape(1, Hp).astype(jnp.float32),
        "w2": pad1(params["W2"].reshape(-1), Hp).reshape(1, Hp).astype(jnp.float32),
        "b2": params["b2"].reshape(1, 1).astype(jnp.float32),
        "wcc": pad2(params["Wc"][:, :H].T, Hp, Hp).astype(jnp.bfloat16),
        "wco": pad2(params["Wc"][:, H:].T, Hp, Hp).astype(jnp.bfloat16),
        "bc": pad1(params["bc"], Hp).reshape(1, Hp).astype(jnp.float32),
        "dw": pad2(E.T, Hp, Vp).astype(jnp.bfloat16),                 # (Hp, Vp)
        "db": pad1(params["b_dec"], Vp).reshape(1, Vp).astype(jnp.float32),
    }


@functools.partial(jax.jit, static_argnames=("ntoken",))
def attention_lstm_forward(src, prep, *, ntoken):
    """src: (B, T) int32 token ids. Returns (logits (B*T, V), attn (B, T, T))."""
    B, T = src.shape
    V = ntoken
    Hp = prep["wih"].shape[0]
    Vp = prep["dw"].shape[1]

    Bp = ((B + 7) // 8) * 8               # pad batch to the f32 sublane tile
    TC = 16 if T > 8 else 8               # T-chunk streamed by K1/K2 grids
    Tp = ((T + TC - 1) // TC) * TC        # pad T to a multiple of the chunk
    Rp = Tp * Bp
    chunk_rows = TC * Bp

    # ---- embedding lookup + pad + time-major 2D layout (glue) ----
    x = jnp.take(prep["emb"], src, axis=0)                    # (B, T, Hp) bf16
    x = jnp.transpose(x, (1, 0, 2))                           # (T, B, Hp)
    x = jnp.pad(x, ((0, Tp - T), (0, Bp - B), (0, 0)))
    x2 = x.reshape(Rp, Hp)                                    # rows = t*Bp + b

    # ---- K1: LSTM recurrence, grid streams T in chunks ----
    row_spec = pl.BlockSpec((chunk_rows, Hp), lambda c: (c, 0))
    h_all = pl.pallas_call(
        functools.partial(lstm_kernel, t_chunk=TC, bp=Bp, hp=Hp),
        out_shape=jax.ShapeDtypeStruct((Rp, Hp), jnp.bfloat16),
        grid=(Tp // TC,),
        in_specs=[
            row_spec,
            pl.BlockSpec((Hp, 4 * Hp), lambda c: (0, 0)),
            pl.BlockSpec((Hp, 4 * Hp), lambda c: (0, 0)),
            pl.BlockSpec((1, 4 * Hp), lambda c: (0, 0)),
        ],
        out_specs=row_spec,
        scratch_shapes=[
            pltpu.VMEM((Bp, Hp), jnp.float32),
            pltpu.VMEM((Bp, Hp), jnp.float32),
            pltpu.VMEM((chunk_rows, 4 * Hp), jnp.float32),
        ],
        compiler_params=pltpu.CompilerParams(
            dimension_semantics=("arbitrary",),
            vmem_limit_bytes=_VMEM_LIMIT),
    )(x2, prep["wih"], prep["whh"], prep["b_lstm"])

    # ---- K2: attention + prefix softmax + concat layer, tiled over T ----
    k2_weights = (prep["w1"], prep["b1"], prep["w2"], prep["b2"],
                  prep["wcc"], prep["wco"], prep["bc"])

    def const_spec(shape):
        return pl.BlockSpec(shape, lambda c: (0, 0))

    comb, scores = pl.pallas_call(
        functools.partial(attn_concat_kernel, t_chunk=TC, bp=Bp),
        out_shape=(jax.ShapeDtypeStruct((Rp, Hp), jnp.bfloat16),
                   jax.ShapeDtypeStruct((Rp, 1), jnp.float32)),
        grid=(Tp // TC,),
        in_specs=[row_spec] + [const_spec(w.shape) for w in k2_weights],
        out_specs=(row_spec,
                   pl.BlockSpec((chunk_rows, 1), lambda c: (c, 0))),
        scratch_shapes=[
            pltpu.VMEM((Bp, 1), jnp.float32),          # running max
            pltpu.VMEM((Bp, 1), jnp.float32),          # running denominator
            pltpu.VMEM((Bp, Hp), jnp.float32),         # running numerator
            pltpu.VMEM((chunk_rows, Hp), jnp.bfloat16),  # per-chunk context
        ],
        compiler_params=pltpu.CompilerParams(
            dimension_semantics=("arbitrary",),
            vmem_limit_bytes=_VMEM_LIMIT),
    )(h_all, *k2_weights)

    # ---- K3: tied decoder, tiled over vocab (parallel) + rows if large ----
    TV = _VOCAB_TILE
    TR = chunk_rows if Rp > 1024 else Rp
    logits_p = pl.pallas_call(
        decoder_kernel,
        out_shape=jax.ShapeDtypeStruct((Rp, Vp), jnp.float32),
        grid=(Vp // TV, Rp // TR),
        in_specs=[pl.BlockSpec((TR, Hp), lambda j, i: (i, 0)),
                  pl.BlockSpec((Hp, TV), lambda j, i: (0, j)),
                  pl.BlockSpec((1, TV), lambda j, i: (0, j))],
        out_specs=pl.BlockSpec((TR, TV), lambda j, i: (i, j)),
        compiler_params=pltpu.CompilerParams(
            dimension_semantics=("parallel", "parallel"),
            vmem_limit_bytes=_VMEM_LIMIT),
    )(comb, prep["dw"], prep["db"])

    # ---- unpad + reorder to PyTorch's decoded.view(-1, ntoken) (glue) ----
    dec = logits_p[:, :V].reshape(Tp, Bp, V)[:T, :B]          # (T, B, V)
    logits = jnp.transpose(dec, (1, 0, 2)).reshape(-1, V)     # (B*T, V)

    # ---- padded causal attention weights (glue, from raw kernel scores) ----
    # TODO(synk): PyTorch returns a ragged Python list of per-step numpy arrays;
    # here a single padded causal (B, T, T) attention matrix is returned.
    s_bt = jnp.transpose(scores.reshape(Tp, Bp)[:T, :B], (1, 0))       # (B, T)
    logits_mat = jnp.broadcast_to(s_bt[:, None, :], (B, T, T))
    causal = jnp.tril(jnp.ones((T, T), dtype=bool))
    attn = jax.nn.softmax(jnp.where(causal[None], logits_mat, -1e30), axis=-1)
    attn = jnp.where(causal[None], attn, 0.0)
    return logits, attn


# -----------------------------------------------------------------------------
# Pure-JAX reference (mirrors the PyTorch forward, eval mode) for validation.
# -----------------------------------------------------------------------------
def reference_forward(src, p):
    E = p["E"]
    V, H = E.shape
    emb = E[src]                                          # (B, T, H)

    def step(carry, x_t):
        h, c = carry
        gates = x_t @ p["W_ih"].T + h @ p["W_hh"].T + p["b_ih"] + p["b_hh"]
        i = jax.nn.sigmoid(gates[:, :H])
        f = jax.nn.sigmoid(gates[:, H:2 * H])
        g = jnp.tanh(gates[:, 2 * H:3 * H])
        o = jax.nn.sigmoid(gates[:, 3 * H:])
        c = f * c + i * g
        h = o * jnp.tanh(c)
        return (h, c), h

    B = src.shape[0]
    h0 = jnp.zeros((B, H), jnp.float32)
    c0 = jnp.zeros((B, H), jnp.float32)
    _, ys = jax.lax.scan(step, (h0, c0), jnp.transpose(emb, (1, 0, 2)))
    y = jnp.transpose(ys, (1, 0, 2))                      # (B, T, H)

    s = jnp.tanh(y @ p["W1"].T + p["b1"]) @ p["W2"].T + p["b2"]  # (B, T, 1)
    m = jnp.max(s, axis=1, keepdims=True)
    e = jnp.exp(s - m)
    ctx = jnp.cumsum(e * y, axis=1) / jnp.cumsum(e, axis=1)      # prefix softmax

    comb = jnp.tanh(jnp.concatenate([ctx, y], axis=2) @ p["Wc"].T + p["bc"])
    dec = comb @ E.T + p["b_dec"]
    return dec.reshape(-1, V)


def init_params(key, ntoken, nhid):
    H, V = nhid, ntoken
    ks = jax.random.split(key, 10)
    u = lambda k, shape, a: jax.random.uniform(k, shape, jnp.float32, -a, a)
    stdv = 1.0 / jnp.sqrt(H)
    return {
        "E": u(ks[0], (V, H), 0.1),                 # encoder / tied decoder weight
        "W_ih": u(ks[1], (4 * H, H), stdv),
        "W_hh": u(ks[2], (4 * H, H), stdv),
        "b_ih": u(ks[3], (4 * H,), stdv),
        "b_hh": u(ks[4], (4 * H,), stdv),
        "W1": jax.random.normal(ks[5], (H, H), jnp.float32) * jnp.sqrt(2.0 / (2 * H)),
        "b1": jnp.zeros((H,), jnp.float32),
        "W2": jax.random.normal(ks[6], (1, H), jnp.float32) * jnp.sqrt(2.0 / (H + 1)),
        "b2": jnp.zeros((1,), jnp.float32),
        "Wc": u(ks[7], (H, 2 * H), 1.0 / jnp.sqrt(2 * H)),
        "bc": u(ks[8], (H,), 1.0 / jnp.sqrt(2 * H)),
        "b_dec": jnp.zeros((V,), jnp.float32),
    }


if __name__ == "__main__":
    NTOKEN, NHID = 256, 32    # tie_weights=True requires ninp == nhid
    B, T = 2, 8

    key = jax.random.PRNGKey(0)
    k_param, k_src = jax.random.split(key)
    params = init_params(k_param, NTOKEN, NHID)
    src = jax.random.randint(k_src, (B, T), 0, NTOKEN, dtype=jnp.int32)

    prep = prepare_params(params)     # one-time weight prep, reused every call

    logits, attn = attention_lstm_forward(src, prep, ntoken=NTOKEN)
    logits = jax.block_until_ready(logits)
    attn = jax.block_until_ready(attn)

    ref = reference_forward(src, params)
    assert logits.shape == (B * T, NTOKEN)
    assert attn.shape == (B, T, T)
    max_err = float(jnp.max(jnp.abs(logits - ref)))
    assert max_err < 2e-2, f"mismatch vs reference: {max_err}"

    print("KERNEL_OK")
</pallas_src>

<mosaic_0001>
module attributes {stable_mosaic.version = 11 : i64} {
  func.func @lstm_kernel(%arg0: i32, %arg1: memref<64x128xbf16, #tpu.memory_space<vmem>>, %arg2: memref<128x512xbf16, #tpu.memory_space<vmem>>, %arg3: memref<128x512xbf16, #tpu.memory_space<vmem>>, %arg4: memref<1x512xf32, #tpu.memory_space<vmem>>, %arg5: memref<64x128xbf16, #tpu.memory_space<vmem>>, %arg6: memref<8x128xf32, #tpu.memory_space<vmem>>, %arg7: memref<8x128xf32, #tpu.memory_space<vmem>>, %arg8: memref<64x512xf32, #tpu.memory_space<vmem>>) attributes {dimension_semantics = [#tpu.dimension_semantics<arbitrary>], iteration_bounds = array<i64: 1>, scalar_prefetch = 0 : i64, scratch_operands = 3 : i64, tpu.core_type = #tpu.core_type<tc>, window_params = [{transform_indices = @transform_0, window_bounds = array<i64: 64, 128>}, {pipeline_mode = #tpu.pipeline_mode<synchronous>, transform_indices = @transform_1, window_bounds = array<i64: 128, 512>}, {pipeline_mode = #tpu.pipeline_mode<synchronous>, transform_indices = @transform_2, window_bounds = array<i64: 128, 512>}, {pipeline_mode = #tpu.pipeline_mode<synchronous>, transform_indices = @transform_3, window_bounds = array<i64: 1, 512>}, {transform_indices = @transform_4, window_bounds = array<i64: 64, 128>}]} {
    %c0_i32 = arith.constant 0 : i32
    %0 = arith.cmpi eq, %arg0, %c0_i32 : i32
    %1 = arith.extui %0 : i1 to i32
    %c0_i32_0 = arith.constant 0 : i32
    %2 = arith.cmpi ne, %1, %c0_i32_0 : i32
    scf.if %2 {
      %cst_59 = arith.constant 0.000000e+00 : f32
      %191 = vector.broadcast %cst_59 : f32 to vector<8x128xf32>
      %c0_60 = arith.constant 0 : index
      %c0_61 = arith.constant 0 : index
      %192 = vector.load %arg6[%c0_60, %c0_61] : memref<8x128xf32, #tpu.memory_space<vmem>>, vector<8x128xf32>
      tpu.vector_store %arg6[%c0_60, %c0_61], %191 {strides = array<i32>} : memref<8x128xf32, #tpu.memory_space<vmem>>, vector<8x128xf32>,
      %cst_62 = arith.constant 0.000000e+00 : f32
      %193 = vector.broadcast %cst_62 : f32 to vector<8x128xf32>
      %c0_63 = arith.constant 0 : index
      %c0_64 = arith.constant 0 : index
      %194 = vector.load %arg7[%c0_63, %c0_64] : memref<8x128xf32, #tpu.memory_space<vmem>>, vector<8x128xf32>
      tpu.vector_store %arg7[%c0_63, %c0_64], %193 {strides = array<i32>} : memref<8x128xf32, #tpu.memory_space<vmem>>, vector<8x128xf32>,
    } else {
    }
    %c0 = arith.constant 0 : index
    %c0_1 = arith.constant 0 : index
    %3 = vector.load %arg1[%c0, %c0_1] : memref<64x128xbf16, #tpu.memory_space<vmem>>, vector<64x128xbf16>
    %c0_2 = arith.constant 0 : index
    %c0_3 = arith.constant 0 : index
    %4 = vector.load %arg2[%c0_2, %c0_3] : memref<128x512xbf16, #tpu.memory_space<vmem>>, vector<128x512xbf16>
    %cst = arith.constant dense<0.000000e+00> : vector<64x512xf32>
    %5 = tpu.matmul %3, %4, %cst {dimension_numbers = #tpu.dot_dimension_numbers<[1], [0], [0], [1], [0, 0, 1, 1], [], []>} : vector<64x128xbf16>, vector<128x512xbf16>, vector<64x512xf32> -> vector<64x512xf32>
    %c0_4 = arith.constant 0 : index
    %c0_5 = arith.constant 0 : index
    %6 = vector.load %arg4[%c0_4, %c0_5] : memref<1x512xf32, #tpu.memory_space<vmem>>, vector<1x512xf32>
    %7 = vector.broadcast %6 : vector<1x512xf32> to vector<64x512xf32>
    %8 = arith.addf %5, %7 : vector<64x512xf32>
    %c0_6 = arith.constant 0 : index
    %c0_7 = arith.constant 0 : index
    %9 = vector.load %arg8[%c0_6, %c0_7] : memref<64x512xf32, #tpu.memory_space<vmem>>, vector<64x512xf32>
    tpu.vector_store %arg8[%c0_6, %c0_7], %8 {strides = array<i32>} : memref<64x512xf32, #tpu.memory_space<vmem>>, vector<64x512xf32>,
    %c0_8 = arith.constant 0 : index
    %c0_9 = arith.constant 0 : index
    %10 = vector.load %arg3[%c0_8, %c0_9] : memref<128x512xbf16, #tpu.memory_space<vmem>>, vector<128x512xbf16>
    %c0_10 = arith.constant 0 : index
    %c0_11 = arith.constant 0 : index
    %11 = vector.load %arg6[%c0_10, %c0_11] : memref<8x128xf32, #tpu.memory_space<vmem>>, vector<8x128xf32>
    %c0_12 = arith.constant 0 : index
    %c0_13 = arith.constant 0 : index
    %12 = vector.load %arg7[%c0_12, %c0_13] : memref<8x128xf32, #tpu.memory_space<vmem>>, vector<8x128xf32>
    %c0_14 = arith.constant 0 : index
    %c0_15 = arith.constant 0 : index
    %13 = vector.load %arg8[%c0_14, %c0_15] : memref<64x512xf32, #tpu.memory_space<vmem>>, vector<8x512xf32>
    %14 = arith.truncf %11 : vector<8x128xf32> to vector<8x128xbf16>
    %cst_16 = arith.constant dense<0.000000e+00> : vector<8x512xf32>
    %15 = tpu.matmul %14, %10, %cst_16 {dimension_numbers = #tpu.dot_dimension_numbers<[1], [0], [0], [1], [0, 0, 1, 1], [], []>} : vector<8x128xbf16>, vector<128x512xbf16>, vector<8x512xf32> -> vector<8x512xf32>
    %16 = arith.addf %13, %15 : vector<8x512xf32>
    %17 = vector.extract_strided_slice %16 {offsets = [0, 0], sizes = [8, 384], strides = [1, 1]} : vector<8x512xf32> to vector<8x384xf32>
    %18 = arith.negf %17 : vector<8x384xf32>
    %19 = math.exp %18 : vector<8x384xf32>
    %cst_17 = arith.constant 1.000000e+00 : f32
    %20 = vector.broadcast %cst_17 : f32 to vector<8x384xf32>
    %21 = arith.addf %20, %19 : vector<8x384xf32>
    %22 = arith.divf %20, %21 : vector<8x384xf32>
    %23 = vector.extract_strided_slice %22 {offsets = [0, 0], sizes = [8, 128], strides = [1, 1]} : vector<8x384xf32> to vector<8x128xf32>
    %24 = vector.extract_strided_slice %22 {offsets = [0, 128], sizes = [8, 128], strides = [1, 1]} : vector<8x384xf32> to vector<8x128xf32>
    %25 = vector.extract_strided_slice %22 {offsets = [0, 256], sizes = [8, 128], strides = [1, 1]} : vector<8x384xf32> to vector<8x128xf32>
    %26 = vector.extract_strided_slice %16 {offsets = [0, 384], sizes = [8, 128], strides = [1, 1]} : vector<8x512xf32> to vector<8x128xf32>
    %27 = math.tanh %26 : vector<8x128xf32>
    %28 = arith.mulf %24, %12 : vector<8x128xf32>
    %29 = arith.mulf %23, %27 : vector<8x128xf32>
    %30 = arith.addf %28, %29 : vector<8x128xf32>
    %31 = math.tanh %30 : vector<8x128xf32>
    %32 = arith.mulf %25, %31 : vector<8x128xf32>
    %33 = arith.truncf %32 : vector<8x128xf32> to vector<8x128xbf16>
    %c0_18 = arith.constant 0 : index
    %c0_19 = arith.constant 0 : index
    %34 = vector.load %arg5[%c0_18, %c0_19] : memref<64x128xbf16, #tpu.memory_space<vmem>>, vector<8x128xbf16>
    tpu.vector_store %arg5[%c0_18, %c0_19], %33 {strides = array<i32>} : memref<64x128xbf16, #tpu.memory_space<vmem>>, vector<8x128xbf16>,
    %c8 = arith.constant 8 : index
    %c0_20 = arith.constant 0 : index
    %35 = vector.load %arg8[%c8, %c0_20] : memref<64x512xf32, #tpu.memory_space<vmem>>, vector<8x512xf32>
    %36 = arith.truncf %32 : vector<8x128xf32> to vector<8x128xbf16>
    %cst_21 = arith.constant dense<0.000000e+00> : vector<8x512xf32>
    %37 = tpu.matmul %36, %10, %cst_21 {dimension_numbers = #tpu.dot_dimension_numbers<[1], [0], [0], [1], [0, 0, 1, 1], [], []>} : vector<8x128xbf16>, vector<128x512xbf16>, vector<8x512xf32> -> vector<8x512xf32>
    %38 = arith.addf %35, %37 : vector<8x512xf32>
    %39 = vector.extract_strided_slice %38 {offsets = [0, 0], sizes = [8, 384], strides = [1, 1]} : vector<8x512xf32> to vector<8x384xf32>
    %40 = arith.negf %39 : vector<8x384xf32>
    %41 = math.exp %40 : vector<8x384xf32>
    %cst_22 = arith.constant 1.000000e+00 : f32
    %42 = vector.broadcast %cst_22 : f32 to vector<8x384xf32>
    %43 = arith.addf %42, %41 : vector<8x384xf32>
    %44 = arith.divf %42, %43 : vector<8x384xf32>
    %45 = vector.extract_strided_slice %44 {offsets = [0, 0], sizes = [8, 128], strides = [1, 1]} : vector<8x384xf32> to vector<8x128xf32>
    %46 = vector.extract_strided_slice %44 {offsets = [0, 128], sizes = [8, 128], strides = [1, 1]} : vector<8x384xf32> to vector<8x128xf32>
    %47 = vector.extract_strided_slice %44 {offsets = [0, 256], sizes = [8, 128], strides = [1, 1]} : vector<8x384xf32> to vector<8x128xf32>
    %48 = vector.extract_strided_slice %38 {offsets = [0, 384], sizes = [8, 128], strides = [1, 1]} : vector<8x512xf32> to vector<8x128xf32>
    %49 = math.tanh %48 : vector<8x128xf32>
    %50 = arith.mulf %46, %30 : vector<8x128xf32>
    %51 = arith.mulf %45, %49 : vector<8x128xf32>
    %52 = arith.addf %50, %51 : vector<8x128xf32>
    %53 = math.tanh %52 : vector<8x128xf32>
    %54 = arith.mulf %47, %53 : vector<8x128xf32>
    %55 = arith.truncf %54 : vector<8x128xf32> to vector<8x128xbf16>
    %c8_23 = arith.constant 8 : index
    %c0_24 = arith.constant 0 : index
    %56 = vector.load %arg5[%c8_23, %c0_24] : memref<64x128xbf16, #tpu.memory_space<vmem>>, vector<8x128xbf16>
    tpu.vector_store %arg5[%c8_23, %c0_24], %55 {strides = array<i32>} : memref<64x128xbf16, #tpu.memory_space<vmem>>, vector<8x128xbf16>,
    %c16 = arith.constant 16 : index
    %c0_25 = arith.constant 0 : index
    %57 = vector.load %arg8[%c16, %c0_25] : memref<64x512xf32, #tpu.memory_space<vmem>>, vector<8x512xf32>
    %58 = arith.truncf %54 : vector<8x128xf32> to vector<8x128xbf16>
    %cst_26 = arith.constant dense<0.000000e+00> : vector<8x512xf32>
    %59 = tpu.matmul %58, %10, %cst_26 {dimension_numbers = #tpu.dot_dimension_numbers<[1], [0], [0], [1], [0, 0, 1, 1], [], []>} : vector<8x128xbf16>, vector<128x512xbf16>, vector<8x512xf32> -> vector<8x512xf32>
    %60 = arith.addf %57, %59 : vector<8x512xf32>
    %61 = vector.extract_strided_slice %60 {offsets = [0, 0], sizes = [8, 384], strides = [1, 1]} : vector<8x512xf32> to vector<8x384xf32>
    %62 = arith.negf %61 : vector<8x384xf32>
    %63 = math.exp %62 : vector<8x384xf32>
    %cst_27 = arith.constant 1.000000e+00 : f32
    %64 = vector.broadcast %cst_27 : f32 to vector<8x384xf32>
    %65 = arith.addf %64, %63 : vector<8x384xf32>
    %66 = arith.divf %64, %65 : vector<8x384xf32>
    %67 = vector.extract_strided_slice %66 {offsets = [0, 0], sizes = [8, 128], strides = [1, 1]} : vector<8x384xf32> to vector<8x128xf32>
    %68 = vector.extract_strided_slice %66 {offsets = [0, 128], sizes = [8, 128], strides = [1, 1]} : vector<8x384xf32> to vector<8x128xf32>
    %69 = vector.extract_strided_slice %66 {offsets = [0, 256], sizes = [8, 128], strides = [1, 1]} : vector<8x384xf32> to vector<8x128xf32>
    %70 = vector.extract_strided_slice %60 {offsets = [0, 384], sizes = [8, 128], strides = [1, 1]} : vector<8x512xf32> to vector<8x128xf32>
    %71 = math.tanh %70 : vector<8x128xf32>
    %72 = arith.mulf %68, %52 : vector<8x128xf32>
    %73 = arith.mulf %67, %71 : vector<8x128xf32>
    %74 = arith.addf %72, %73 : vector<8x128xf32>
    %75 = math.tanh %74 : vector<8x128xf32>
    %76 = arith.mulf %69, %75 : vector<8x128xf32>
    %77 = arith.truncf %76 : vector<8x128xf32> to vector<8x128xbf16>
    %c16_28 = arith.constant 16 : index
    %c0_29 = arith.constant 0 : index
    %78 = vector.load %arg5[%c16_28, %c0_29] : memref<64x128xbf16, #tpu.memory_space<vmem>>, vector<8x128xbf16>
    tpu.vector_store %arg5[%c16_28, %c0_29], %77 {strides = array<i32>} : memref<64x128xbf16, #tpu.memory_space<vmem>>, vector<8x128xbf16>,
    %c24 = arith.constant 24 : index
    %c0_30 = arith.constant 0 : index
    %79 = vector.load %arg8[%c24, %c0_30] : memref<64x512xf32, #tpu.memory_space<vmem>>, vector<8x512xf32>
    %80 = arith.truncf %76 : vector<8x128xf32> to vector<8x128xbf16>
    %cst_31 = arith.constant dense<0.000000e+00> : vector<8x512xf32>
    %81 = tpu.matmul %80, %10, %cst_31 {dimension_numbers = #tpu.dot_dimension_numbers<[1], [0], [0], [1], [0, 0, 1, 1], [], []>} : vector<8x128xbf16>, vector<128x512xbf16>, vector<8x512xf32> -> vector<8x512xf32>
    %82 = arith.addf %79, %81 : vector<8x512xf32>
    %83 = vector.extract_strided_slice %82 {offsets = [0, 0], sizes = [8, 384], strides = [1, 1]} : vector<8x512xf32> to vector<8x384xf32>
    %84 = arith.negf %83 : vector<8x384xf32>
    %85 = math.exp %84 : vector<8x384xf32>
    %cst_32 = arith.constant 1.000000e+00 : f32
    %86 = vector.broadcast %cst_32 : f32 to vector<8x384xf32>
    %87 = arith.addf %86, %85 : vector<8x384xf32>
    %88 = arith.divf %86, %87 : vector<8x384xf32>
    %89 = vector.extract_strided_slice %88 {offsets = [0, 0], sizes = [8, 128], strides = [1, 1]} : vector<8x384xf32> to vector<8x128xf32>
    %90 = vector.extract_strided_slice %88 {offsets = [0, 128], sizes = [8, 128], strides = [1, 1]} : vector<8x384xf32> to vector<8x128xf32>
    %91 = vector.extract_strided_slice %88 {offsets = [0, 256], sizes = [8, 128], strides = [1, 1]} : vector<8x384xf32> to vector<8x128xf32>
    %92 = vector.extract_strided_slice %82 {offsets = [0, 384], sizes = [8, 128], strides = [1, 1]} : vector<8x512xf32> to vector<8x128xf32>
    %93 = math.tanh %92 : vector<8x128xf32>
    %94 = arith.mulf %90, %74 : vector<8x128xf32>
    %95 = arith.mulf %89, %93 : vector<8x128xf32>
    %96 = arith.addf %94, %95 : vector<8x128xf32>
    %97 = math.tanh %96 : vector<8x128xf32>
    %98 = arith.mulf %91, %97 : vector<8x128xf32>
    %99 = arith.truncf %98 : vector<8x128xf32> to vector<8x128xbf16>
    %c24_33 = arith.constant 24 : index
    %c0_34 = arith.constant 0 : index
    %100 = vector.load %arg5[%c24_33, %c0_34] : memref<64x128xbf16, #tpu.memory_space<vmem>>, vector<8x128xbf16>
    tpu.vector_store %arg5[%c24_33, %c0_34], %99 {strides = array<i32>} : memref<64x128xbf16, #tpu.memory_space<vmem>>, vector<8x128xbf16>,
    %c32 = arith.constant 32 : index
    %c0_35 = arith.constant 0 : index
    %101 = vector.load %arg8[%c32, %c0_35] : memref<64x512xf32, #tpu.memory_space<vmem>>, vector<8x512xf32>
    %102 = arith.truncf %98 : vector<8x128xf32> to vector<8x128xbf16>
    %cst_36 = arith.constant dense<0.000000e+00> : vector<8x512xf32>
    %103 = tpu.matmul %102, %10, %cst_36 {dimension_numbers = #tpu.dot_dimension_numbers<[1], [0], [0], [1], [0, 0, 1, 1], [], []>} : vector<8x128xbf16>, vector<128x512xbf16>, vector<8x512xf32> -> vector<8x512xf32>
    %104 = arith.addf %101, %103 : vector<8x512xf32>
    %105 = vector.extract_strided_slice %104 {offsets = [0, 0], sizes = [8, 384], strides = [1, 1]} : vector<8x512xf32> to vector<8x384xf32>
    %106 = arith.negf %105 : vector<8x384xf32>
    %107 = math.exp %106 : vector<8x384xf32>
    %cst_37 = arith.constant 1.000000e+00 : f32
    %108 = vector.broadcast %cst_37 : f32 to vector<8x384xf32>
    %109 = arith.addf %108, %107 : vector<8x384xf32>
    %110 = arith.divf %108, %109 : vector<8x384xf32>
    %111 = vector.extract_strided_slice %110 {offsets = [0, 0], sizes = [8, 128], strides = [1, 1]} : vector<8x384xf32> to vector<8x128xf32>
    %112 = vector.extract_strided_slice %110 {offsets = [0, 128], sizes = [8, 128], strides = [1, 1]} : vector<8x384xf32> to vector<8x128xf32>
    %113 = vector.extract_strided_slice %110 {offsets = [0, 256], sizes = [8, 128], strides = [1, 1]} : vector<8x384xf32> to vector<8x128xf32>
    %114 = vector.extract_strided_slice %104 {offsets = [0, 384], sizes = [8, 128], strides = [1, 1]} : vector<8x512xf32> to vector<8x128xf32>
    %115 = math.tanh %114 : vector<8x128xf32>
    %116 = arith.mulf %112, %96 : vector<8x128xf32>
    %117 = arith.mulf %111, %115 : vector<8x128xf32>
    %118 = arith.addf %116, %117 : vector<8x128xf32>
    %119 = math.tanh %118 : vector<8x128xf32>
    %120 = arith.mulf %113, %119 : vector<8x128xf32>
    %121 = arith.truncf %120 : vector<8x128xf32> to vector<8x128xbf16>
    %c32_38 = arith.constant 32 : index
    %c0_39 = arith.constant 0 : index
    %122 = vector.load %arg5[%c32_38, %c0_39] : memref<64x128xbf16, #tpu.memory_space<vmem>>, vector<8x128xbf16>
    tpu.vector_store %arg5[%c32_38, %c0_39], %121 {strides = array<i32>} : memref<64x128xbf16, #tpu.memory_space<vmem>>, vector<8x128xbf16>,
    %c40 = arith.constant 40 : index
    %c0_40 = arith.constant 0 : index
    %123 = vector.load %arg8[%c40, %c0_40] : memref<64x512xf32, #tpu.memory_space<vmem>>, vector<8x512xf32>
    %124 = arith.truncf %120 : vector<8x128xf32> to vector<8x128xbf16>
    %cst_41 = arith.constant dense<0.000000e+00> : vector<8x512xf32>
    %125 = tpu.matmul %124, %10, %cst_41 {dimension_numbers = #tpu.dot_dimension_numbers<[1], [0], [0], [1], [0, 0, 1, 1], [], []>} : vector<8x128xbf16>, vector<128x512xbf16>, vector<8x512xf32> -> vector<8x512xf32>
    %126 = arith.addf %123, %125 : vector<8x512xf32>
    %127 = vector.extract_strided_slice %126 {offsets = [0, 0], sizes = [8, 384], strides = [1, 1]} : vector<8x512xf32> to vector<8x384xf32>
    %128 = arith.negf %127 : vector<8x384xf32>
    %129 = math.exp %128 : vector<8x384xf32>
    %cst_42 = arith.constant 1.000000e+00 : f32
    %130 = vector.broadcast %cst_42 : f32 to vector<8x384xf32>
    %131 = arith.addf %130, %129 : vector<8x384xf32>
    %132 = arith.divf %130, %131 : vector<8x384xf32>
    %133 = vector.extract_strided_slice %132 {offsets = [0, 0], sizes = [8, 128], strides = [1, 1]} : vector<8x384xf32> to vector<8x128xf32>
    %134 = vector.extract_strided_slice %132 {offsets = [0, 128], sizes = [8, 128], strides = [1, 1]} : vector<8x384xf32> to vector<8x128xf32>
    %135 = vector.extract_strided_slice %132 {offsets = [0, 256], sizes = [8, 128], strides = [1, 1]} : vector<8x384xf32> to vector<8x128xf32>
    %136 = vector.extract_strided_slice %126 {offsets = [0, 384], sizes = [8, 128], strides = [1, 1]} : vector<8x512xf32> to vector<8x128xf32>
    %137 = math.tanh %136 : vector<8x128xf32>
    %138 = arith.mulf %134, %118 : vector<8x128xf32>
    %139 = arith.mulf %133, %137 : vector<8x128xf32>
    %140 = arith.addf %138, %139 : vector<8x128xf32>
    %141 = math.tanh %140 : vector<8x128xf32>
    %142 = arith.mulf %135, %141 : vector<8x128xf32>
    %143 = arith.truncf %142 : vector<8x128xf32> to vector<8x128xbf16>
    %c40_43 = arith.constant 40 : index
    %c0_44 = arith.constant 0 : index
    %144 = vector.load %arg5[%c40_43, %c0_44] : memref<64x128xbf16, #tpu.memory_space<vmem>>, vector<8x128xbf16>
    tpu.vector_store %arg5[%c40_43, %c0_44], %143 {strides = array<i32>} : memref<64x128xbf16, #tpu.memory_space<vmem>>, vector<8x128xbf16>,
    %c48 = arith.constant 48 : index
    %c0_45 = arith.constant 0 : index
    %145 = vector.load %arg8[%c48, %c0_45] : memref<64x512xf32, #tpu.memory_space<vmem>>, vector<8x512xf32>
    %146 = arith.truncf %142 : vector<8x128xf32> to vector<8x128xbf16>
    %cst_46 = arith.constant dense<0.000000e+00> : vector<8x512xf32>
    %147 = tpu.matmul %146, %10, %cst_46 {dimension_numbers = #tpu.dot_dimension_numbers<[1], [0], [0], [1], [0, 0, 1, 1], [], []>} : vector<8x128xbf16>, vector<128x512xbf16>, vector<8x512xf32> -> vector<8x512xf32>
    %148 = arith.addf %145, %147 : vector<8x512xf32>
    %149 = vector.extract_strided_slice %148 {offsets = [0, 0], sizes = [8, 384], strides = [1, 1]} : vector<8x512xf32> to vector<8x384xf32>
    %150 = arith.negf %149 : vector<8x384xf32>
    %151 = math.exp %150 : vector<8x384xf32>
    %cst_47 = arith.constant 1.000000e+00 : f32
    %152 = vector.broadcast %cst_47 : f32 to vector<8x384xf32>
    %153 = arith.addf %152, %151 : vector<8x384xf32>
    %154 = arith.divf %152, %153 : vector<8x384xf32>
    %155 = vector.extract_strided_slice %154 {offsets = [0, 0], sizes = [8, 128], strides = [1, 1]} : vector<8x384xf32> to vector<8x128xf32>
    %156 = vector.extract_strided_slice %154 {offsets = [0, 128], sizes = [8, 128], strides = [1, 1]} : vector<8x384xf32> to vector<8x128xf32>
    %157 = vector.extract_strided_slice %154 {offsets = [0, 256], sizes = [8, 128], strides = [1, 1]} : vector<8x384xf32> to vector<8x128xf32>
    %158 = vector.extract_strided_slice %148 {offsets = [0, 384], sizes = [8, 128], strides = [1, 1]} : vector<8x512xf32> to vector<8x128xf32>
    %159 = math.tanh %158 : vector<8x128xf32>
    %160 = arith.mulf %156, %140 : vector<8x128xf32>
    %161 = arith.mulf %155, %159 : vector<8x128xf32>
    %162 = arith.addf %160, %161 : vector<8x128xf32>
    %163 = math.tanh %162 : vector<8x128xf32>
    %164 = arith.mulf %157, %163 : vector<8x128xf32>
    %165 = arith.truncf %164 : vector<8x128xf32> to vector<8x128xbf16>
    %c48_48 = arith.constant 48 : index
    %c0_49 = arith.constant 0 : index
    %166 = vector.load %arg5[%c48_48, %c0_49] : memref<64x128xbf16, #tpu.memory_space<vmem>>, vector<8x128xbf16>
    tpu.vector_store %arg5[%c48_48, %c0_49], %165 {strides = array<i32>} : memref<64x128xbf16, #tpu.memory_space<vmem>>, vector<8x128xbf16>,
    %c56 = arith.constant 56 : index
    %c0_50 = arith.constant 0 : index
    %167 = vector.load %arg8[%c56, %c0_50] : memref<64x512xf32, #tpu.memory_space<vmem>>, vector<8x512xf32>
    %168 = arith.truncf %164 : vector<8x128xf32> to vector<8x128xbf16>
    %cst_51 = arith.constant dense<0.000000e+00> : vector<8x512xf32>
    %169 = tpu.matmul %168, %10, %cst_51 {dimension_numbers = #tpu.dot_dimension_numbers<[1], [0], [0], [1], [0, 0, 1, 1], [], []>} : vector<8x128xbf16>, vector<128x512xbf16>, vector<8x512xf32> -> vector<8x512xf32>
    %170 = arith.addf %167, %169 : vector<8x512xf32>
    %171 = vector.extract_strided_slice %170 {offsets = [0, 0], sizes = [8, 384], strides = [1, 1]} : vector<8x512xf32> to vector<8x384xf32>
    %172 = arith.negf %171 : vector<8x384xf32>
    %173 = math.exp %172 : vector<8x384xf32>
    %cst_52 = arith.constant 1.000000e+00 : f32
    %174 = vector.broadcast %cst_52 : f32 to vector<8x384xf32>
    %175 = arith.addf %174, %173 : vector<8x384xf32>
    %176 = arith.divf %174, %175 : vector<8x384xf32>
    %177 = vector.extract_strided_slice %176 {offsets = [0, 0], sizes = [8, 128], strides = [1, 1]} : vector<8x384xf32> to vector<8x128xf32>
    %178 = vector.extract_strided_slice %176 {offsets = [0, 128], sizes = [8, 128], strides = [1, 1]} : vector<8x384xf32> to vector<8x128xf32>
    %179 = vector.extract_strided_slice %176 {offsets = [0, 256], sizes = [8, 128], strides = [1, 1]} : vector<8x384xf32> to vector<8x128xf32>
    %180 = vector.extract_strided_slice %170 {offsets = [0, 384], sizes = [8, 128], strides = [1, 1]} : vector<8x512xf32> to vector<8x128xf32>
    %181 = math.tanh %180 : vector<8x128xf32>
    %182 = arith.mulf %178, %162 : vector<8x128xf32>
    %183 = arith.mulf %177, %181 : vector<8x128xf32>
    %184 = arith.addf %182, %183 : vector<8x128xf32>
    %185 = math.tanh %184 : vector<8x128xf32>
    %186 = arith.mulf %179, %185 : vector<8x128xf32>
    %187 = arith.truncf %186 : vector<8x128xf32> to vector<8x128xbf16>
    %c56_53 = arith.constant 56 : index
    %c0_54 = arith.constant 0 : index
    %188 = vector.load %arg5[%c56_53, %c0_54] : memref<64x128xbf16, #tpu.memory_space<vmem>>, vector<8x128xbf16>
    tpu.vector_store %arg5[%c56_53, %c0_54], %187 {strides = array<i32>} : memref<64x128xbf16, #tpu.memory_space<vmem>>, vector<8x128xbf16>,
    %c0_55 = arith.constant 0 : index
    %c0_56 = arith.constant 0 : index
    %189 = vector.load %arg6[%c0_55, %c0_56] : memref<8x128xf32, #tpu.memory_space<vmem>>, vector<8x128xf32>
    tpu.vector_store %arg6[%c0_55, %c0_56], %186 {strides = array<i32>} : memref<8x128xf32, #tpu.memory_space<vmem>>, vector<8x128xf32>,
    %c0_57 = arith.constant 0 : index
    %c0_58 = arith.constant 0 : index
    %190 = vector.load %arg7[%c0_57, %c0_58] : memref<8x128xf32, #tpu.memory_space<vmem>>, vector<8x128xf32>
    tpu.vector_store %arg7[%c0_57, %c0_58], %184 {strides = array<i32>} : memref<8x128xf32, #tpu.memory_space<vmem>>, vector<8x128xf32>,
    return
  }
  func.func @transform_0(%arg0: i32) -> (i32, i32) {
    %c0_i32 = arith.constant 0 : i32
    %c0_i32_0 = arith.constant 0 : i32
    return %arg0, %c0_i32 : i32, i32
  }
  func.func @transform_1(%arg0: i32) -> (i32, i32) {
    %c0_i32 = arith.constant 0 : i32
    %c0_i32_0 = arith.constant 0 : i32
    %c0_i32_1 = arith.constant 0 : i32
    return %c0_i32, %c0_i32_0 : i32, i32
  }
  func.func @transform_2(%arg0: i32) -> (i32, i32) {
    %c0_i32 = arith.constant 0 : i32
    %c0_i32_0 = arith.constant 0 : i32
    %c0_i32_1 = arith.constant 0 : i32
    return %c0_i32, %c0_i32_0 : i32, i32
  }
  func.func @transform_3(%arg0: i32) -> (i32, i32) {
    %c0_i32 = arith.constant 0 : i32
    %c0_i32_0 = arith.constant 0 : i32
    %c0_i32_1 = arith.constant 0 : i32
    return %c0_i32, %c0_i32_0 : i32, i32
  }
  func.func @transform_4(%arg0: i32) -> (i32, i32) {
    %c0_i32 = arith.constant 0 : i32
    %c0_i32_0 = arith.constant 0 : i32
    return %arg0, %c0_i32 : i32, i32
  }
}

module attributes {stable_mosaic.version = 11 : i64} {
  func.func @attn_concat_kernel(%arg0: i32, %arg1: memref<64x128xbf16, #tpu.memory_space<vmem>>, %arg2: memref<128x128xbf16, #tpu.memory_space<vmem>>, %arg3: memref<1x128xf32, #tpu.memory_space<vmem>>, %arg4: memref<1x128xf32, #tpu.memory_space<vmem>>, %arg5: memref<1x1xf32, #tpu.memory_space<vmem>>, %arg6: memref<128x128xbf16, #tpu.memory_space<vmem>>, %arg7: memref<128x128xbf16, #tpu.memory_space<vmem>>, %arg8: memref<1x128xf32, #tpu.memory_space<vmem>>, %arg9: memref<64x128xbf16, #tpu.memory_space<vmem>>, %arg10: memref<64x1xf32, #tpu.memory_space<vmem>>, %arg11: memref<8x1xf32, #tpu.memory_space<vmem>>, %arg12: memref<8x1xf32, #tpu.memory_space<vmem>>, %arg13: memref<8x128xf32, #tpu.memory_space<vmem>>, %arg14: memref<64x128xbf16, #tpu.memory_space<vmem>>) attributes {dimension_semantics = [#tpu.dimension_semantics<arbitrary>], iteration_bounds = array<i64: 1>, scalar_prefetch = 0 : i64, scratch_operands = 4 : i64, tpu.core_type = #tpu.core_type<tc>, window_params = [{transform_indices = @transform_0, window_bounds = array<i64: 64, 128>}, {pipeline_mode = #tpu.pipeline_mode<synchronous>, transform_indices = @transform_1, window_bounds = array<i64: 128, 128>}, {pipeline_mode = #tpu.pipeline_mode<synchronous>, transform_indices = @transform_2, window_bounds = array<i64: 1, 128>}, {pipeline_mode = #tpu.pipeline_mode<synchronous>, transform_indices = @transform_3, window_bounds = array<i64: 1, 128>}, {pipeline_mode = #tpu.pipeline_mode<synchronous>, transform_indices = @transform_4, window_bounds = array<i64: 1, 1>}, {pipeline_mode = #tpu.pipeline_mode<synchronous>, transform_indices = @transform_5, window_bounds = array<i64: 128, 128>}, {pipeline_mode = #tpu.pipeline_mode<synchronous>, transform_indices = @transform_6, window_bounds = array<i64: 128, 128>}, {pipeline_mode = #tpu.pipeline_mode<synchronous>, transform_indices = @transform_7, window_bounds = array<i64: 1, 128>}, {transform_indices = @transform_8, window_bounds = array<i64: 64, 128>}, {transform_indices = @transform_9, window_bounds = array<i64: 64, 1>}]} {
    %c0_i32 = arith.constant 0 : i32
    %0 = arith.cmpi eq, %arg0, %c0_i32 : i32
    %1 = arith.extui %0 : i1 to i32
    %c0_i32_0 = arith.constant 0 : i32
    %2 = arith.cmpi ne, %1, %c0_i32_0 : i32
    scf.if %2 {
      %cst_64 = arith.constant 0xFF800000 : f32
      %198 = vector.broadcast %cst_64 : f32 to vector<8x1xf32>
      %c0_65 = arith.constant 0 : index
      %c0_66 = arith.constant 0 : index
      %199 = vector.load %arg11[%c0_65, %c0_66] : memref<8x1xf32, #tpu.memory_space<vmem>>, vector<8x1xf32>
      tpu.vector_store %arg11[%c0_65, %c0_66], %198 {strides = array<i32>} : memref<8x1xf32, #tpu.memory_space<vmem>>, vector<8x1xf32>,
      %cst_67 = arith.constant 0.000000e+00 : f32
      %200 = vector.broadcast %cst_67 : f32 to vector<8x1xf32>
      %c0_68 = arith.constant 0 : index
      %c0_69 = arith.constant 0 : index
      %201 = vector.load %arg12[%c0_68, %c0_69] : memref<8x1xf32, #tpu.memory_space<vmem>>, vector<8x1xf32>
      tpu.vector_store %arg12[%c0_68, %c0_69], %200 {strides = array<i32>} : memref<8x1xf32, #tpu.memory_space<vmem>>, vector<8x1xf32>,
      %cst_70 = arith.constant 0.000000e+00 : f32
      %202 = vector.broadcast %cst_70 : f32 to vector<8x128xf32>
      %c0_71 = arith.constant 0 : index
      %c0_72 = arith.constant 0 : index
      %203 = vector.load %arg13[%c0_71, %c0_72] : memref<8x128xf32, #tpu.memory_space<vmem>>, vector<8x128xf32>
      tpu.vector_store %arg13[%c0_71, %c0_72], %202 {strides = array<i32>} : memref<8x128xf32, #tpu.memory_space<vmem>>, vector<8x128xf32>,
    } else {
    }
    %c0 = arith.constant 0 : index
    %c0_1 = arith.constant 0 : index
    %3 = vector.load %arg1[%c0, %c0_1] : memref<64x128xbf16, #tpu.memory_space<vmem>>, vector<64x128xbf16>
    %c0_2 = arith.constant 0 : index
    %c0_3 = arith.constant 0 : index
    %4 = vector.load %arg2[%c0_2, %c0_3] : memref<128x128xbf16, #tpu.memory_space<vmem>>, vector<128x128xbf16>
    %cst = arith.constant dense<0.000000e+00> : vector<64x128xf32>
    %5 = tpu.matmul %3, %4, %cst {dimension_numbers = #tpu.dot_dimension_numbers<[1], [0], [0], [1], [0, 0, 1, 1], [], []>} : vector<64x128xbf16>, vector<128x128xbf16>, vector<64x128xf32> -> vector<64x128xf32>
    %c0_4 = arith.constant 0 : index
    %c0_5 = arith.constant 0 : index
    %6 = vector.load %arg3[%c0_4, %c0_5] : memref<1x128xf32, #tpu.memory_space<vmem>>, vector<1x128xf32>
    %7 = vector.broadcast %6 : vector<1x128xf32> to vector<64x128xf32>
    %8 = arith.addf %5, %7 : vector<64x128xf32>
    %9 = math.tanh %8 : vector<64x128xf32>
    %c0_6 = arith.constant 0 : index
    %c0_7 = arith.constant 0 : index
    %10 = vector.load %arg4[%c0_6, %c0_7] : memref<1x128xf32, #tpu.memory_space<vmem>>, vector<1x128xf32>
    %11 = vector.broadcast %10 : vector<1x128xf32> to vector<64x128xf32>
    %12 = arith.mulf %9, %11 : vector<64x128xf32>
    %cst_8 = arith.constant dense<0.000000e+00> : vector<64xf32>
    %13 = vector.multi_reduction <add>, %12, %cst_8 [1] : vector<64x128xf32> to vector<64xf32>
    %14 = vector.shape_cast %13 : vector<64xf32> to vector<64x1xf32>
    %c0_9 = arith.constant 0 : index
    %c0_10 = arith.constant 0 : index
    %15 = vector.load %arg5[%c0_9, %c0_10] : memref<1x1xf32, #tpu.memory_space<vmem>>, vector<1x1xf32>
    %16 = vector.broadcast %15 : vector<1x1xf32> to vector<64x1xf32>
    %17 = arith.addf %14, %16 : vector<64x1xf32>
    %c0_11 = arith.constant 0 : index
    %c0_12 = arith.constant 0 : index
    %18 = vector.load %arg10[%c0_11, %c0_12] : memref<64x1xf32, #tpu.memory_space<vmem>>, vector<64x1xf32>
    tpu.vector_store %arg10[%c0_11, %c0_12], %17 {strides = array<i32>} : memref<64x1xf32, #tpu.memory_space<vmem>>, vector<64x1xf32>,
    %c0_13 = arith.constant 0 : index
    %c0_14 = arith.constant 0 : index
    %19 = vector.load %arg11[%c0_13, %c0_14] : memref<8x1xf32, #tpu.memory_space<vmem>>, vector<8x1xf32>
    %c0_15 = arith.constant 0 : index
    %c0_16 = arith.constant 0 : index
    %20 = vector.load %arg12[%c0_15, %c0_16] : memref<8x1xf32, #tpu.memory_space<vmem>>, vector<8x1xf32>
    %c0_17 = arith.constant 0 : index
    %c0_18 = arith.constant 0 : index
    %21 = vector.load %arg13[%c0_17, %c0_18] : memref<8x128xf32, #tpu.memory_space<vmem>>, vector<8x128xf32>
    %22 = vector.extract_strided_slice %17 {offsets = [0, 0], sizes = [8, 1], strides = [1, 1]} : vector<64x1xf32> to vector<8x1xf32>
    %c0_19 = arith.constant 0 : index
    %c0_20 = arith.constant 0 : index
    %23 = vector.load %arg1[%c0_19, %c0_20] : memref<64x128xbf16, #tpu.memory_space<vmem>>, vector<8x128xbf16>
    %24 = arith.extf %23 : vector<8x128xbf16> to vector<8x128xf32>
    %25 = arith.maximumf %19, %22 : vector<8x1xf32>
    %26 = arith.subf %19, %25 : vector<8x1xf32>
    %27 = math.exp %26 : vector<8x1xf32>
    %28 = arith.subf %22, %25 : vector<8x1xf32>
    %29 = math.exp %28 : vector<8x1xf32>
    %30 = arith.mulf %27, %20 : vector<8x1xf32>
    %31 = arith.addf %30, %29 : vector<8x1xf32>
    %32 = vector.broadcast %27 : vector<8x1xf32> to vector<8x128xf32>
    %33 = arith.mulf %32, %21 : vector<8x128xf32>
    %34 = vector.broadcast %29 : vector<8x1xf32> to vector<8x128xf32>
    %35 = arith.mulf %34, %24 : vector<8x128xf32>
    %36 = arith.addf %33, %35 : vector<8x128xf32>
    %37 = tpu.reciprocal %31 {approx = true} : vector<8x1xf32> -> vector<8x1xf32>
    %38 = vector.broadcast %37 : vector<8x1xf32> to vector<8x128xf32>
    %39 = arith.mulf %36, %38 : vector<8x128xf32>
    %40 = arith.truncf %39 : vector<8x128xf32> to vector<8x128xbf16>
    %c0_21 = arith.constant 0 : index
    %c0_22 = arith.constant 0 : index
    %41 = vector.load %arg14[%c0_21, %c0_22] : memref<64x128xbf16, #tpu.memory_space<vmem>>, vector<8x128xbf16>
    tpu.vector_store %arg14[%c0_21, %c0_22], %40 {strides = array<i32>} : memref<64x128xbf16, #tpu.memory_space<vmem>>, vector<8x128xbf16>,
    %42 = vector.extract_strided_slice %17 {offsets = [8, 0], sizes = [8, 1], strides = [1, 1]} : vector<64x1xf32> to vector<8x1xf32>
    %c8 = arith.constant 8 : index
    %c0_23 = arith.constant 0 : index
    %43 = vector.load %arg1[%c8, %c0_23] : memref<64x128xbf16, #tpu.memory_space<vmem>>, vector<8x128xbf16>
    %44 = arith.extf %43 : vector<8x128xbf16> to vector<8x128xf32>
    %45 = arith.maximumf %25, %42 : vector<8x1xf32>
    %46 = arith.subf %25, %45 : vector<8x1xf32>
    %47 = math.exp %46 : vector<8x1xf32>
    %48 = arith.subf %42, %45 : vector<8x1xf32>
    %49 = math.exp %48 : vector<8x1xf32>
    %50 = arith.mulf %47, %31 : vector<8x1xf32>
    %51 = arith.addf %50, %49 : vector<8x1xf32>
    %52 = vector.broadcast %47 : vector<8x1xf32> to vector<8x128xf32>
    %53 = arith.mulf %52, %36 : vector<8x128xf32>
    %54 = vector.broadcast %49 : vector<8x1xf32> to vector<8x128xf32>
    %55 = arith.mulf %54, %44 : vector<8x128xf32>
    %56 = arith.addf %53, %55 : vector<8x128xf32>
    %57 = tpu.reciprocal %51 {approx = true} : vector<8x1xf32> -> vector<8x1xf32>
    %58 = vector.broadcast %57 : vector<8x1xf32> to vector<8x128xf32>
    %59 = arith.mulf %56, %58 : vector<8x128xf32>
    %60 = arith.truncf %59 : vector<8x128xf32> to vector<8x128xbf16>
    %c8_24 = arith.constant 8 : index
    %c0_25 = arith.constant 0 : index
    %61 = vector.load %arg14[%c8_24, %c0_25] : memref<64x128xbf16, #tpu.memory_space<vmem>>, vector<8x128xbf16>
    tpu.vector_store %arg14[%c8_24, %c0_25], %60 {strides = array<i32>} : memref<64x128xbf16, #tpu.memory_space<vmem>>, vector<8x128xbf16>,
    %62 = vector.extract_strided_slice %17 {offsets = [16, 0], sizes = [8, 1], strides = [1, 1]} : vector<64x1xf32> to vector<8x1xf32>
    %c16 = arith.constant 16 : index
    %c0_26 = arith.constant 0 : index
    %63 = vector.load %arg1[%c16, %c0_26] : memref<64x128xbf16, #tpu.memory_space<vmem>>, vector<8x128xbf16>
    %64 = arith.extf %63 : vector<8x128xbf16> to vector<8x128xf32>
    %65 = arith.maximumf %45, %62 : vector<8x1xf32>
    %66 = arith.subf %45, %65 : vector<8x1xf32>
    %67 = math.exp %66 : vector<8x1xf32>
    %68 = arith.subf %62, %65 : vector<8x1xf32>
    %69 = math.exp %68 : vector<8x1xf32>
    %70 = arith.mulf %67, %51 : vector<8x1xf32>
    %71 = arith.addf %70, %69 : vector<8x1xf32>
    %72 = vector.broadcast %67 : vector<8x1xf32> to vector<8x128xf32>
    %73 = arith.mulf %72, %56 : vector<8x128xf32>
    %74 = vector.broadcast %69 : vector<8x1xf32> to vector<8x128xf32>
    %75 = arith.mulf %74, %64 : vector<8x128xf32>
    %76 = arith.addf %73, %75 : vector<8x128xf32>
    %77 = tpu.reciprocal %71 {approx = true} : vector<8x1xf32> -> vector<8x1xf32>
    %78 = vector.broadcast %77 : vector<8x1xf32> to vector<8x128xf32>
    %79 = arith.mulf %76, %78 : vector<8x128xf32>
    %80 = arith.truncf %79 : vector<8x128xf32> to vector<8x128xbf16>
    %c16_27 = arith.constant 16 : index
    %c0_28 = arith.constant 0 : index
    %81 = vector.load %arg14[%c16_27, %c0_28] : memref<64x128xbf16, #tpu.memory_space<vmem>>, vector<8x128xbf16>
    tpu.vector_store %arg14[%c16_27, %c0_28], %80 {strides = array<i32>} : memref<64x128xbf16, #tpu.memory_space<vmem>>, vector<8x128xbf16>,
    %82 = vector.extract_strided_slice %17 {offsets = [24, 0], sizes = [8, 1], strides = [1, 1]} : vector<64x1xf32> to vector<8x1xf32>
    %c24 = arith.constant 24 : index
    %c0_29 = arith.constant 0 : index
    %83 = vector.load %arg1[%c24, %c0_29] : memref<64x128xbf16, #tpu.memory_space<vmem>>, vector<8x128xbf16>
    %84 = arith.extf %83 : vector<8x128xbf16> to vector<8x128xf32>
    %85 = arith.maximumf %65, %82 : vector<8x1xf32>
    %86 = arith.subf %65, %85 : vector<8x1xf32>
    %87 = math.exp %86 : vector<8x1xf32>
    %88 = arith.subf %82, %85 : vector<8x1xf32>
    %89 = math.exp %88 : vector<8x1xf32>
    %90 = arith.mulf %87, %71 : vector<8x1xf32>
    %91 = arith.addf %90, %89 : vector<8x1xf32>
    %92 = vector.broadcast %87 : vector<8x1xf32> to vector<8x128xf32>
    %93 = arith.mulf %92, %76 : vector<8x128xf32>
    %94 = vector.broadcast %89 : vector<8x1xf32> to vector<8x128xf32>
    %95 = arith.mulf %94, %84 : vector<8x128xf32>
    %96 = arith.addf %93, %95 : vector<8x128xf32>
    %97 = tpu.reciprocal %91 {approx = true} : vector<8x1xf32> -> vector<8x1xf32>
    %98 = vector.broadcast %97 : vector<8x1xf32> to vector<8x128xf32>
    %99 = arith.mulf %96, %98 : vector<8x128xf32>
    %100 = arith.truncf %99 : vector<8x128xf32> to vector<8x128xbf16>
    %c24_30 = arith.constant 24 : index
    %c0_31 = arith.constant 0 : index
    %101 = vector.load %arg14[%c24_30, %c0_31] : memref<64x128xbf16, #tpu.memory_space<vmem>>, vector<8x128xbf16>
    tpu.vector_store %arg14[%c24_30, %c0_31], %100 {strides = array<i32>} : memref<64x128xbf16, #tpu.memory_space<vmem>>, vector<8x128xbf16>,
    %102 = vector.extract_strided_slice %17 {offsets = [32, 0], sizes = [8, 1], strides = [1, 1]} : vector<64x1xf32> to vector<8x1xf32>
    %c32 = arith.constant 32 : index
    %c0_32 = arith.constant 0 : index
    %103 = vector.load %arg1[%c32, %c0_32] : memref<64x128xbf16, #tpu.memory_space<vmem>>, vector<8x128xbf16>
    %104 = arith.extf %103 : vector<8x128xbf16> to vector<8x128xf32>
    %105 = arith.maximumf %85, %102 : vector<8x1xf32>
    %106 = arith.subf %85, %105 : vector<8x1xf32>
    %107 = math.exp %106 : vector<8x1xf32>
    %108 = arith.subf %102, %105 : vector<8x1xf32>
    %109 = math.exp %108 : vector<8x1xf32>
    %110 = arith.mulf %107, %91 : vector<8x1xf32>
    %111 = arith.addf %110, %109 : vector<8x1xf32>
    %112 = vector.broadcast %107 : vector<8x1xf32> to vector<8x128xf32>
    %113 = arith.mulf %112, %96 : vector<8x128xf32>
    %114 = vector.broadcast %109 : vector<8x1xf32> to vector<8x128xf32>
    %115 = arith.mulf %114, %104 : vector<8x128xf32>
    %116 = arith.addf %113, %115 : vector<8x128xf32>
    %117 = tpu.reciprocal %111 {approx = true} : vector<8x1xf32> -> vector<8x1xf32>
    %118 = vector.broadcast %117 : vector<8x1xf32> to vector<8x128xf32>
    %119 = arith.mulf %116, %118 : vector<8x128xf32>
    %120 = arith.truncf %119 : vector<8x128xf32> to vector<8x128xbf16>
    %c32_33 = arith.constant 32 : index
    %c0_34 = arith.constant 0 : index
    %121 = vector.load %arg14[%c32_33, %c0_34] : memref<64x128xbf16, #tpu.memory_space<vmem>>, vector<8x128xbf16>
    tpu.vector_store %arg14[%c32_33, %c0_34], %120 {strides = array<i32>} : memref<64x128xbf16, #tpu.memory_space<vmem>>, vector<8x128xbf16>,
    %122 = vector.extract_strided_slice %17 {offsets = [40, 0], sizes = [8, 1], strides = [1, 1]} : vector<64x1xf32> to vector<8x1xf32>
    %c40 = arith.constant 40 : index
    %c0_35 = arith.constant 0 : index
    %123 = vector.load %arg1[%c40, %c0_35] : memref<64x128xbf16, #tpu.memory_space<vmem>>, vector<8x128xbf16>
    %124 = arith.extf %123 : vector<8x128xbf16> to vector<8x128xf32>
    %125 = arith.maximumf %105, %122 : vector<8x1xf32>
    %126 = arith.subf %105, %125 : vector<8x1xf32>
    %127 = math.exp %126 : vector<8x1xf32>
    %128 = arith.subf %122, %125 : vector<8x1xf32>
    %129 = math.exp %128 : vector<8x1xf32>
    %130 = arith.mulf %127, %111 : vector<8x1xf32>
    %131 = arith.addf %130, %129 : vector<8x1xf32>
    %132 = vector.broadcast %127 : vector<8x1xf32> to vector<8x128xf32>
    %133 = arith.mulf %132, %116 : vector<8x128xf32>
    %134 = vector.broadcast %129 : vector<8x1xf32> to vector<8x128xf32>
    %135 = arith.mulf %134, %124 : vector<8x128xf32>
    %136 = arith.addf %133, %135 : vector<8x128xf32>
    %137 = tpu.reciprocal %131 {approx = true} : vector<8x1xf32> -> vector<8x1xf32>
    %138 = vector.broadcast %137 : vector<8x1xf32> to vector<8x128xf32>
    %139 = arith.mulf %136, %138 : vector<8x128xf32>
    %140 = arith.truncf %139 : vector<8x128xf32> to vector<8x128xbf16>
    %c40_36 = arith.constant 40 : index
    %c0_37 = arith.constant 0 : index
    %141 = vector.load %arg14[%c40_36, %c0_37] : memref<64x128xbf16, #tpu.memory_space<vmem>>, vector<8x128xbf16>
    tpu.vector_store %arg14[%c40_36, %c0_37], %140 {strides = array<i32>} : memref<64x128xbf16, #tpu.memory_space<vmem>>, vector<8x128xbf16>,
    %142 = vector.extract_strided_slice %17 {offsets = [48, 0], sizes = [8, 1], strides = [1, 1]} : vector<64x1xf32> to vector<8x1xf32>
    %c48 = arith.constant 48 : index
    %c0_38 = arith.constant 0 : index
    %143 = vector.load %arg1[%c48, %c0_38] : memref<64x128xbf16, #tpu.memory_space<vmem>>, vector<8x128xbf16>
    %144 = arith.extf %143 : vector<8x128xbf16> to vector<8x128xf32>
    %145 = arith.maximumf %125, %142 : vector<8x1xf32>
    %146 = arith.subf %125, %145 : vector<8x1xf32>
    %147 = math.exp %146 : vector<8x1xf32>
    %148 = arith.subf %142, %145 : vector<8x1xf32>
    %149 = math.exp %148 : vector<8x1xf32>
    %150 = arith.mulf %147, %131 : vector<8x1xf32>
    %151 = arith.addf %150, %149 : vector<8x1xf32>
    %152 = vector.broadcast %147 : vector<8x1xf32> to vector<8x128xf32>
    %153 = arith.mulf %152, %136 : vector<8x128xf32>
    %154 = vector.broadcast %149 : vector<8x1xf32> to vector<8x128xf32>
    %155 = arith.mulf %154, %144 : vector<8x128xf32>
    %156 = arith.addf %153, %155 : vector<8x128xf32>
    %157 = tpu.reciprocal %151 {approx = true} : vector<8x1xf32> -> vector<8x1xf32>
    %158 = vector.broadcast %157 : vector<8x1xf32> to vector<8x128xf32>
    %159 = arith.mulf %156, %158 : vector<8x128xf32>
    %160 = arith.truncf %159 : vector<8x128xf32> to vector<8x128xbf16>
    %c48_39 = arith.constant 48 : index
    %c0_40 = arith.constant 0 : index
    %161 = vector.load %arg14[%c48_39, %c0_40] : memref<64x128xbf16, #tpu.memory_space<vmem>>, vector<8x128xbf16>
    tpu.vector_store %arg14[%c48_39, %c0_40], %160 {strides = array<i32>} : memref<64x128xbf16, #tpu.memory_space<vmem>>, vector<8x128xbf16>,
    %162 = vector.extract_strided_slice %17 {offsets = [56, 0], sizes = [8, 1], strides = [1, 1]} : vector<64x1xf32> to vector<8x1xf32>
    %c56 = arith.constant 56 : index
    %c0_41 = arith.constant 0 : index
    %163 = vector.load %arg1[%c56, %c0_41] : memref<64x128xbf16, #tpu.memory_space<vmem>>, vector<8x128xbf16>
    %164 = arith.extf %163 : vector<8x128xbf16> to vector<8x128xf32>
    %165 = arith.maximumf %145, %162 : vector<8x1xf32>
    %166 = arith.subf %145, %165 : vector<8x1xf32>
    %167 = math.exp %166 : vector<8x1xf32>
    %168 = arith.subf %162, %165 : vector<8x1xf32>
    %169 = math.exp %168 : vector<8x1xf32>
    %170 = arith.mulf %167, %151 : vector<8x1xf32>
    %171 = arith.addf %170, %169 : vector<8x1xf32>
    %172 = vector.broadcast %167 : vector<8x1xf32> to vector<8x128xf32>
    %173 = arith.mulf %172, %156 : vector<8x128xf32>
    %174 = vector.broadcast %169 : vector<8x1xf32> to vector<8x128xf32>
    %175 = arith.mulf %174, %164 : vector<8x128xf32>
    %176 = arith.addf %173, %175 : vector<8x128xf32>
    %177 = tpu.reciprocal %171 {approx = true} : vector<8x1xf32> -> vector<8x1xf32>
    %178 = vector.broadcast %177 : vector<8x1xf32> to vector<8x128xf32>
    %179 = arith.mulf %176, %178 : vector<8x128xf32>
    %180 = arith.truncf %179 : vector<8x128xf32> to vector<8x128xbf16>
    %c56_42 = arith.constant 56 : index
    %c0_43 = arith.constant 0 : index
    %181 = vector.load %arg14[%c56_42, %c0_43] : memref<64x128xbf16, #tpu.memory_space<vmem>>, vector<8x128xbf16>
    tpu.vector_store %arg14[%c56_42, %c0_43], %180 {strides = array<i32>} : memref<64x128xbf16, #tpu.memory_space<vmem>>, vector<8x128xbf16>,
    %c0_44 = arith.constant 0 : index
    %c0_45 = arith.constant 0 : index
    %182 = vector.load %arg11[%c0_44, %c0_45] : memref<8x1xf32, #tpu.memory_space<vmem>>, vector<8x1xf32>
    tpu.vector_store %arg11[%c0_44, %c0_45], %165 {strides = array<i32>} : memref<8x1xf32, #tpu.memory_space<vmem>>, vector<8x1xf32>,
    %c0_46 = arith.constant 0 : index
    %c0_47 = arith.constant 0 : index
    %183 = vector.load %arg12[%c0_46, %c0_47] : memref<8x1xf32, #tpu.memory_space<vmem>>, vector<8x1xf32>
    tpu.vector_store %arg12[%c0_46, %c0_47], %171 {strides = array<i32>} : memref<8x1xf32, #tpu.memory_space<vmem>>, vector<8x1xf32>,
    %c0_48 = arith.constant 0 : index
    %c0_49 = arith.constant 0 : index
    %184 = vector.load %arg13[%c0_48, %c0_49] : memref<8x128xf32, #tpu.memory_space<vmem>>, vector<8x128xf32>
    tpu.vector_store %arg13[%c0_48, %c0_49], %176 {strides = array<i32>} : memref<8x128xf32, #tpu.memory_space<vmem>>, vector<8x128xf32>,
    %c0_50 = arith.constant 0 : index
    %c0_51 = arith.constant 0 : index
    %185 = vector.load %arg14[%c0_50, %c0_51] : memref<64x128xbf16, #tpu.memory_space<vmem>>, vector<64x128xbf16>
    %c0_52 = arith.constant 0 : index
    %c0_53 = arith.constant 0 : index
    %186 = vector.load %arg6[%c0_52, %c0_53] : memref<128x128xbf16, #tpu.memory_space<vmem>>, vector<128x128xbf16>
    %cst_54 = arith.constant dense<0.000000e+00> : vector<64x128xf32>
    %187 = tpu.matmul %185, %186, %cst_54 {dimension_numbers = #tpu.dot_dimension_numbers<[1], [0], [0], [1], [0, 0, 1, 1], [], []>} : vector<64x128xbf16>, vector<128x128xbf16>, vector<64x128xf32> -> vector<64x128xf32>
    %c0_55 = arith.constant 0 : index
    %c0_56 = arith.constant 0 : index
    %188 = vector.load %arg1[%c0_55, %c0_56] : memref<64x128xbf16, #tpu.memory_space<vmem>>, vector<64x128xbf16>
    %c0_57 = arith.constant 0 : index
    %c0_58 = arith.constant 0 : index
    %189 = vector.load %arg7[%c0_57, %c0_58] : memref<128x128xbf16, #tpu.memory_space<vmem>>, vector<128x128xbf16>
    %cst_59 = arith.constant dense<0.000000e+00> : vector<64x128xf32>
    %190 = tpu.matmul %188, %189, %cst_59 {dimension_numbers = #tpu.dot_dimension_numbers<[1], [0], [0], [1], [0, 0, 1, 1], [], []>} : vector<64x128xbf16>, vector<128x128xbf16>, vector<64x128xf32> -> vector<64x128xf32>
    %191 = arith.addf %187, %190 : vector<64x128xf32>
    %c0_60 = arith.constant 0 : index
    %c0_61 = arith.constant 0 : index
    %192 = vector.load %arg8[%c0_60, %c0_61] : memref<1x128xf32, #tpu.memory_space<vmem>>, vector<1x128xf32>
    %193 = vector.broadcast %192 : vector<1x128xf32> to vector<64x128xf32>
    %194 = arith.addf %191, %193 : vector<64x128xf32>
    %195 = math.tanh %194 : vector<64x128xf32>
    %196 = arith.truncf %195 : vector<64x128xf32> to vector<64x128xbf16>
    %c0_62 = arith.constant 0 : index
    %c0_63 = arith.constant 0 : index
    %197 = vector.load %arg9[%c0_62, %c0_63] : memref<64x128xbf16, #tpu.memory_space<vmem>>, vector<64x128xbf16>
    tpu.vector_store %arg9[%c0_62, %c0_63], %196 {strides = array<i32>} : memref<64x128xbf16, #tpu.memory_space<vmem>>, vector<64x128xbf16>,
    return
  }
  func.func @transform_0(%arg0: i32) -> (i32, i32) {
    %c0_i32 = arith.constant 0 : i32
    %c0_i32_0 = arith.constant 0 : i32
    return %arg0, %c0_i32 : i32, i32
  }
  func.func @transform_1(%arg0: i32) -> (i32, i32) {
    %c0_i32 = arith.constant 0 : i32
    %c0_i32_0 = arith.constant 0 : i32
    %c0_i32_1 = arith.constant 0 : i32
    return %c0_i32, %c0_i32_0 : i32, i32
  }
  func.func @transform_2(%arg0: i32) -> (i32, i32) {
    %c0_i32 = arith.constant 0 : i32
    %c0_i32_0 = arith.constant 0 : i32
    %c0_i32_1 = arith.constant 0 : i32
    return %c0_i32, %c0_i32_0 : i32, i32
  }
  func.func @transform_3(%arg0: i32) -> (i32, i32) {
    %c0_i32 = arith.constant 0 : i32
    %c0_i32_0 = arith.constant 0 : i32
    %c0_i32_1 = arith.constant 0 : i32
    return %c0_i32, %c0_i32_0 : i32, i32
  }
  func.func @transform_4(%arg0: i32) -> (i32, i32) {
    %c0_i32 = arith.constant 0 : i32
    %c0_i32_0 = arith.constant 0 : i32
    %c0_i32_1 = arith.constant 0 : i32
    return %c0_i32, %c0_i32_0 : i32, i32
  }
  func.func @transform_5(%arg0: i32) -> (i32, i32) {
    %c0_i32 = arith.constant 0 : i32
    %c0_i32_0 = arith.constant 0 : i32
    %c0_i32_1 = arith.constant 0 : i32
    return %c0_i32, %c0_i32_0 : i32, i32
  }
  func.func @transform_6(%arg0: i32) -> (i32, i32) {
    %c0_i32 = arith.constant 0 : i32
    %c0_i32_0 = arith.constant 0 : i32
    %c0_i32_1 = arith.constant 0 : i32
    return %c0_i32, %c0_i32_0 : i32, i32
  }
  func.func @transform_7(%arg0: i32) -> (i32, i32) {
    %c0_i32 = arith.constant 0 : i32
    %c0_i32_0 = arith.constant 0 : i32
    %c0_i32_1 = arith.constant 0 : i32
    return %c0_i32, %c0_i32_0 : i32, i32
  }
  func.func @transform_8(%arg0: i32) -> (i32, i32) {
    %c0_i32 = arith.constant 0 : i32
    %c0_i32_0 = arith.constant 0 : i32
    return %arg0, %c0_i32 : i32, i32
  }
  func.func @transform_9(%arg0: i32) -> (i32, i32) {
    %c0_i32 = arith.constant 0 : i32
    %c0_i32_0 = arith.constant 0 : i32
    return %arg0, %c0_i32 : i32, i32
  }
}

module attributes {stable_mosaic.version = 11 : i64} {
  func.func @decoder_kernel(%arg0: i32, %arg1: i32, %arg2: memref<64x128xbf16, #tpu.memory_space<vmem>>, %arg3: memref<128x512xbf16, #tpu.memory_space<vmem>>, %arg4: memref<1x512xf32, #tpu.memory_space<vmem>>, %arg5: memref<64x512xf32, #tpu.memory_space<vmem>>) attributes {dimension_semantics = [#tpu.dimension_semantics<parallel>, #tpu.dimension_semantics<parallel>], iteration_bounds = array<i64: 1, 1>, scalar_prefetch = 0 : i64, scratch_operands = 0 : i64, tpu.core_type = #tpu.core_type<tc>, window_params = [{transform_indices = @transform_0, window_bounds = array<i64: 64, 128>}, {transform_indices = @transform_1, window_bounds = array<i64: 128, 512>}, {transform_indices = @transform_2, window_bounds = array<i64: 1, 512>}, {transform_indices = @transform_3, window_bounds = array<i64: 64, 512>}]} {
    %c0 = arith.constant 0 : index
    %c0_0 = arith.constant 0 : index
    %0 = vector.load %arg2[%c0, %c0_0] : memref<64x128xbf16, #tpu.memory_space<vmem>>, vector<64x128xbf16>
    %c0_1 = arith.constant 0 : index
    %c0_2 = arith.constant 0 : index
    %1 = vector.load %arg3[%c0_1, %c0_2] : memref<128x512xbf16, #tpu.memory_space<vmem>>, vector<128x512xbf16>
    %cst = arith.constant dense<0.000000e+00> : vector<64x512xf32>
    %2 = tpu.matmul %0, %1, %cst {dimension_numbers = #tpu.dot_dimension_numbers<[1], [0], [0], [1], [0, 0, 1, 1], [], []>} : vector<64x128xbf16>, vector<128x512xbf16>, vector<64x512xf32> -> vector<64x512xf32>
    %c0_3 = arith.constant 0 : index
    %c0_4 = arith.constant 0 : index
    %3 = vector.load %arg4[%c0_3, %c0_4] : memref<1x512xf32, #tpu.memory_space<vmem>>, vector<1x512xf32>
    %4 = vector.broadcast %3 : vector<1x512xf32> to vector<64x512xf32>
    %5 = arith.addf %2, %4 : vector<64x512xf32>
    %c0_5 = arith.constant 0 : index
    %c0_6 = arith.constant 0 : index
    %6 = vector.load %arg5[%c0_5, %c0_6] : memref<64x512xf32, #tpu.memory_space<vmem>>, vector<64x512xf32>
    tpu.vector_store %arg5[%c0_5, %c0_6], %5 {strides = array<i32>} : memref<64x512xf32, #tpu.memory_space<vmem>>, vector<64x512xf32>,
    return
  }
  func.func @transform_0(%arg0: i32, %arg1: i32) -> (i32, i32) {
    %c0_i32 = arith.constant 0 : i32
    %c0_i32_0 = arith.constant 0 : i32
    return %arg1, %c0_i32 : i32, i32
  }
  func.func @transform_1(%arg0: i32, %arg1: i32) -> (i32, i32) {
    %c0_i32 = arith.constant 0 : i32
    %c0_i32_0 = arith.constant 0 : i32
    return %c0_i32, %arg0 : i32, i32
  }
  func.func @transform_2(%arg0: i32, %arg1: i32) -> (i32, i32) {
    %c0_i32 = arith.constant 0 : i32
    %c0_i32_0 = arith.constant 0 : i32
    return %c0_i32, %arg0 : i32, i32
  }
  func.func @transform_3(%arg0: i32, %arg1: i32) -> (i32, i32) {
    %c0_i32 = arith.constant 0 : i32
    return %arg1, %arg0 : i32, i32
  }
}

</mosaic_0001>

<llo_original>
// kernel: attention_lstm_forward.5
$region0: #{attention_lstm_forward.5}
  #allocation0 [shape = 'u32[]', space=smem, size = 0x4, offset = 0x4, fixed_abs, tag = 'smem constant byte address 0x4 - core index']
  #allocation1 [shape = 'u32[144,128]{1,0:T(1,128)}', space=vmem, size = 0x12000, scoped, tag = 'internal scratch']
  %s0 = inlined_call_operand.hbm [shape: bf16[64,128], index: 0, kind: input, shape index: {}]
  %s1 = inlined_call_operand.hbm [shape: bf16[128,512], index: 1, kind: input, shape index: {}]
  %s2 = inlined_call_operand.hbm [shape: f32[1,512], index: 2, kind: input, shape index: {}]
  %s3 = inlined_call_operand.hbm [shape: f32[64,512], index: 3, kind: output, shape index: {}]
  %s4 = sld [smem:[#allocation0]]
  $region34: #{attention_lstm_forward.5} parent=0
    _
  %s6 = ssub.s32 1, %s4
  %s7 = scalar_select 0, %s6, %s4
  $region1: #{attention_lstm_forward.5} parent=0
    #allocation2 [shape = 'u8[16384]{0}', space=vmem, size = 0x4000, scoped, tag = 'input window, operand 0, single buffered']
    #allocation3 [shape = 's32[1]{0}', space=sflag, size = 0x4, scoped, tag = 'scoped memory for attention_lstm_forward.5']
    #allocation4 [shape = 's32[1]{0}', space=sflag, size = 0x4, scoped, tag = 'scoped memory for attention_lstm_forward.5']
    #allocation5 [shape = 'u8[131072]{0}', space=vmem, size = 0x20000, scoped, tag = 'input window, operand 1, single buffered']
    #allocation6 [shape = 's32[1]{0}', space=sflag, size = 0x4, scoped, tag = 'scoped memory for attention_lstm_forward.5']
    #allocation7 [shape = 'u8[2048]{0}', space=vmem, size = 0x800, scoped, tag = 'input window, operand 2, single buffered']
    #allocation8 [shape = 'u8[131072]{0}', space=vmem, size = 0x20000, scoped, tag = 'output window, operand 0, single buffered']
    %8 = vsyncpa [#allocation3], 0
    %9 = vsyncpa [#allocation6], 0
    %10 = vsyncpa [#allocation4], 0
    // Predicated region
    $region2: #{attention_lstm_forward.5} parent=1 // pred_check
      _
    $region3: #{attention_lstm_forward.5} parent=1 // pred_check_branch
      %12 = sbr.rel (0) target = $region5
    $region4: #{attention_lstm_forward.5} parent=1 // pred_region
      %s14 = ssub.s32 512, 512
      %15 = vsyncadd [#allocation3], %s14
      %s16 = sshll.u32 [#allocation2], 4
      %s17 = int_to_ptr.vmem [resolvable:$true] %s16
      %22 = dma.hbm_to_vmem [thread:$0]  %s0, 512, %s17, [#allocation3], 64, 64, 4
    $region5: #{attention_lstm_forward.5} parent=1 // pred_fallthru
      _
    // Predicated region
    $region6: #{attention_lstm_forward.5} parent=1 // pred_check
      _
    $region7: #{attention_lstm_forward.5} parent=1 // pred_check_branch
      %24 = sbr.rel (0) target = $region9
    $region8: #{attention_lstm_forward.5} parent=1 // pred_region
      %s26 = ssub.s32 4096, 4096
      %27 = vsyncadd [#allocation6], %s26
      %s28 = sshll.u32 [#allocation5], 4
      %s29 = int_to_ptr.vmem [resolvable:$true] %s28
      %34 = dma.hbm_to_vmem [thread:$0]  %s1, 4096, %s29, [#allocation6], 256, 256, 16
    $region9: #{attention_lstm_forward.5} parent=1 // pred_fallthru
      _
    // Predicated region
    $region10: #{attention_lstm_forward.5} parent=1 // pred_check
      _
    $region11: #{attention_lstm_forward.5} parent=1 // pred_check_branch
      %36 = sbr.rel (0) target = $region13
    $region12: #{attention_lstm_forward.5} parent=1 // pred_region
      %s38 = ssub.s32 64, 64
      %39 = vsyncadd [#allocation6], %s38
      %s41 = sshll.u32 [#allocation7], 4
      %s42 = int_to_ptr.vmem [resolvable:$true] %s41
      %44 = dma.hbm_to_vmem [thread:$0]  %s2, 64, %s42, [#allocation6]
    $region13: #{attention_lstm_forward.5} parent=1 // pred_fallthru
      _
    // Predicated region
    $region14: #{attention_lstm_forward.5} parent=1 // pred_check
      _
    $region15: #{attention_lstm_forward.5} parent=1 // pred_check_branch
      %46 = sbr.rel (0) target = $region17
    $region16: #{attention_lstm_forward.5} parent=1 // pred_region
      %47 = dma.done [#allocation3], 512
    $region17: #{attention_lstm_forward.5} parent=1 // pred_fallthru
      _
    // Predicated region
    $region18: #{attention_lstm_forward.5} parent=1 // pred_check
      _
    $region19: #{attention_lstm_forward.5} parent=1 // pred_check_branch
      %49 = sbr.rel (0) target = $region21
    $region20: #{attention_lstm_forward.5} parent=1 // pred_region
      %50 = dma.done [#allocation6], 4096
    $region21: #{attention_lstm_forward.5} parent=1 // pred_fallthru
      _
    // Predicated region
    $region22: #{attention_lstm_forward.5} parent=1 // pred_check
      _
    $region23: #{attention_lstm_forward.5} parent=1 // pred_check_branch
      %52 = sbr.rel (0) target = $region25
    $region24: #{attention_lstm_forward.5} parent=1 // pred_region
      %53 = dma.done [#allocation6], 64
    $region25: #{attention_lstm_forward.5} parent=1 // pred_fallthru
      _
    %v55 = vld [vmem:[#allocation2] sm:$0xf]
    %v56 = vld [vmem:[#allocation2 + $0x4] sm:$0xf]
    %v57 = vld [vmem:[#allocation2 + $0x8] sm:$0xf]
    %v58 = vld [vmem:[#allocation2 + $0xc] sm:$0xf]
    %v59 = vld [vmem:[#allocation2 + $0x10] sm:$0xf]
    %v60 = vld [vmem:[#allocation2 + $0x14] sm:$0xf]
    %v61 = vld [vmem:[#allocation2 + $0x18] sm:$0xf]
    %v62 = vld [vmem:[#allocation2 + $0x1c] sm:$0xf]
    %v63 = vld [vmem:[#allocation5] sm:$0xff]
    %v64 = vld [vmem:[#allocation5 + $0x8] sm:$0xff]
    %v65 = vld [vmem:[#allocation5 + $0x10] sm:$0xff]
    %v66 = vld [vmem:[#allocation5 + $0x18] sm:$0xff]
    %v67 = vld [vmem:[#allocation5 + $0x20] sm:$0xff]
    %v68 = vld [vmem:[#allocation5 + $0x28] sm:$0xff]
    %v69 = vld [vmem:[#allocation5 + $0x30] sm:$0xff]
    %v70 = vld [vmem:[#allocation5 + $0x38] sm:$0xff]
    %v71 = vld [vmem:[#allocation5 + $0x40] sm:$0xff]
    %v72 = vld [vmem:[#allocation5 + $0x48] sm:$0xff]
    %v73 = vld [vmem:[#allocation5 + $0x50] sm:$0xff]
    %v74 = vld [vmem:[#allocation5 + $0x58] sm:$0xff]
    %v75 = vld [vmem:[#allocation5 + $0x60] sm:$0xff]
    %v76 = vld [vmem:[#allocation5 + $0x68] sm:$0xff]
    %v77 = vld [vmem:[#allocation5 + $0x70] sm:$0xff]
    %v78 = vld [vmem:[#allocation5 + $0x78] sm:$0xff]
    %v79 = vld [vmem:[#allocation5 + $0x80] sm:$0xff]
    %v80 = vld [vmem:[#allocation5 + $0x88] sm:$0xff]
    %v81 = vld [vmem:[#allocation5 + $0x90] sm:$0xff]
    %v82 = vld [vmem:[#allocation5 + $0x98] sm:$0xff]
    %v83 = vld [vmem:[#allocation5 + $0xa0] sm:$0xff]
    %v84 = vld [vmem:[#allocation5 + $0xa8] sm:$0xff]
    %v85 = vld [vmem:[#allocation5 + $0xb0] sm:$0xff]
    %v86 = vld [vmem:[#allocation5 + $0xb8] sm:$0xff]
    %v87 = vld [vmem:[#allocation5 + $0xc0] sm:$0xff]
    %v88 = vld [vmem:[#allocation5 + $0xc8] sm:$0xff]
    %v89 = vld [vmem:[#allocation5 + $0xd0] sm:$0xff]
    %v90 = vld [vmem:[#allocation5 + $0xd8] sm:$0xff]
    %v91 = vld [vmem:[#allocation5 + $0xe0] sm:$0xff]
    %v92 = vld [vmem:[#allocation5 + $0xe8] sm:$0xff]
    %v93 = vld [vmem:[#allocation5 + $0xf0] sm:$0xff]
    %v94 = vld [vmem:[#allocation5 + $0xf8] sm:$0xff]
    %v95 = vld [vmem:[#allocation7] sm:$0xf]
    %v97 = vlaneseq
    %v98 = vshrl.u32 %v97, 7
    %v99 = vsub.s32 0, %v98
    %v100 = vrot.slane %v95, %v99
    %v101 = vlaneseq
    %v102 = vshrl.u32 %v101, 7
    %v103 = vsub.s32 1, %v102
    %v104 = vrot.slane %v95, %v103
    %v105 = vlaneseq
    %v106 = vshrl.u32 %v105, 7
    %v107 = vsub.s32 2, %v106
    %v108 = vrot.slane %v95, %v107
    %v109 = vlaneseq
    %v110 = vshrl.u32 %v109, 7
    %v111 = vsub.s32 3, %v110
    %v112 = vrot.slane %v95, %v111
    %v125 = vunpack.c.l.b16 %v55
    %v126 = vunpack.c.l.b16 %v56
    %v127 = vunpack.c.l.b16 %v57
    %v128 = vunpack.c.l.b16 %v58
    %v129 = vunpack.c.l.b16 %v59
    %v130 = vunpack.c.l.b16 %v60
    %v131 = vunpack.c.l.b16 %v61
    %v132 = vunpack.c.l.b16 %v62
    %v133 = vpack.c.b16 %v126, %v125
    %v134 = vpack.c.b16 %v128, %v127
    %v135 = vpack.c.b16 %v130, %v129
    %v136 = vpack.c.b16 %v132, %v131
    %v173 = vunpack.c.l.b16 %v63
    %v174 = vunpack.c.h.b16 %v63
    %v175 = vunpack.c.l.b16 %v64
    %v176 = vunpack.c.h.b16 %v64
    %v177 = vunpack.c.l.b16 %v65
    %v178 = vunpack.c.h.b16 %v65
    %v179 = vunpack.c.l.b16 %v66
    %v180 = vunpack.c.h.b16 %v66
    %v181 = vunpack.c.l.b16 %v67
    %v182 = vunpack.c.h.b16 %v67
    %v183 = vunpack.c.l.b16 %v68
    %v184 = vunpack.c.h.b16 %v68
    %v185 = vunpack.c.l.b16 %v69
    %v186 = vunpack.c.h.b16 %v69
    %v187 = vunpack.c.l.b16 %v70
    %v188 = vunpack.c.h.b16 %v70
    %v189 = vunpack.c.l.b16 %v71
    %v190 = vunpack.c.h.b16 %v71
    %v191 = vunpack.c.l.b16 %v72
    %v192 = vunpack.c.h.b16 %v72
    %v193 = vunpack.c.l.b16 %v73
    %v194 = vunpack.c.h.b16 %v73
    %v195 = vunpack.c.l.b16 %v74
    %v196 = vunpack.c.h.b16 %v74
    %v197 = vunpack.c.l.b16 %v75
    %v198 = vunpack.c.h.b16 %v75
    %v199 = vunpack.c.l.b16 %v76
    %v200 = vunpack.c.h.b16 %v76
    %v201 = vunpack.c.l.b16 %v77
    %v202 = vunpack.c.h.b16 %v77
    %v203 = vunpack.c.l.b16 %v78
    %v204 = vunpack.c.h.b16 %v78
    %v205 = vunpack.c.l.b16 %v79
    %v206 = vunpack.c.h.b16 %v79
    %v207 = vunpack.c.l.b16 %v80
    %v208 = vunpack.c.h.b16 %v80
    %v209 = vunpack.c.l.b16 %v81
    %v210 = vunpack.c.h.b16 %v81
    %v211 = vunpack.c.l.b16 %v82
    %v212 = vunpack.c.h.b16 %v82
    %v213 = vunpack.c.l.b16 %v83
    %v214 = vunpack.c.h.b16 %v83
    %v215 = vunpack.c.l.b16 %v84
    %v216 = vunpack.c.h.b16 %v84
    %v217 = vunpack.c.l.b16 %v85
    %v218 = vunpack.c.h.b16 %v85
    %v219 = vunpack.c.l.b16 %v86
    %v220 = vunpack.c.h.b16 %v86
    %v221 = vunpack.c.l.b16 %v87
    %v222 = vunpack.c.h.b16 %v87
    %v223 = vunpack.c.l.b16 %v88
    %v224 = vunpack.c.h.b16 %v88
    %v225 = vunpack.c.l.b16 %v89
    %v226 = vunpack.c.h.b16 %v89
    %v227 = vunpack.c.l.b16 %v90
    %v228 = vunpack.c.h.b16 %v90
    %v229 = vunpack.c.l.b16 %v91
    %v230 = vunpack.c.h.b16 %v91
    %v231 = vunpack.c.l.b16 %v92
    %v232 = vunpack.c.h.b16 %v92
    %v233 = vunpack.c.l.b16 %v93
    %v234 = vunpack.c.h.b16 %v93
    %v235 = vunpack.c.l.b16 %v94
    %v236 = vunpack.c.h.b16 %v94
    %v237 = vpack.c.b16 %v177, %v173
    %v238 = vpack.c.b16 %v178, %v174
    %v239 = vpack.c.b16 %v179, %v175
    %v240 = vpack.c.b16 %v180, %v176
    %v241 = vpack.c.b16 %v185, %v181
    %v242 = vpack.c.b16 %v186, %v182
    %v243 = vpack.c.b16 %v187, %v183
    %v244 = vpack.c.b16 %v188, %v184
    %v245 = vpack.c.b16 %v193, %v189
    %v246 = vpack.c.b16 %v194, %v190
    %v247 = vpack.c.b16 %v195, %v191
    %v248 = vpack.c.b16 %v196, %v192
    %v249 = vpack.c.b16 %v201, %v197
    %v250 = vpack.c.b16 %v202, %v198
    %v251 = vpack.c.b16 %v203, %v199
    %v252 = vpack.c.b16 %v204, %v200
    %v253 = vpack.c.b16 %v209, %v205
    %v254 = vpack.c.b16 %v210, %v206
    %v255 = vpack.c.b16 %v211, %v207
    %v256 = vpack.c.b16 %v212, %v208
    %v257 = vpack.c.b16 %v217, %v213
    %v258 = vpack.c.b16 %v218, %v214
    %v259 = vpack.c.b16 %v219, %v215
    %v260 = vpack.c.b16 %v220, %v216
    %v261 = vpack.c.b16 %v225, %v221
    %v262 = vpack.c.b16 %v226, %v222
    %v263 = vpack.c.b16 %v227, %v223
    %v264 = vpack.c.b16 %v228, %v224
    %v265 = vpack.c.b16 %v233, %v229
    %v266 = vpack.c.b16 %v234, %v230
    %v267 = vpack.c.b16 %v235, %v231
    %v268 = vpack.c.b16 %v236, %v232
    %301 = vmatprep.subr.bf16.mxu0 %v238
    %302 = vmatpush1.bf16.msra.mxu0 %v237
    %303 = vmatprep.subr.bf16.mxu0 %v242
    %304 = vmatpush1.bf16.msra.mxu0 %v241
    %305 = vmatprep.subr.bf16.mxu0 %v246
    %306 = vmatpush1.bf16.msra.mxu0 %v245
    %307 = vmatprep.subr.bf16.mxu0 %v250
    %308 = vmatpush1.bf16.msra.mxu0 %v249
    %309 = vmatprep.subr.bf16.mxu0 %v254
    %310 = vmatpush1.bf16.msra.mxu0 %v253
    %311 = vmatprep.subr.bf16.mxu0 %v258
    %312 = vmatpush1.bf16.msra.mxu0 %v257
    %313 = vmatprep.subr.bf16.mxu0 %v262
    %314 = vmatpush1.bf16.msra.mxu0 %v261
    %315 = vmatprep.subr.bf16.mxu0 %v266
    %316 = vmatpush1.bf16.msra.mxu0 %v265
    %317 = vmatprep.subr.bf16.mxu0 0
    %318 = vmatpush1.bf16.msra.mxu0 0
    %319 = vmatprep.subr.bf16.mxu0 0
    %320 = vmatpush1.bf16.msra.mxu0 0
    %321 = vmatprep.subr.bf16.mxu0 0
    %322 = vmatpush1.bf16.msra.mxu0 0
    %323 = vmatprep.subr.bf16.mxu0 0
    %324 = vmatpush1.bf16.msra.mxu0 0
    %325 = vmatprep.subr.bf16.mxu0 0
    %326 = vmatpush1.bf16.msra.mxu0 0
    %327 = vmatprep.subr.bf16.mxu0 0
    %328 = vmatpush1.bf16.msra.mxu0 0
    %329 = vmatprep.subr.bf16.mxu0 0
    %330 = vmatpush1.bf16.msra.mxu0 0
    %331 = vmatprep.subr.bf16.mxu0 0
    %332 = vmatpush1.bf16.msra.mxu0 0
    %333 = vmatprep.mubr.bf16.mxu0 0
    %334 = vmatmul.mubr.bf16.gmra.mrb[0].mxu0 %v133
    %v335 = vpop.f32.mrb[0].mxu0
    %v336 = vadd.f32 %v100, %v335
    %v337 = vpop.f32.mrb[0].mxu0
    %v338 = vadd.f32 %v104, %v337
    %v339 = vpop.f32.mrb[0].mxu0
    %v340 = vadd.f32 %v100, %v339
    %v341 = vpop.f32.mrb[0].mxu0
    %v342 = vadd.f32 %v104, %v341
    %343 = vmatprep.mubr.bf16.mxu0 0
    %344 = vmatmul.mubr.bf16.gmra.mrb[0].mxu0 %v134
    %v345 = vpop.f32.mrb[0].mxu0
    %v346 = vadd.f32 %v100, %v345
    %v347 = vpop.f32.mrb[0].mxu0
    %v348 = vadd.f32 %v104, %v347
    %v349 = vpop.f32.mrb[0].mxu0
    %v350 = vadd.f32 %v100, %v349
    %v351 = vpop.f32.mrb[0].mxu0
    %v352 = vadd.f32 %v104, %v351
    %353 = vmatprep.mubr.bf16.mxu0 0
    %354 = vmatmul.mubr.bf16.gmra.mrb[0].mxu0 %v135
    %v355 = vpop.f32.mrb[0].mxu0
    %v356 = vadd.f32 %v100, %v355
    %v357 = vpop.f32.mrb[0].mxu0
    %v358 = vadd.f32 %v104, %v357
    %v359 = vpop.f32.mrb[0].mxu0
    %v360 = vadd.f32 %v100, %v359
    %v361 = vpop.f32.mrb[0].mxu0
    %v362 = vadd.f32 %v104, %v361
    %363 = vmatprep.mubr.bf16.mxu0 0
    %364 = vmatmul.mubr.bf16.gmra.mrb[0].mxu0 %v136
    %v365 = vpop.f32.mrb[0].mxu0
    %v366 = vadd.f32 %v100, %v365
    %v367 = vpop.f32.mrb[0].mxu0
    %v368 = vadd.f32 %v104, %v367
    %v369 = vpop.f32.mrb[0].mxu0
    %v370 = vadd.f32 %v100, %v369
    %v371 = vpop.f32.mrb[0].mxu0
    %v372 = vadd.f32 %v104, %v371
    %373 = vdwg.mxu0
    %374 = vmatprep.subr.bf16.mxu0 %v240
    %375 = vmatpush1.bf16.msra.mxu0 %v239
    %376 = vmatprep.subr.bf16.mxu0 %v244
    %377 = vmatpush1.bf16.msra.mxu0 %v243
    %378 = vmatprep.subr.bf16.mxu0 %v248
    %379 = vmatpush1.bf16.msra.mxu0 %v247
    %380 = vmatprep.subr.bf16.mxu0 %v252
    %381 = vmatpush1.bf16.msra.mxu0 %v251
    %382 = vmatprep.subr.bf16.mxu0 %v256
    %383 = vmatpush1.bf16.msra.mxu0 %v255
    %384 = vmatprep.subr.bf16.mxu0 %v260
    %385 = vmatpush1.bf16.msra.mxu0 %v259
    %386 = vmatprep.subr.bf16.mxu0 %v264
    %387 = vmatpush1.bf16.msra.mxu0 %v263
    %388 = vmatprep.subr.bf16.mxu0 %v268
    %389 = vmatpush1.bf16.msra.mxu0 %v267
    %390 = vmatprep.subr.bf16.mxu0 0
    %391 = vmatpush1.bf16.msra.mxu0 0
    %392 = vmatprep.subr.bf16.mxu0 0
    %393 = vmatpush1.bf16.msra.mxu0 0
    %394 = vmatprep.subr.bf16.mxu0 0
    %395 = vmatpush1.bf16.msra.mxu0 0
    %396 = vmatprep.subr.bf16.mxu0 0
    %397 = vmatpush1.bf16.msra.mxu0 0
    %398 = vmatprep.subr.bf16.mxu0 0
    %399 = vmatpush1.bf16.msra.mxu0 0
    %400 = vmatprep.subr.bf16.mxu0 0
    %401 = vmatpush1.bf16.msra.mxu0 0
    %402 = vmatprep.subr.bf16.mxu0 0
    %403 = vmatpush1.bf16.msra.mxu0 0
    %404 = vmatprep.subr.bf16.mxu0 0
    %405 = vmatpush1.bf16.msra.mxu0 0
    %406 = vmatprep.mubr.bf16.mxu0 0
    %407 = vmatmul.mubr.bf16.gmra.mrb[0].mxu0 %v133
    %v408 = vpop.f32.mrb[0].mxu0
    %v409 = vadd.f32 %v108, %v408
    %v410 = vpop.f32.mrb[0].mxu0
    %v411 = vadd.f32 %v112, %v410
    %v412 = vpop.f32.mrb[0].mxu0
    %v413 = vadd.f32 %v108, %v412
    %v414 = vpop.f32.mrb[0].mxu0
    %v415 = vadd.f32 %v112, %v414
    %416 = vmatprep.mubr.bf16.mxu0 0
    %417 = vmatmul.mubr.bf16.gmra.mrb[0].mxu0 %v134
    %v418 = vpop.f32.mrb[0].mxu0
    %v419 = vadd.f32 %v108, %v418
    %v420 = vpop.f32.mrb[0].mxu0
    %v421 = vadd.f32 %v112, %v420
    %v422 = vpop.f32.mrb[0].mxu0
    %v423 = vadd.f32 %v108, %v422
    %v424 = vpop.f32.mrb[0].mxu0
    %v425 = vadd.f32 %v112, %v424
    %426 = vmatprep.mubr.bf16.mxu0 0
    %427 = vmatmul.mubr.bf16.gmra.mrb[0].mxu0 %v135
    %v428 = vpop.f32.mrb[0].mxu0
    %v429 = vadd.f32 %v108, %v428
    %v430 = vpop.f32.mrb[0].mxu0
    %v431 = vadd.f32 %v112, %v430
    %v432 = vpop.f32.mrb[0].mxu0
    %v433 = vadd.f32 %v108, %v432
    %v434 = vpop.f32.mrb[0].mxu0
    %v435 = vadd.f32 %v112, %v434
    %436 = vmatprep.mubr.bf16.mxu0 0
    %437 = vmatmul.mubr.bf16.gmra.mrb[0].mxu0 %v136
    %v438 = vpop.f32.mrb[0].mxu0
    %v439 = vadd.f32 %v108, %v438
    %v440 = vpop.f32.mrb[0].mxu0
    %v441 = vadd.f32 %v112, %v440
    %v442 = vpop.f32.mrb[0].mxu0
    %v443 = vadd.f32 %v108, %v442
    %v444 = vpop.f32.mrb[0].mxu0
    %v445 = vadd.f32 %v112, %v444
    %446 = vdwg.mxu0
    %447 = vst [vmem:[#allocation8] sm:$0xff] %v336
    %448 = vst [vmem:[#allocation8 + $0x8] sm:$0xff] %v338
    %449 = vst [vmem:[#allocation8 + $0x10] sm:$0xff] %v409
    %450 = vst [vmem:[#allocation8 + $0x18] sm:$0xff] %v411
    %451 = vst [vmem:[#allocation8 + $0x20] sm:$0xff] %v340
    %452 = vst [vmem:[#allocation8 + $0x28] sm:$0xff] %v342
    %453 = vst [vmem:[#allocation8 + $0x30] sm:$0xff] %v413
    %454 = vst [vmem:[#allocation8 + $0x38] sm:$0xff] %v415
    %455 = vst [vmem:[#allocation8 + $0x40] sm:$0xff] %v346
    %456 = vst [vmem:[#allocation8 + $0x48] sm:$0xff] %v348
    %457 = vst [vmem:[#allocation8 + $0x50] sm:$0xff] %v419
    %458 = vst [vmem:[#allocation8 + $0x58] sm:$0xff] %v421
    %459 = vst [vmem:[#allocation8 + $0x60] sm:$0xff] %v350
    %460 = vst [vmem:[#allocation8 + $0x68] sm:$0xff] %v352
    %461 = vst [vmem:[#allocation8 + $0x70] sm:$0xff] %v423
    %462 = vst [vmem:[#allocation8 + $0x78] sm:$0xff] %v425
    %463 = vst [vmem:[#allocation8 + $0x80] sm:$0xff] %v356
    %464 = vst [vmem:[#allocation8 + $0x88] sm:$0xff] %v358
    %465 = vst [vmem:[#allocation8 + $0x90] sm:$0xff] %v429
    %466 = vst [vmem:[#allocation8 + $0x98] sm:$0xff] %v431
    %467 = vst [vmem:[#allocation8 + $0xa0] sm:$0xff] %v360
    %468 = vst [vmem:[#allocation8 + $0xa8] sm:$0xff] %v362
    %469 = vst [vmem:[#allocation8 + $0xb0] sm:$0xff] %v433
    %470 = vst [vmem:[#allocation8 + $0xb8] sm:$0xff] %v435
    %471 = vst [vmem:[#allocation8 + $0xc0] sm:$0xff] %v366
    %472 = vst [vmem:[#allocation8 + $0xc8] sm:$0xff] %v368
    %473 = vst [vmem:[#allocation8 + $0xd0] sm:$0xff] %v439
    %474 = vst [vmem:[#allocation8 + $0xd8] sm:$0xff] %v441
    %475 = vst [vmem:[#allocation8 + $0xe0] sm:$0xff] %v370
    %476 = vst [vmem:[#allocation8 + $0xe8] sm:$0xff] %v372
    %477 = vst [vmem:[#allocation8 + $0xf0] sm:$0xff] %v443
    %478 = vst [vmem:[#allocation8 + $0xf8] sm:$0xff] %v445
    // Predicated region
    $region26: #{attention_lstm_forward.5} parent=1 // pred_check
      _
    $region27: #{attention_lstm_forward.5} parent=1 // pred_check_branch
      %480 = sbr.rel (0) target = $region29
    $region28: #{attention_lstm_forward.5} parent=1 // pred_region
      %s482 = ssub.s32 4096, 4096
      %483 = vsyncadd [#allocation4], %s482
      %s484 = sshll.u32 [#allocation8], 4
      %s485 = int_to_ptr.vmem [resolvable:$true] %s484
      %490 = dma.vmem_to_hbm [thread:$0]  %s485, 4096, %s3, [#allocation4], 512, 512, 32
    $region29: #{attention_lstm_forward.5} parent=1 // pred_fallthru
      _
    // Predicated region
    $region30: #{attention_lstm_forward.5} parent=1 // pred_check
      _
    $region31: #{attention_lstm_forward.5} parent=1 // pred_check_branch
      %492 = sbr.rel (0) target = $region33
    $region32: #{attention_lstm_forward.5} parent=1 // pred_region
      %493 = dma.done [#allocation4], 4096
    $region33: #{attention_lstm_forward.5} parent=1 // pred_fallthru
      _
    %494 = vsyncpa [#allocation3], 1
    %495 = vsyncpa [#allocation6], 1
    %496 = vsyncpa [#allocation4], 1

// kernel: attention_lstm_forward.4
$region0: #{attention_lstm_forward.4}
  #allocation0 [shape = 'u32[]', space=smem, size = 0x4, offset = 0x4, fixed_abs, tag = 'smem constant byte address 0x4 - core index']
  #allocation1 [shape = 'u32[144,128]{1,0:T(1,128)}', space=vmem, size = 0x12000, scoped, tag = 'internal scratch']
  #allocation2 [shape = 'f32[8,1]{1,0:T(8,128)}', space=vmem, size = 0x1000, scoped, tag = 'scratch operand']
  #allocation3 [shape = 'f32[8,1]{1,0:T(8,128)}', space=vmem, size = 0x1000, scoped, tag = 'scratch operand']
  #allocation4 [shape = 'f32[8,128]{1,0:T(8,128)}', space=vmem, size = 0x1000, scoped, tag = 'scratch operand']
  #allocation5 [shape = 'bf16[64,128]{1,0:T(16,128)(2,1)}', space=vmem, size = 0x4000, scoped, tag = 'scratch operand']
  #allocation6 [shape = 'f32[1,1]{1,0:T(1,128)S(1)}', space=vmem, size = 0x200, scoped, tag = 'scoped memory for attention_lstm_forward.4']
  %s0 = inlined_call_operand.hbm [shape: bf16[64,128], index: 0, kind: input, shape index: {}]
  %s1 = inlined_call_operand.hbm [shape: bf16[128,128], index: 1, kind: input, shape index: {}]
  %s2 = inlined_call_operand.hbm [shape: f32[1,128], index: 2, kind: input, shape index: {}]
  %s3 = inlined_call_operand.hbm [shape: f32[1,128], index: 3, kind: input, shape index: {}]
  %s4 = inlined_call_operand.<no memory space> [shape: f32[1,1], index: 4, kind: input, shape index: {}]
  %s5 = inlined_call_operand.hbm [shape: bf16[128,128], index: 5, kind: input, shape index: {}]
  %s6 = inlined_call_operand.hbm [shape: bf16[128,128], index: 6, kind: input, shape index: {}]
  %s7 = inlined_call_operand.hbm [shape: f32[1,128], index: 7, kind: input, shape index: {}]
  %s8 = inlined_call_operand.hbm [shape: bf16[64,128], index: 8, kind: output, shape index: {0}]
  %s9 = inlined_call_operand.hbm [shape: f32[64,1], index: 9, kind: output, shape index: {1}]
  %10 = xla_tuple %s8, %s9
  %s11 = sld [smem:[#allocation0]]
  $region82: #{attention_lstm_forward.4} parent=0
    _
  %s13 = ssub.s32 1, %s11
  %s14 = scalar_select 0, %s13, %s11
  %v15 = vstv %s4
  %16 = vst [vmem:[#allocation6] sm:$0x1] %v15
  $region1: #{attention_lstm_forward.4} parent=0
    #allocation7 [shape = 'u8[16384]{0}', space=vmem, size = 0x4000, scoped, tag = 'input window, operand 0, single buffered']
    #allocation8 [shape = 's32[1]{0}', space=sflag, size = 0x4, scoped, tag = 'scoped memory for attention_lstm_forward.4']
    #allocation9 [shape = 's32[1]{0}', space=sflag, size = 0x4, scoped, tag = 'scoped memory for attention_lstm_forward.4']
    #allocation10 [shape = 'u8[32768]{0}', space=vmem, size = 0x8000, scoped, tag = 'input window, operand 1, single buffered']
    #allocation11 [shape = 's32[1]{0}', space=sflag, size = 0x4, scoped, tag = 'scoped memory for attention_lstm_forward.4']
    #allocation12 [shape = 'u8[512]{0}', space=vmem, size = 0x400, scoped, tag = 'input window, operand 2, single buffered']
    #allocation13 [shape = 'u8[512]{0}', space=vmem, size = 0x400, scoped, tag = 'input window, operand 3, single buffered']
    #allocation14 [shape = 's32[1]{0}', space=sflag, size = 0x4, scoped, tag = 'scoped memory for attention_lstm_forward.4']
    #allocation15 [shape = 'u8[32768]{0}', space=vmem, size = 0x8000, scoped, tag = 'input window, operand 5, single buffered']
    #allocation16 [shape = 'u8[32768]{0}', space=vmem, size = 0x8000, scoped, tag = 'input window, operand 6, single buffered']
    #allocation17 [shape = 's32[1]{0}', space=sflag, size = 0x4, scoped, tag = 'scoped memory for attention_lstm_forward.4']
    #allocation18 [shape = 'u8[512]{0}', space=vmem, size = 0x400, scoped, tag = 'input window, operand 7, single buffered']
    #allocation19 [shape = 'u8[16384]{0}', space=vmem, size = 0x4000, scoped, tag = 'output window, operand 0, single buffered']
    #allocation20 [shape = 'u8[32768]{0}', space=vmem, size = 0x8000, scoped, tag = 'output window, operand 1, single buffered']
    #allocation21 [shape = 's32[1]{0}', space=sflag, size = 0x4, scoped, tag = 'scoped memory for attention_lstm_forward.4']
    %17 = vsyncpa [#allocation8], 0
    %18 = vsyncpa [#allocation11], 0
    %19 = vsyncpa [#allocation14], 0
    %20 = vsyncpa [#allocation17], 0
    %21 = vsyncpa [#allocation9], 0
    %22 = vsyncpa [#allocation21], 0
    // Predicated region
    $region2: #{attention_lstm_forward.4} parent=1 // pred_check
      _
    $region3: #{attention_lstm_forward.4} parent=1 // pred_check_branch
      %24 = sbr.rel (0) target = $region5
    $region4: #{attention_lstm_forward.4} parent=1 // pred_region
      %s26 = ssub.s32 512, 512
      %27 = vsyncadd [#allocation8], %s26
      %s28 = sshll.u32 [#allocation7], 4
      %s29 = int_to_ptr.vmem [resolvable:$true] %s28
      %34 = dma.hbm_to_vmem [thread:$0]  %s0, 512, %s29, [#allocation8], 64, 64, 4
    $region5: #{attention_lstm_forward.4} parent=1 // pred_fallthru
      _
    // Predicated region
    $region6: #{attention_lstm_forward.4} parent=1 // pred_check
      _
    $region7: #{attention_lstm_forward.4} parent=1 // pred_check_branch
      %36 = sbr.rel (0) target = $region9
    $region8: #{attention_lstm_forward.4} parent=1 // pred_region
      %s38 = ssub.s32 1024, 1024
      %39 = vsyncadd [#allocation11], %s38
      %s40 = sshll.u32 [#allocation10], 4
      %s41 = int_to_ptr.vmem [resolvable:$true] %s40
      %46 = dma.hbm_to_vmem [thread:$0]  %s1, 1024, %s41, [#allocation11], 64, 64, 4
    $region9: #{attention_lstm_forward.4} parent=1 // pred_fallthru
      _
    // Predicated region
    $region10: #{attention_lstm_forward.4} parent=1 // pred_check
      _
    $region11: #{attention_lstm_forward.4} parent=1 // pred_check_branch
      %48 = sbr.rel (0) target = $region13
    $region12: #{attention_lstm_forward.4} parent=1 // pred_region
      %s50 = ssub.s32 16, 16
      %51 = vsyncadd [#allocation11], %s50
      %s53 = sshll.u32 [#allocation12], 4
      %s54 = int_to_ptr.vmem [resolvable:$true] %s53
      %56 = dma.hbm_to_vmem [thread:$0]  %s2, 16, %s54, [#allocation11]
    $region13: #{attention_lstm_forward.4} parent=1 // pred_fallthru
      _
    // Predicated region
    $region14: #{attention_lstm_forward.4} parent=1 // pred_check
      _
    $region15: #{attention_lstm_forward.4} parent=1 // pred_check_branch
      %58 = sbr.rel (0) target = $region17
    $region16: #{attention_lstm_forward.4} parent=1 // pred_region
      %s60 = ssub.s32 16, 16
      %61 = vsyncadd [#allocation14], %s60
      %s63 = sshll.u32 [#allocation13], 4
      %s64 = int_to_ptr.vmem [resolvable:$true] %s63
      %66 = dma.hbm_to_vmem [thread:$0]  %s3, 16, %s64, [#allocation14]
    $region17: #{attention_lstm_forward.4} parent=1 // pred_fallthru
      _
    // Predicated region
    $region18: #{attention_lstm_forward.4} parent=1 // pred_check
      _
    $region19: #{attention_lstm_forward.4} parent=1 // pred_check_branch
      %68 = sbr.rel (0) target = $region21
    $region20: #{attention_lstm_forward.4} parent=1 // pred_region
      _
    $region21: #{attention_lstm_forward.4} parent=1 // pred_fallthru
      _
    // Predicated region
    $region22: #{attention_lstm_forward.4} parent=1 // pred_check
      _
    $region23: #{attention_lstm_forward.4} parent=1 // pred_check_branch
      %70 = sbr.rel (0) target = $region25
    $region24: #{attention_lstm_forward.4} parent=1 // pred_region
      %s72 = ssub.s32 1024, 1024
      %73 = vsyncadd [#allocation14], %s72
      %s74 = sshll.u32 [#allocation15], 4
      %s75 = int_to_ptr.vmem [resolvable:$true] %s74
      %80 = dma.hbm_to_vmem [thread:$0]  %s5, 1024, %s75, [#allocation14], 64, 64, 4
    $region25: #{attention_lstm_forward.4} parent=1 // pred_fallthru
      _
    // Predicated region
    $region26: #{attention_lstm_forward.4} parent=1 // pred_check
      _
    $region27: #{attention_lstm_forward.4} parent=1 // pred_check_branch
      %82 = sbr.rel (0) target = $region29
    $region28: #{attention_lstm_forward.4} parent=1 // pred_region
      %s84 = ssub.s32 1024, 1024
      %85 = vsyncadd [#allocation17], %s84
      %s86 = sshll.u32 [#allocation16], 4
      %s87 = int_to_ptr.vmem [resolvable:$true] %s86
      %92 = dma.hbm_to_vmem [thread:$0]  %s6, 1024, %s87, [#allocation17], 64, 64, 4
    $region29: #{attention_lstm_forward.4} parent=1 // pred_fallthru
      _
    // Predicated region
    $region30: #{attention_lstm_forward.4} parent=1 // pred_check
      _
    $region31: #{attention_lstm_forward.4} parent=1 // pred_check_branch
      %94 = sbr.rel (0) target = $region33
    $region32: #{attention_lstm_forward.4} parent=1 // pred_region
      %s96 = ssub.s32 16, 16
      %97 = vsyncadd [#allocation17], %s96
      %s99 = sshll.u32 [#allocation18], 4
      %s100 = int_to_ptr.vmem [resolvable:$true] %s99
      %102 = dma.hbm_to_vmem [thread:$0]  %s7, 16, %s100, [#allocation17]
    $region33: #{attention_lstm_forward.4} parent=1 // pred_fallthru
      _
    // Predicated region
    $region34: #{attention_lstm_forward.4} parent=1 // pred_check
      _
    $region35: #{attention_lstm_forward.4} parent=1 // pred_check_branch
      %104 = sbr.rel (0) target = $region37
    $region36: #{attention_lstm_forward.4} parent=1 // pred_region
      %105 = dma.done [#allocation8], 512
    $region37: #{attention_lstm_forward.4} parent=1 // pred_fallthru
      _
    // Predicated region
    $region38: #{attention_lstm_forward.4} parent=1 // pred_check
      _
    $region39: #{attention_lstm_forward.4} parent=1 // pred_check_branch
      %107 = sbr.rel (0) target = $region41
    $region40: #{attention_lstm_forward.4} parent=1 // pred_region
      %108 = dma.done [#allocation11], 1024
    $region41: #{attention_lstm_forward.4} parent=1 // pred_fallthru
      _
    // Predicated region
    $region42: #{attention_lstm_forward.4} parent=1 // pred_check
      _
    $region43: #{attention_lstm_forward.4} parent=1 // pred_check_branch
      %110 = sbr.rel (0) target = $region45
    $region44: #{attention_lstm_forward.4} parent=1 // pred_region
      %111 = dma.done [#allocation11], 16
    $region45: #{attention_lstm_forward.4} parent=1 // pred_fallthru
      _
    // Predicated region
    $region46: #{attention_lstm_forward.4} parent=1 // pred_check
      _
    $region47: #{attention_lstm_forward.4} parent=1 // pred_check_branch
      %113 = sbr.rel (0) target = $region49
    $region48: #{attention_lstm_forward.4} parent=1 // pred_region
      %114 = dma.done [#allocation14], 16
    $region49: #{attention_lstm_forward.4} parent=1 // pred_fallthru
      _
    // Predicated region
    $region50: #{attention_lstm_forward.4} parent=1 // pred_check
      _
    $region51: #{attention_lstm_forward.4} parent=1 // pred_check_branch
      %116 = sbr.rel (0) target = $region53
    $region52: #{attention_lstm_forward.4} parent=1 // pred_region
      %117 = dma.done [#allocation14], 1024
    $region53: #{attention_lstm_forward.4} parent=1 // pred_fallthru
      _
    // Predicated region
    $region54: #{attention_lstm_forward.4} parent=1 // pred_check
      _
    $region55: #{attention_lstm_forward.4} parent=1 // pred_check_branch
      %119 = sbr.rel (0) target = $region57
    $region56: #{attention_lstm_forward.4} parent=1 // pred_region
      %120 = dma.done [#allocation17], 1024
    $region57: #{attention_lstm_forward.4} parent=1 // pred_fallthru
      _
    // Predicated region
    $region58: #{attention_lstm_forward.4} parent=1 // pred_check
      _
    $region59: #{attention_lstm_forward.4} parent=1 // pred_check_branch
      %122 = sbr.rel (0) target = $region61
    $region60: #{attention_lstm_forward.4} parent=1 // pred_region
      %123 = dma.done [#allocation17], 16
    $region61: #{attention_lstm_forward.4} parent=1 // pred_fallthru
      _
    %p125 = scmp.eq.s32.totalorder 0, 0
    // Predicated region
    $region62: #{attention_lstm_forward.4} parent=1 // pred_check
      %p126 = pneg %p125
    $region63: #{attention_lstm_forward.4} parent=1 // pred_check_branch
      %128 = sbr.rel (%p126) target = $region65
    $region64: #{attention_lstm_forward.4} parent=1 // pred_region
      %vm129 = vcmask 7168
      %130 = vst.msk [vmem:[#allocation2] sm:$0xff] %vm129, -inf
      %131 = vst.msk [vmem:[#allocation3] sm:$0xff] %vm129, 0.0
      %132 = vst [vmem:[#allocation4] sm:$0xff] 0.0
    $region65: #{attention_lstm_forward.4} parent=1 // pred_fallthru
      _
    %v133 = vld [vmem:[#allocation7] sm:$0xf]
    %v134 = vld [vmem:[#allocation7 + $0x4] sm:$0xf]
    %v135 = vld [vmem:[#allocation7 + $0x8] sm:$0xf]
    %v136 = vld [vmem:[#allocation7 + $0xc] sm:$0xf]
    %v137 = vld [vmem:[#allocation7 + $0x10] sm:$0xf]
    %v138 = vld [vmem:[#allocation7 + $0x14] sm:$0xf]
    %v139 = vld [vmem:[#allocation7 + $0x18] sm:$0xf]
    %v140 = vld [vmem:[#allocation7 + $0x1c] sm:$0xf]
    %v141 = vld [vmem:[#allocation10] sm:$0xf]
    %v142 = vld [vmem:[#allocation10 + $0x4] sm:$0xf]
    %v143 = vld [vmem:[#allocation10 + $0x8] sm:$0xf]
    %v144 = vld [vmem:[#allocation10 + $0xc] sm:$0xf]
    %v145 = vld [vmem:[#allocation10 + $0x10] sm:$0xf]
    %v146 = vld [vmem:[#allocation10 + $0x14] sm:$0xf]
    %v147 = vld [vmem:[#allocation10 + $0x18] sm:$0xf]
    %v148 = vld [vmem:[#allocation10 + $0x1c] sm:$0xf]
    %v149 = vld [vmem:[#allocation10 + $0x20] sm:$0xf]
    %v150 = vld [vmem:[#allocation10 + $0x24] sm:$0xf]
    %v151 = vld [vmem:[#allocation10 + $0x28] sm:$0xf]
    %v152 = vld [vmem:[#allocation10 + $0x2c] sm:$0xf]
    %v153 = vld [vmem:[#allocation10 + $0x30] sm:$0xf]
    %v154 = vld [vmem:[#allocation10 + $0x34] sm:$0xf]
    %v155 = vld [vmem:[#allocation10 + $0x38] sm:$0xf]
    %v156 = vld [vmem:[#allocation10 + $0x3c] sm:$0xf]
    %v157 = vld [vmem:[#allocation12] sm:$0x1]
    %v159 = vlaneseq
    %v160 = vshrl.u32 %v159, 7
    %v161 = vsub.s32 0, %v160
    %v162 = vrot.slane %v157, %v161
    %v172 = vunpack.c.l.b16 %v133
    %v173 = vunpack.c.l.b16 %v134
    %v174 = vunpack.c.l.b16 %v135
    %v175 = vunpack.c.l.b16 %v136
    %v176 = vunpack.c.l.b16 %v137
    %v177 = vunpack.c.l.b16 %v138
    %v178 = vunpack.c.l.b16 %v139
    %v179 = vunpack.c.l.b16 %v140
    %v180 = vpack.c.b16 %v173, %v172
    %v181 = vpack.c.b16 %v175, %v174
    %v182 = vpack.c.b16 %v177, %v176
    %v183 = vpack.c.b16 %v179, %v178
    %v204 = vunpack.c.l.b16 %v141
    %v205 = vunpack.c.l.b16 %v142
    %v206 = vunpack.c.l.b16 %v143
    %v207 = vunpack.c.l.b16 %v144
    %v208 = vunpack.c.l.b16 %v145
    %v209 = vunpack.c.l.b16 %v146
    %v210 = vunpack.c.l.b16 %v147
    %v211 = vunpack.c.l.b16 %v148
    %v212 = vunpack.c.l.b16 %v149
    %v213 = vunpack.c.l.b16 %v150
    %v214 = vunpack.c.l.b16 %v151
    %v215 = vunpack.c.l.b16 %v152
    %v216 = vunpack.c.l.b16 %v153
    %v217 = vunpack.c.l.b16 %v154
    %v218 = vunpack.c.l.b16 %v155
    %v219 = vunpack.c.l.b16 %v156
    %v220 = vpack.c.b16 %v205, %v204
    %v221 = vpack.c.b16 %v207, %v206
    %v222 = vpack.c.b16 %v209, %v208
    %v223 = vpack.c.b16 %v211, %v210
    %v224 = vpack.c.b16 %v213, %v212
    %v225 = vpack.c.b16 %v215, %v214
    %v226 = vpack.c.b16 %v217, %v216
    %v227 = vpack.c.b16 %v219, %v218
    %236 = vmatprep.subr.bf16.mxu0 0
    %237 = vmatpush1.bf16.msra.mxu0 %v220
    %238 = vmatprep.subr.bf16.mxu0 0
    %239 = vmatpush1.bf16.msra.mxu0 %v221
    %240 = vmatprep.subr.bf16.mxu0 0
    %241 = vmatpush1.bf16.msra.mxu0 %v222
    %242 = vmatprep.subr.bf16.mxu0 0
    %243 = vmatpush1.bf16.msra.mxu0 %v223
    %244 = vmatprep.subr.bf16.mxu0 0
    %245 = vmatpush1.bf16.msra.mxu0 %v224
    %246 = vmatprep.subr.bf16.mxu0 0
    %247 = vmatpush1.bf16.msra.mxu0 %v225
    %248 = vmatprep.subr.bf16.mxu0 0
    %249 = vmatpush1.bf16.msra.mxu0 %v226
    %250 = vmatprep.subr.bf16.mxu0 0
    %251 = vmatpush1.bf16.msra.mxu0 %v227
    %252 = vmatprep.subr.bf16.mxu0 0
    %253 = vmatpush1.bf16.msra.mxu0 0
    %254 = vmatprep.subr.bf16.mxu0 0
    %255 = vmatpush1.bf16.msra.mxu0 0
    %256 = vmatprep.subr.bf16.mxu0 0
    %257 = vmatpush1.bf16.msra.mxu0 0
    %258 = vmatprep.subr.bf16.mxu0 0
    %259 = vmatpush1.bf16.msra.mxu0 0
    %260 = vmatprep.subr.bf16.mxu0 0
    %261 = vmatpush1.bf16.msra.mxu0 0
    %262 = vmatprep.subr.bf16.mxu0 0
    %263 = vmatpush1.bf16.msra.mxu0 0
    %264 = vmatprep.subr.bf16.mxu0 0
    %265 = vmatpush1.bf16.msra.mxu0 0
    %266 = vmatprep.subr.bf16.mxu0 0
    %267 = vmatpush1.bf16.msra.mxu0 0
    %268 = vmatprep.mubr.bf16.mxu0 0
    %269 = vmatmul.mubr.bf16.gmra.mrb[0].mxu0 %v180
    %v270 = vpop.f32.mrb[0].mxu0
    %v271 = vadd.f32 %v162, %v270
    %v272 = vpop.f32.mrb[0].mxu0
    %v273 = vpop.f32.mrb[0].mxu0
    %v274 = vadd.f32 %v162, %v273
    %v275 = vpop.f32.mrb[0].mxu0
    %276 = vmatprep.mubr.bf16.mxu0 0
    %277 = vmatmul.mubr.bf16.gmra.mrb[0].mxu0 %v181
    %v278 = vpop.f32.mrb[0].mxu0
    %v279 = vadd.f32 %v162, %v278
    %v280 = vpop.f32.mrb[0].mxu0
    %v281 = vpop.f32.mrb[0].mxu0
    %v282 = vadd.f32 %v162, %v281
    %v283 = vpop.f32.mrb[0].mxu0
    %284 = vmatprep.mubr.bf16.mxu0 0
    %285 = vmatmul.mubr.bf16.gmra.mrb[0].mxu0 %v182
    %v286 = vpop.f32.mrb[0].mxu0
    %v287 = vadd.f32 %v162, %v286
    %v288 = vpop.f32.mrb[0].mxu0
    %v289 = vpop.f32.mrb[0].mxu0
    %v290 = vadd.f32 %v162, %v289
    %v291 = vpop.f32.mrb[0].mxu0
    %292 = vmatprep.mubr.bf16.mxu0 0
    %293 = vmatmul.mubr.bf16.gmra.mrb[0].mxu0 %v183
    %v294 = vpop.f32.mrb[0].mxu0
    %v295 = vadd.f32 %v162, %v294
    %v296 = vpop.f32.mrb[0].mxu0
    %v297 = vpop.f32.mrb[0].mxu0
    %v298 = vadd.f32 %v162, %v297
    %v299 = vpop.f32.mrb[0].mxu0
    %300 = vdwg.mxu0
    %v301 = vtanh.pop %v271
    %v302 = vtanh.pop %v274
    %v303 = vtanh.pop %v279
    %v304 = vtanh.pop %v282
    %v305 = vtanh.pop %v287
    %v306 = vtanh.pop %v290
    %v307 = vtanh.pop %v295
    %v308 = vtanh.pop %v298
    %v309 = vld [vmem:[#allocation13] sm:$0x1]
    %v311 = vlaneseq
    %v312 = vshrl.u32 %v311, 7
    %v313 = vsub.s32 0, %v312
    %v314 = vrot.slane %v309, %v313
    %v316 = vmul.f32 %v301, %v314
    %v317 = vmul.f32 %v302, %v314
    %v318 = vmul.f32 %v303, %v314
    %v319 = vmul.f32 %v304, %v314
    %v320 = vmul.f32 %v305, %v314
    %v321 = vmul.f32 %v306, %v314
    %v322 = vmul.f32 %v307, %v314
    %v323 = vmul.f32 %v308, %v314
    %324 = vadd.xlane.f32.xlu0 %v316
    %v325 = vpop.xlane.xlu0 %324
    %326 = vadd.xlane.f32.xlu0 %v317
    %v327 = vpop.xlane.xlu0 %326
    %328 = vadd.xlane.f32.xlu0 %v318
    %v329 = vpop.xlane.xlu0 %328
    %330 = vadd.xlane.f32.xlu0 %v319
    %v331 = vpop.xlane.xlu0 %330
    %332 = vadd.xlane.f32.xlu0 %v320
    %v333 = vpop.xlane.xlu0 %332
    %334 = vadd.xlane.f32.xlu0 %v321
    %v335 = vpop.xlane.xlu0 %334
    %336 = vadd.xlane.f32.xlu0 %v322
    %v337 = vpop.xlane.xlu0 %336
    %338 = vadd.xlane.f32.xlu0 %v323
    %v339 = vpop.xlane.xlu0 %338
    %v340 = vld [vmem:[#allocation6] sm:$0x1]
    %v342 = vlaneseq
    %v343 = vshrl.u32 %v342, 7
    %v344 = vsub.s32 0, %v343
    %v345 = vrot.slane %v340, %v344
    %v347 = vadd.f32 %v325, %v345
    %v348 = vadd.f32 %v327, %v345
    %v349 = vadd.f32 %v329, %v345
    %v350 = vadd.f32 %v331, %v345
    %v351 = vadd.f32 %v333, %v345
    %v352 = vadd.f32 %v335, %v345
    %v353 = vadd.f32 %v337, %v345
    %v354 = vadd.f32 %v339, %v345
    %vm355 = vcmask 7168
    %356 = vst.msk [vmem:[#allocation20] sm:$0xff] %vm355, %v347
    %357 = vst.msk [vmem:[#allocation20 + $0x8] sm:$0xff] %vm355, %v348
    %358 = vst.msk [vmem:[#allocation20 + $0x10] sm:$0xff] %vm355, %v349
    %359 = vst.msk [vmem:[#allocation20 + $0x18] sm:$0xff] %vm355, %v350
    %360 = vst.msk [vmem:[#allocation20 + $0x20] sm:$0xff] %vm355, %v351
    %361 = vst.msk [vmem:[#allocation20 + $0x28] sm:$0xff] %vm355, %v352
    %362 = vst.msk [vmem:[#allocation20 + $0x30] sm:$0xff] %vm355, %v353
    %363 = vst.msk [vmem:[#allocation20 + $0x38] sm:$0xff] %vm355, %v354
    %v364 = vld [vmem:[#allocation2] sm:$0xff]
    %v365 = vld [vmem:[#allocation3] sm:$0xff]
    %v366 = vld [vmem:[#allocation4] sm:$0xff]
    %v367 = vld [vmem:[#allocation7] sm:$0xf]
    %v368 = vunpack.c.l.bf16 %v367
    %v369 = vmax.f32 %v364, %v347
    %v370 = vsub.f32 %v364, %v369
    %v371 = vmul.f32 %v370, 1.442695
    %v372 = vpow.pop %v371
    %v373 = vsub.f32 %v347, %v369
    %v374 = vmul.f32 %v373, 1.442695
    %v375 = vpow.pop %v374
    %v376 = vmul.f32 %v372, %v365
    %v377 = vadd.f32 %v376, %v375
    %379 = vset.pattern.permute.xlu0 0
    %380 = vperm.xlu0 %379, %v372
    %v381 = vpop.permute.xlu0 %380
    %v383 = vmul.f32 %v381, %v366
    %385 = vset.pattern.permute.xlu0 0
    %386 = vperm.xlu0 %385, %v375
    %v387 = vpop.permute.xlu0 %386
    %v389 = vmul.f32 %v387, %v368
    %v390 = vadd.f32 %v383, %v389
    %v391 = vrcp.pop %v377
    %393 = vset.pattern.permute.xlu0 0
    %394 = vperm.xlu0 %393, %v391
    %v395 = vpop.permute.xlu0 %394
    %v397 = vmul.f32 %v390, %v395
    %v398 = vpack.c.bf16 %v397, %v397
    %399 = vst [vmem:[#allocation5] sm:$0xf] %v398
    %v400 = vld [vmem:[#allocation7 + $0x4] sm:$0xf]
    %v401 = vunpack.c.l.bf16 %v400
    %v402 = vmax.f32 %v369, %v348
    %v403 = vsub.f32 %v369, %v402
    %v404 = vmul.f32 %v403, 1.442695
    %v405 = vpow.pop %v404
    %v406 = vsub.f32 %v348, %v402
    %v407 = vmul.f32 %v406, 1.442695
    %v408 = vpow.pop %v407
    %v409 = vmul.f32 %v405, %v377
    %v410 = vadd.f32 %v409, %v408
    %412 = vset.pattern.permute.xlu0 0
    %413 = vperm.xlu0 %412, %v405
    %v414 = vpop.permute.xlu0 %413
    %v416 = vmul.f32 %v414, %v390
    %418 = vset.pattern.permute.xlu0 0
    %419 = vperm.xlu0 %418, %v408
    %v420 = vpop.permute.xlu0 %419
    %v422 = vmul.f32 %v420, %v401
    %v423 = vadd.f32 %v416, %v422
    %v424 = vrcp.pop %v410
    %426 = vset.pattern.permute.xlu0 0
    %427 = vperm.xlu0 %426, %v424
    %v428 = vpop.permute.xlu0 %427
    %v430 = vmul.f32 %v423, %v428
    %v431 = vpack.c.bf16 %v430, %v430
    %v433 = vrot.slane %v431, 4
    %435 = vst [vmem:[#allocation5] sm:$0xf0] %v433
    %v436 = vld [vmem:[#allocation7 + $0x8] sm:$0xf]
    %v437 = vunpack.c.l.bf16 %v436
    %v438 = vmax.f32 %v402, %v349
    %v439 = vsub.f32 %v402, %v438
    %v440 = vmul.f32 %v439, 1.442695
    %v441 = vpow.pop %v440
    %v442 = vsub.f32 %v349, %v438
    %v443 = vmul.f32 %v442, 1.442695
    %v444 = vpow.pop %v443
    %v445 = vmul.f32 %v441, %v410
    %v446 = vadd.f32 %v445, %v444
    %448 = vset.pattern.permute.xlu0 0
    %449 = vperm.xlu0 %448, %v441
    %v450 = vpop.permute.xlu0 %449
    %v452 = vmul.f32 %v450, %v423
    %454 = vset.pattern.permute.xlu0 0
    %455 = vperm.xlu0 %454, %v444
    %v456 = vpop.permute.xlu0 %455
    %v458 = vmul.f32 %v456, %v437
    %v459 = vadd.f32 %v452, %v458
    %v460 = vrcp.pop %v446
    %462 = vset.pattern.permute.xlu0 0
    %463 = vperm.xlu0 %462, %v460
    %v464 = vpop.permute.xlu0 %463
    %v466 = vmul.f32 %v459, %v464
    %v467 = vpack.c.bf16 %v466, %v466
    %468 = vst [vmem:[#allocation5 + $0x8] sm:$0xf] %v467
    %v469 = vld [vmem:[#allocation7 + $0xc] sm:$0xf]
    %v470 = vunpack.c.l.bf16 %v469
    %v471 = vmax.f32 %v438, %v350
    %v472 = vsub.f32 %v438, %v471
    %v473 = vmul.f32 %v472, 1.442695
    %v474 = vpow.pop %v473
    %v475 = vsub.f32 %v350, %v471
    %v476 = vmul.f32 %v475, 1.442695
    %v477 = vpow.pop %v476
    %v478 = vmul.f32 %v474, %v446
    %v479 = vadd.f32 %v478, %v477
    %481 = vset.pattern.permute.xlu0 0
    %482 = vperm.xlu0 %481, %v474
    %v483 = vpop.permute.xlu0 %482
    %v485 = vmul.f32 %v483, %v459
    %487 = vset.pattern.permute.xlu0 0
    %488 = vperm.xlu0 %487, %v477
    %v489 = vpop.permute.xlu0 %488
    %v491 = vmul.f32 %v489, %v470
    %v492 = vadd.f32 %v485, %v491
    %v493 = vrcp.pop %v479
    %495 = vset.pattern.permute.xlu0 0
    %496 = vperm.xlu0 %495, %v493
    %v497 = vpop.permute.xlu0 %496
    %v499 = vmul.f32 %v492, %v497
    %v500 = vpack.c.bf16 %v499, %v499
    %v502 = vrot.slane %v500, 4
    %504 = vst [vmem:[#allocation5 + $0x8] sm:$0xf0] %v502
    %v505 = vld [vmem:[#allocation7 + $0x10] sm:$0xf]
    %v506 = vunpack.c.l.bf16 %v505
    %v507 = vmax.f32 %v471, %v351
    %v508 = vsub.f32 %v471, %v507
    %v509 = vmul.f32 %v508, 1.442695
    %v510 = vpow.pop %v509
    %v511 = vsub.f32 %v351, %v507
    %v512 = vmul.f32 %v511, 1.442695
    %v513 = vpow.pop %v512
    %v514 = vmul.f32 %v510, %v479
    %v515 = vadd.f32 %v514, %v513
    %517 = vset.pattern.permute.xlu0 0
    %518 = vperm.xlu0 %517, %v510
    %v519 = vpop.permute.xlu0 %518
    %v521 = vmul.f32 %v519, %v492
    %523 = vset.pattern.permute.xlu0 0
    %524 = vperm.xlu0 %523, %v513
    %v525 = vpop.permute.xlu0 %524
    %v527 = vmul.f32 %v525, %v506
    %v528 = vadd.f32 %v521, %v527
    %v529 = vrcp.pop %v515
    %531 = vset.pattern.permute.xlu0 0
    %532 = vperm.xlu0 %531, %v529
    %v533 = vpop.permute.xlu0 %532
    %v535 = vmul.f32 %v528, %v533
    %v536 = vpack.c.bf16 %v535, %v535
    %537 = vst [vmem:[#allocation5 + $0x10] sm:$0xf] %v536
    %v538 = vld [vmem:[#allocation7 + $0x14] sm:$0xf]
    %v539 = vunpack.c.l.bf16 %v538
    %v540 = vmax.f32 %v507, %v352
    %v541 = vsub.f32 %v507, %v540
    %v542 = vmul.f32 %v541, 1.442695
    %v543 = vpow.pop %v542
    %v544 = vsub.f32 %v352, %v540
    %v545 = vmul.f32 %v544, 1.442695
    %v546 = vpow.pop %v545
    %v547 = vmul.f32 %v543, %v515
    %v548 = vadd.f32 %v547, %v546
    %550 = vset.pattern.permute.xlu0 0
    %551 = vperm.xlu0 %550, %v543
    %v552 = vpop.permute.xlu0 %551
    %v554 = vmul.f32 %v552, %v528
    %556 = vset.pattern.permute.xlu0 0
    %557 = vperm.xlu0 %556, %v546
    %v558 = vpop.permute.xlu0 %557
    %v560 = vmul.f32 %v558, %v539
    %v561 = vadd.f32 %v554, %v560
    %v562 = vrcp.pop %v548
    %564 = vset.pattern.permute.xlu0 0
    %565 = vperm.xlu0 %564, %v562
    %v566 = vpop.permute.xlu0 %565
    %v568 = vmul.f32 %v561, %v566
    %v569 = vpack.c.bf16 %v568, %v568
    %v571 = vrot.slane %v569, 4
    %573 = vst [vmem:[#allocation5 + $0x10] sm:$0xf0] %v571
    %v574 = vld [vmem:[#allocation7 + $0x18] sm:$0xf]
    %v575 = vunpack.c.l.bf16 %v574
    %v576 = vmax.f32 %v540, %v353
    %v577 = vsub.f32 %v540, %v576
    %v578 = vmul.f32 %v577, 1.442695
    %v579 = vpow.pop %v578
    %v580 = vsub.f32 %v353, %v576
    %v581 = vmul.f32 %v580, 1.442695
    %v582 = vpow.pop %v581
    %v583 = vmul.f32 %v579, %v548
    %v584 = vadd.f32 %v583, %v582
    %586 = vset.pattern.permute.xlu0 0
    %587 = vperm.xlu0 %586, %v579
    %v588 = vpop.permute.xlu0 %587
    %v590 = vmul.f32 %v588, %v561
    %592 = vset.pattern.permute.xlu0 0
    %593 = vperm.xlu0 %592, %v582
    %v594 = vpop.permute.xlu0 %593
    %v596 = vmul.f32 %v594, %v575
    %v597 = vadd.f32 %v590, %v596
    %v598 = vrcp.pop %v584
    %600 = vset.pattern.permute.xlu0 0
    %601 = vperm.xlu0 %600, %v598
    %v602 = vpop.permute.xlu0 %601
    %v604 = vmul.f32 %v597, %v602
    %v605 = vpack.c.bf16 %v604, %v604
    %606 = vst [vmem:[#allocation5 + $0x18] sm:$0xf] %v605
    %v607 = vld [vmem:[#allocation7 + $0x1c] sm:$0xf]
    %v608 = vunpack.c.l.bf16 %v607
    %v609 = vmax.f32 %v576, %v354
    %v610 = vsub.f32 %v576, %v609
    %v611 = vmul.f32 %v610, 1.442695
    %v612 = vpow.pop %v611
    %v613 = vsub.f32 %v354, %v609
    %v614 = vmul.f32 %v613, 1.442695
    %v615 = vpow.pop %v614
    %v616 = vmul.f32 %v612, %v584
    %v617 = vadd.f32 %v616, %v615
    %619 = vset.pattern.permute.xlu0 0
    %620 = vperm.xlu0 %619, %v612
    %v621 = vpop.permute.xlu0 %620
    %v623 = vmul.f32 %v621, %v597
    %625 = vset.pattern.permute.xlu0 0
    %626 = vperm.xlu0 %625, %v615
    %v627 = vpop.permute.xlu0 %626
    %v629 = vmul.f32 %v627, %v608
    %v630 = vadd.f32 %v623, %v629
    %v631 = vrcp.pop %v617
    %633 = vset.pattern.permute.xlu0 0
    %634 = vperm.xlu0 %633, %v631
    %v635 = vpop.permute.xlu0 %634
    %v637 = vmul.f32 %v630, %v635
    %v638 = vpack.c.bf16 %v637, %v637
    %v640 = vrot.slane %v638, 4
    %642 = vst [vmem:[#allocation5 + $0x18] sm:$0xf0] %v640
    %643 = vst.msk [vmem:[#allocation2] sm:$0xff] %vm355, %v609
    %644 = vst.msk [vmem:[#allocation3] sm:$0xff] %vm355, %v617
    %645 = vst [vmem:[#allocation4] sm:$0xff] %v630
    %v646 = vld [vmem:[#allocation5] sm:$0xff]
    %v647 = vld [vmem:[#allocation5 + $0x8] sm:$0xff]
    %v648 = vld [vmem:[#allocation5 + $0x10] sm:$0xff]
    %v649 = vld [vmem:[#allocation5 + $0x18] sm:$0xff]
    %v650 = vld [vmem:[#allocation15] sm:$0xf]
    %v651 = vld [vmem:[#allocation15 + $0x4] sm:$0xf]
    %v652 = vld [vmem:[#allocation15 + $0x8] sm:$0xf]
    %v653 = vld [vmem:[#allocation15 + $0xc] sm:$0xf]
    %v654 = vld [vmem:[#allocation15 + $0x10] sm:$0xf]
    %v655 = vld [vmem:[#allocation15 + $0x14] sm:$0xf]
    %v656 = vld [vmem:[#allocation15 + $0x18] sm:$0xf]
    %v657 = vld [vmem:[#allocation15 + $0x1c] sm:$0xf]
    %v658 = vld [vmem:[#allocation15 + $0x20] sm:$0xf]
    %v659 = vld [vmem:[#allocation15 + $0x24] sm:$0xf]
    %v660 = vld [vmem:[#allocation15 + $0x28] sm:$0xf]
    %v661 = vld [vmem:[#allocation15 + $0x2c] sm:$0xf]
    %v662 = vld [vmem:[#allocation15 + $0x30] sm:$0xf]
    %v663 = vld [vmem:[#allocation15 + $0x34] sm:$0xf]
    %v664 = vld [vmem:[#allocation15 + $0x38] sm:$0xf]
    %v665 = vld [vmem:[#allocation15 + $0x3c] sm:$0xf]
    %v666 = vld [vmem:[#allocation7] sm:$0xf]
    %v667 = vld [vmem:[#allocation7 + $0x4] sm:$0xf]
    %v668 = vld [vmem:[#allocation7 + $0x8] sm:$0xf]
    %v669 = vld [vmem:[#allocation7 + $0xc] sm:$0xf]
    %v670 = vld [vmem:[#allocation7 + $0x10] sm:$0xf]
    %v671 = vld [vmem:[#allocation7 + $0x14] sm:$0xf]
    %v672 = vld [vmem:[#allocation7 + $0x18] sm:$0xf]
    %v673 = vld [vmem:[#allocation7 + $0x1c] sm:$0xf]
    %v674 = vld [vmem:[#allocation16] sm:$0xf]
    %v675 = vld [vmem:[#allocation16 + $0x4] sm:$0xf]
    %v676 = vld [vmem:[#allocation16 + $0x8] sm:$0xf]
    %v677 = vld [vmem:[#allocation16 + $0xc] sm:$0xf]
    %v678 = vld [vmem:[#allocation16 + $0x10] sm:$0xf]
    %v679 = vld [vmem:[#allocation16 + $0x14] sm:$0xf]
    %v680 = vld [vmem:[#allocation16 + $0x18] sm:$0xf]
    %v681 = vld [vmem:[#allocation16 + $0x1c] sm:$0xf]
    %v682 = vld [vmem:[#allocation16 + $0x20] sm:$0xf]
    %v683 = vld [vmem:[#allocation16 + $0x24] sm:$0xf]
    %v684 = vld [vmem:[#allocation16 + $0x28] sm:$0xf]
    %v685 = vld [vmem:[#allocation16 + $0x2c] sm:$0xf]
    %v686 = vld [vmem:[#allocation16 + $0x30] sm:$0xf]
    %v687 = vld [vmem:[#allocation16 + $0x34] sm:$0xf]
    %v688 = vld [vmem:[#allocation16 + $0x38] sm:$0xf]
    %v689 = vld [vmem:[#allocation16 + $0x3c] sm:$0xf]
    %v698 = vunpack.c.l.b16 %v666
    %v699 = vunpack.c.l.b16 %v667
    %v700 = vunpack.c.l.b16 %v668
    %v701 = vunpack.c.l.b16 %v669
    %v702 = vunpack.c.l.b16 %v670
    %v703 = vunpack.c.l.b16 %v671
    %v704 = vunpack.c.l.b16 %v672
    %v705 = vunpack.c.l.b16 %v673
    %v706 = vpack.c.b16 %v699, %v698
    %v707 = vpack.c.b16 %v701, %v700
    %v708 = vpack.c.b16 %v703, %v702
    %v709 = vpack.c.b16 %v705, %v704
    %v730 = vunpack.c.l.b16 %v674
    %v731 = vunpack.c.l.b16 %v675
    %v732 = vunpack.c.l.b16 %v676
    %v733 = vunpack.c.l.b16 %v677
    %v734 = vunpack.c.l.b16 %v678
    %v735 = vunpack.c.l.b16 %v679
    %v736 = vunpack.c.l.b16 %v680
    %v737 = vunpack.c.l.b16 %v681
    %v738 = vunpack.c.l.b16 %v682
    %v739 = vunpack.c.l.b16 %v683
    %v740 = vunpack.c.l.b16 %v684
    %v741 = vunpack.c.l.b16 %v685
    %v742 = vunpack.c.l.b16 %v686
    %v743 = vunpack.c.l.b16 %v687
    %v744 = vunpack.c.l.b16 %v688
    %v745 = vunpack.c.l.b16 %v689
    %v746 = vpack.c.b16 %v731, %v730
    %v747 = vpack.c.b16 %v733, %v732
    %v748 = vpack.c.b16 %v735, %v734
    %v749 = vpack.c.b16 %v737, %v736
    %v750 = vpack.c.b16 %v739, %v738
    %v751 = vpack.c.b16 %v741, %v740
    %v752 = vpack.c.b16 %v743, %v742
    %v753 = vpack.c.b16 %v745, %v744
    %762 = vmatprep.subr.bf16.mxu0 0
    %763 = vmatpush1.bf16.msra.mxu0 %v746
    %764 = vmatprep.subr.bf16.mxu0 0
    %765 = vmatpush1.bf16.msra.mxu0 %v747
    %766 = vmatprep.subr.bf16.mxu0 0
    %767 = vmatpush1.bf16.msra.mxu0 %v748
    %768 = vmatprep.subr.bf16.mxu0 0
    %769 = vmatpush1.bf16.msra.mxu0 %v749
    %770 = vmatprep.subr.bf16.mxu0 0
    %771 = vmatpush1.bf16.msra.mxu0 %v750
    %772 = vmatprep.subr.bf16.mxu0 0
    %773 = vmatpush1.bf16.msra.mxu0 %v751
    %774 = vmatprep.subr.bf16.mxu0 0
    %775 = vmatpush1.bf16.msra.mxu0 %v752
    %776 = vmatprep.subr.bf16.mxu0 0
    %777 = vmatpush1.bf16.msra.mxu0 %v753
    %778 = vmatprep.subr.bf16.mxu0 0
    %779 = vmatpush1.bf16.msra.mxu0 0
    %780 = vmatprep.subr.bf16.mxu0 0
    %781 = vmatpush1.bf16.msra.mxu0 0
    %782 = vmatprep.subr.bf16.mxu0 0
    %783 = vmatpush1.bf16.msra.mxu0 0
    %784 = vmatprep.subr.bf16.mxu0 0
    %785 = vmatpush1.bf16.msra.mxu0 0
    %786 = vmatprep.subr.bf16.mxu0 0
    %787 = vmatpush1.bf16.msra.mxu0 0
    %788 = vmatprep.subr.bf16.mxu0 0
    %789 = vmatpush1.bf16.msra.mxu0 0
    %790 = vmatprep.subr.bf16.mxu0 0
    %791 = vmatpush1.bf16.msra.mxu0 0
    %792 = vmatprep.subr.bf16.mxu0 0
    %793 = vmatpush1.bf16.msra.mxu0 0
    %794 = vmatprep.mubr.bf16.mxu0 0
    %795 = vmatmul.mubr.bf16.gmra.mrb[0].mxu0 %v706
    %v796 = vpop.f32.mrb[0].mxu0
    %v797 = vadd.f32 0.0, %v796
    %v798 = vpop.f32.mrb[0].mxu0
    %v799 = vpop.f32.mrb[0].mxu0
    %v800 = vadd.f32 0.0, %v799
    %v801 = vpop.f32.mrb[0].mxu0
    %802 = vmatprep.mubr.bf16.mxu0 0
    %803 = vmatmul.mubr.bf16.gmra.mrb[0].mxu0 %v707
    %v804 = vpop.f32.mrb[0].mxu0
    %v805 = vadd.f32 0.0, %v804
    %v806 = vpop.f32.mrb[0].mxu0
    %v807 = vpop.f32.mrb[0].mxu0
    %v808 = vadd.f32 0.0, %v807
    %v809 = vpop.f32.mrb[0].mxu0
    %810 = vmatprep.mubr.bf16.mxu0 0
    %811 = vmatmul.mubr.bf16.gmra.mrb[0].mxu0 %v708
    %v812 = vpop.f32.mrb[0].mxu0
    %v813 = vadd.f32 0.0, %v812
    %v814 = vpop.f32.mrb[0].mxu0
    %v815 = vpop.f32.mrb[0].mxu0
    %v816 = vadd.f32 0.0, %v815
    %v817 = vpop.f32.mrb[0].mxu0
    %818 = vmatprep.mubr.bf16.mxu0 0
    %819 = vmatmul.mubr.bf16.gmra.mrb[0].mxu0 %v709
    %v820 = vpop.f32.mrb[0].mxu0
    %v821 = vadd.f32 0.0, %v820
    %v822 = vpop.f32.mrb[0].mxu0
    %v823 = vpop.f32.mrb[0].mxu0
    %v824 = vadd.f32 0.0, %v823
    %v825 = vpop.f32.mrb[0].mxu0
    %826 = vdwg.mxu0
    %v843 = vunpack.c.l.b16 %v650
    %v844 = vunpack.c.l.b16 %v651
    %v845 = vunpack.c.l.b16 %v652
    %v846 = vunpack.c.l.b16 %v653
    %v847 = vunpack.c.l.b16 %v654
    %v848 = vunpack.c.l.b16 %v655
    %v849 = vunpack.c.l.b16 %v656
    %v850 = vunpack.c.l.b16 %v657
    %v851 = vunpack.c.l.b16 %v658
    %v852 = vunpack.c.l.b16 %v659
    %v853 = vunpack.c.l.b16 %v660
    %v854 = vunpack.c.l.b16 %v661
    %v855 = vunpack.c.l.b16 %v662
    %v856 = vunpack.c.l.b16 %v663
    %v857 = vunpack.c.l.b16 %v664
    %v858 = vunpack.c.l.b16 %v665
    %v859 = vpack.c.b16 %v844, %v843
    %v860 = vpack.c.b16 %v846, %v845
    %v861 = vpack.c.b16 %v848, %v847
    %v862 = vpack.c.b16 %v850, %v849
    %v863 = vpack.c.b16 %v852, %v851
    %v864 = vpack.c.b16 %v854, %v853
    %v865 = vpack.c.b16 %v856, %v855
    %v866 = vpack.c.b16 %v858, %v857
    %875 = vmatprep.subr.bf16.mxu0 0
    %876 = vmatpush1.bf16.msra.mxu0 %v859
    %877 = vmatprep.subr.bf16.mxu0 0
    %878 = vmatpush1.bf16.msra.mxu0 %v860
    %879 = vmatprep.subr.bf16.mxu0 0
    %880 = vmatpush1.bf16.msra.mxu0 %v861
    %881 = vmatprep.subr.bf16.mxu0 0
    %882 = vmatpush1.bf16.msra.mxu0 %v862
    %883 = vmatprep.subr.bf16.mxu0 0
    %884 = vmatpush1.bf16.msra.mxu0 %v863
    %885 = vmatprep.subr.bf16.mxu0 0
    %886 = vmatpush1.bf16.msra.mxu0 %v864
    %887 = vmatprep.subr.bf16.mxu0 0
    %888 = vmatpush1.bf16.msra.mxu0 %v865
    %889 = vmatprep.subr.bf16.mxu0 0
    %890 = vmatpush1.bf16.msra.mxu0 %v866
    %891 = vmatprep.subr.bf16.mxu0 0
    %892 = vmatpush1.bf16.msra.mxu0 0
    %893 = vmatprep.subr.bf16.mxu0 0
    %894 = vmatpush1.bf16.msra.mxu0 0
    %895 = vmatprep.subr.bf16.mxu0 0
    %896 = vmatpush1.bf16.msra.mxu0 0
    %897 = vmatprep.subr.bf16.mxu0 0
    %898 = vmatpush1.bf16.msra.mxu0 0
    %899 = vmatprep.subr.bf16.mxu0 0
    %900 = vmatpush1.bf16.msra.mxu0 0
    %901 = vmatprep.subr.bf16.mxu0 0
    %902 = vmatpush1.bf16.msra.mxu0 0
    %903 = vmatprep.subr.bf16.mxu0 0
    %904 = vmatpush1.bf16.msra.mxu0 0
    %905 = vmatprep.subr.bf16.mxu0 0
    %906 = vmatpush1.bf16.msra.mxu0 0
    %907 = vmatprep.mubr.bf16.mxu0 0
    %908 = vmatmul.mubr.bf16.gmra.mrb[0].mxu0 %v646
    %v909 = vpop.f32.mrb[0].mxu0
    %v910 = vadd.f32 %v797, %v909
    %v911 = vpop.f32.mrb[0].mxu0
    %v912 = vpop.f32.mrb[0].mxu0
    %v913 = vadd.f32 %v800, %v912
    %v914 = vpop.f32.mrb[0].mxu0
    %915 = vmatprep.mubr.bf16.mxu0 0
    %916 = vmatmul.mubr.bf16.gmra.mrb[0].mxu0 %v647
    %v917 = vpop.f32.mrb[0].mxu0
    %v918 = vadd.f32 %v805, %v917
    %v919 = vpop.f32.mrb[0].mxu0
    %v920 = vpop.f32.mrb[0].mxu0
    %v921 = vadd.f32 %v808, %v920
    %v922 = vpop.f32.mrb[0].mxu0
    %923 = vmatprep.mubr.bf16.mxu0 0
    %924 = vmatmul.mubr.bf16.gmra.mrb[0].mxu0 %v648
    %v925 = vpop.f32.mrb[0].mxu0
    %v926 = vadd.f32 %v813, %v925
    %v927 = vpop.f32.mrb[0].mxu0
    %v928 = vpop.f32.mrb[0].mxu0
    %v929 = vadd.f32 %v816, %v928
    %v930 = vpop.f32.mrb[0].mxu0
    %931 = vmatprep.mubr.bf16.mxu0 0
    %932 = vmatmul.mubr.bf16.gmra.mrb[0].mxu0 %v649
    %v933 = vpop.f32.mrb[0].mxu0
    %v934 = vadd.f32 %v821, %v933
    %v935 = vpop.f32.mrb[0].mxu0
    %v936 = vpop.f32.mrb[0].mxu0
    %v937 = vadd.f32 %v824, %v936
    %v938 = vpop.f32.mrb[0].mxu0
    %939 = vdwg.mxu0
    %v940 = vld [vmem:[#allocation18] sm:$0x1]
    %v942 = vlaneseq
    %v943 = vshrl.u32 %v942, 7
    %v944 = vsub.s32 0, %v943
    %v945 = vrot.slane %v940, %v944
    %v947 = vadd.f32 %v910, %v945
    %v948 = vadd.f32 %v913, %v945
    %v949 = vadd.f32 %v918, %v945
    %v950 = vadd.f32 %v921, %v945
    %v951 = vadd.f32 %v926, %v945
    %v952 = vadd.f32 %v929, %v945
    %v953 = vadd.f32 %v934, %v945
    %v954 = vadd.f32 %v937, %v945
    %v955 = vtanh.pop %v947
    %v956 = vtanh.pop %v948
    %v957 = vtanh.pop %v949
    %v958 = vtanh.pop %v950
    %v959 = vtanh.pop %v951
    %v960 = vtanh.pop %v952
    %v961 = vtanh.pop %v953
    %v962 = vtanh.pop %v954
    %v963 = vpack.c.bf16 %v956, %v955
    %v964 = vpack.c.bf16 %v958, %v957
    %v965 = vpack.c.bf16 %v960, %v959
    %v966 = vpack.c.bf16 %v962, %v961
    %v971 = vunpack.c.l.b16 %v963
    %v972 = vunpack.c.h.b16 %v963
    %v973 = vunpack.c.l.b16 %v964
    %v974 = vunpack.c.h.b16 %v964
    %v975 = vunpack.c.l.b16 %v965
    %v976 = vunpack.c.h.b16 %v965
    %v977 = vunpack.c.l.b16 %v966
    %v978 = vunpack.c.h.b16 %v966
    %v979 = vpack.c.b16 %v971, %v971
    %v980 = vpack.c.b16 %v972, %v972
    %v981 = vpack.c.b16 %v973, %v973
    %v982 = vpack.c.b16 %v974, %v974
    %v983 = vpack.c.b16 %v975, %v975
    %v984 = vpack.c.b16 %v976, %v976
    %v985 = vpack.c.b16 %v977, %v977
    %v986 = vpack.c.b16 %v978, %v978
    %995 = vst [vmem:[#allocation19] sm:$0xf] %v979
    %996 = vst [vmem:[#allocation19 + $0x4] sm:$0xf] %v980
    %997 = vst [vmem:[#allocation19 + $0x8] sm:$0xf] %v981
    %998 = vst [vmem:[#allocation19 + $0xc] sm:$0xf] %v982
    %999 = vst [vmem:[#allocation19 + $0x10] sm:$0xf] %v983
    %1000 = vst [vmem:[#allocation19 + $0x14] sm:$0xf] %v984
    %1001 = vst [vmem:[#allocation19 + $0x18] sm:$0xf] %v985
    %1002 = vst [vmem:[#allocation19 + $0x1c] sm:$0xf] %v986
    // Predicated region
    $region66: #{attention_lstm_forward.4} parent=1 // pred_check
      _
    $region67: #{attention_lstm_forward.4} parent=1 // pred_check_branch
      %1004 = sbr.rel (0) target = $region69
    $region68: #{attention_lstm_forward.4} parent=1 // pred_region
      %s1006 = ssub.s32 512, 512
      %1007 = vsyncadd [#allocation9], %s1006
      %s1008 = sshll.u32 [#allocation19], 4
      %s1009 = int_to_ptr.vmem [resolvable:$true] %s1008
      %1014 = dma.vmem_to_hbm [thread:$0]  %s1009, 512, %s8, [#allocation9], 64, 64, 4
    $region69: #{attention_lstm_forward.4} parent=1 // pred_fallthru
      _
    // Predicated region
    $region70: #{attention_lstm_forward.4} parent=1 // pred_check
      _
    $region71: #{attention_lstm_forward.4} parent=1 // pred_check_branch
      %1016 = sbr.rel (0) target = $region73
    $region72: #{attention_lstm_forward.4} parent=1 // pred_region
      %s1018 = ssub.s32 1024, 1024
      %1019 = vsyncadd [#allocation21], %s1018
      %s1020 = sshll.u32 [#allocation20], 4
      %s1021 = int_to_ptr.vmem [resolvable:$true] %s1020
      %1026 = dma.vmem_to_hbm [thread:$0]  %s1021, 1024, %s9, [#allocation21], 128, 128, 8
    $region73: #{attention_lstm_forward.4} parent=1 // pred_fallthru
      _
    // Predicated region
    $region74: #{attention_lstm_forward.4} parent=1 // pred_check
      _
    $region75: #{attention_lstm_forward.4} parent=1 // pred_check_branch
      %1028 = sbr.rel (0) target = $region77
    $region76: #{attention_lstm_forward.4} parent=1 // pred_region
      %1029 = dma.done [#allocation9], 512
    $region77: #{attention_lstm_forward.4} parent=1 // pred_fallthru
      _
    // Predicated region
    $region78: #{attention_lstm_forward.4} parent=1 // pred_check
      _
    $region79: #{attention_lstm_forward.4} parent=1 // pred_check_branch
      %1031 = sbr.rel (0) target = $region81
    $region80: #{attention_lstm_forward.4} parent=1 // pred_region
      %1032 = dma.done [#allocation21], 1024
    $region81: #{attention_lstm_forward.4} parent=1 // pred_fallthru
      _
    %1033 = vsyncpa [#allocation8], 1
    %1034 = vsyncpa [#allocation11], 1
    %1035 = vsyncpa [#allocation14], 1
    %1036 = vsyncpa [#allocation17], 1
    %1037 = vsyncpa [#allocation9], 1
    %1038 = vsyncpa [#allocation21], 1

// kernel: attention_lstm_forward.3
$region0: #{attention_lstm_forward.3}
  #allocation0 [shape = 'u32[]', space=smem, size = 0x4, offset = 0x4, fixed_abs, tag = 'smem constant byte address 0x4 - core index']
  #allocation1 [shape = 'u32[144,128]{1,0:T(1,128)}', space=vmem, size = 0x12000, scoped, tag = 'internal scratch']
  #allocation2 [shape = 'f32[8,128]{1,0:T(8,128)}', space=vmem, size = 0x1000, scoped, tag = 'scratch operand']
  #allocation3 [shape = 'f32[8,128]{1,0:T(8,128)}', space=vmem, size = 0x1000, scoped, tag = 'scratch operand']
  #allocation4 [shape = 'f32[64,512]{1,0:T(8,128)}', space=vmem, size = 0x20000, scoped, tag = 'scratch operand']
  %s0 = inlined_call_operand.hbm [shape: bf16[64,128], index: 0, kind: input, shape index: {}]
  %s1 = inlined_call_operand.hbm [shape: bf16[128,512], index: 1, kind: input, shape index: {}]
  %s2 = inlined_call_operand.hbm [shape: bf16[128,512], index: 2, kind: input, shape index: {}]
  %s3 = inlined_call_operand.hbm [shape: f32[1,512], index: 3, kind: input, shape index: {}]
  %s4 = inlined_call_operand.hbm [shape: bf16[64,128], index: 4, kind: output, shape index: {}]
  %s5 = sld [smem:[#allocation0]]
  $region46: #{attention_lstm_forward.3} parent=0
    _
  %s7 = ssub.s32 1, %s5
  %s8 = scalar_select 0, %s7, %s5
  $region1: #{attention_lstm_forward.3} parent=0
    #allocation5 [shape = 'u8[16384]{0}', space=vmem, size = 0x4000, scoped, tag = 'input window, operand 0, single buffered']
    #allocation6 [shape = 's32[1]{0}', space=sflag, size = 0x4, scoped, tag = 'scoped memory for attention_lstm_forward.3']
    #allocation7 [shape = 's32[1]{0}', space=sflag, size = 0x4, scoped, tag = 'scoped memory for attention_lstm_forward.3']
    #allocation8 [shape = 'u8[131072]{0}', space=vmem, size = 0x20000, scoped, tag = 'input window, operand 1, single buffered']
    #allocation9 [shape = 's32[1]{0}', space=sflag, size = 0x4, scoped, tag = 'scoped memory for attention_lstm_forward.3']
    #allocation10 [shape = 'u8[131072]{0}', space=vmem, size = 0x20000, scoped, tag = 'input window, operand 2, single buffered']
    #allocation11 [shape = 'u8[2048]{0}', space=vmem, size = 0x800, scoped, tag = 'input window, operand 3, single buffered']
    #allocation12 [shape = 's32[1]{0}', space=sflag, size = 0x4, scoped, tag = 'scoped memory for attention_lstm_forward.3']
    #allocation13 [shape = 'u8[16384]{0}', space=vmem, size = 0x4000, scoped, tag = 'output window, operand 0, single buffered']
    %9 = vsyncpa [#allocation6], 0
    %10 = vsyncpa [#allocation9], 0
    %11 = vsyncpa [#allocation12], 0
    %12 = vsyncpa [#allocation7], 0
    // Predicated region
    $region2: #{attention_lstm_forward.3} parent=1 // pred_check
      _
    $region3: #{attention_lstm_forward.3} parent=1 // pred_check_branch
      %14 = sbr.rel (0) target = $region5
    $region4: #{attention_lstm_forward.3} parent=1 // pred_region
      %s16 = ssub.s32 512, 512
      %17 = vsyncadd [#allocation6], %s16
      %s18 = sshll.u32 [#allocation5], 4
      %s19 = int_to_ptr.vmem [resolvable:$true] %s18
      %24 = dma.hbm_to_vmem [thread:$0]  %s0, 512, %s19, [#allocation6], 64, 64, 4
    $region5: #{attention_lstm_forward.3} parent=1 // pred_fallthru
      _
    // Predicated region
    $region6: #{attention_lstm_forward.3} parent=1 // pred_check
      _
    $region7: #{attention_lstm_forward.3} parent=1 // pred_check_branch
      %26 = sbr.rel (0) target = $region9
    $region8: #{attention_lstm_forward.3} parent=1 // pred_region
      %s28 = ssub.s32 4096, 4096
      %29 = vsyncadd [#allocation9], %s28
      %s30 = sshll.u32 [#allocation8], 4
      %s31 = int_to_ptr.vmem [resolvable:$true] %s30
      %36 = dma.hbm_to_vmem [thread:$0]  %s1, 4096, %s31, [#allocation9], 256, 256, 16
    $region9: #{attention_lstm_forward.3} parent=1 // pred_fallthru
      _
    // Predicated region
    $region10: #{attention_lstm_forward.3} parent=1 // pred_check
      _
    $region11: #{attention_lstm_forward.3} parent=1 // pred_check_branch
      %38 = sbr.rel (0) target = $region13
    $region12: #{attention_lstm_forward.3} parent=1 // pred_region
      %s40 = ssub.s32 4096, 4096
      %41 = vsyncadd [#allocation9], %s40
      %s42 = sshll.u32 [#allocation10], 4
      %s43 = int_to_ptr.vmem [resolvable:$true] %s42
      %48 = dma.hbm_to_vmem [thread:$0]  %s2, 4096, %s43, [#allocation9], 256, 256, 16
    $region13: #{attention_lstm_forward.3} parent=1 // pred_fallthru
      _
    // Predicated region
    $region14: #{attention_lstm_forward.3} parent=1 // pred_check
      _
    $region15: #{attention_lstm_forward.3} parent=1 // pred_check_branch
      %50 = sbr.rel (0) target = $region17
    $region16: #{attention_lstm_forward.3} parent=1 // pred_region
      %s52 = ssub.s32 64, 64
      %53 = vsyncadd [#allocation12], %s52
      %s55 = sshll.u32 [#allocation11], 4
      %s56 = int_to_ptr.vmem [resolvable:$true] %s55
      %58 = dma.hbm_to_vmem [thread:$0]  %s3, 64, %s56, [#allocation12]
    $region17: #{attention_lstm_forward.3} parent=1 // pred_fallthru
      _
    // Predicated region
    $region18: #{attention_lstm_forward.3} parent=1 // pred_check
      _
    $region19: #{attention_lstm_forward.3} parent=1 // pred_check_branch
      %60 = sbr.rel (0) target = $region21
    $region20: #{attention_lstm_forward.3} parent=1 // pred_region
      %61 = dma.done [#allocation6], 512
    $region21: #{attention_lstm_forward.3} parent=1 // pred_fallthru
      _
    // Predicated region
    $region22: #{attention_lstm_forward.3} parent=1 // pred_check
      _
    $region23: #{attention_lstm_forward.3} parent=1 // pred_check_branch
      %63 = sbr.rel (0) target = $region25
    $region24: #{attention_lstm_forward.3} parent=1 // pred_region
      %64 = dma.done [#allocation9], 4096
    $region25: #{attention_lstm_forward.3} parent=1 // pred_fallthru
      _
    // Predicated region
    $region26: #{attention_lstm_forward.3} parent=1 // pred_check
      _
    $region27: #{attention_lstm_forward.3} parent=1 // pred_check_branch
      %66 = sbr.rel (0) target = $region29
    $region28: #{attention_lstm_forward.3} parent=1 // pred_region
      %67 = dma.done [#allocation9], 4096
    $region29: #{attention_lstm_forward.3} parent=1 // pred_fallthru
      _
    // Predicated region
    $region30: #{attention_lstm_forward.3} parent=1 // pred_check
      _
    $region31: #{attention_lstm_forward.3} parent=1 // pred_check_branch
      %69 = sbr.rel (0) target = $region33
    $region32: #{attention_lstm_forward.3} parent=1 // pred_region
      %70 = dma.done [#allocation12], 64
    $region33: #{attention_lstm_forward.3} parent=1 // pred_fallthru
      _
    %p72 = scmp.eq.s32.totalorder 0, 0
    // Predicated region
    $region34: #{attention_lstm_forward.3} parent=1 // pred_check
      %p73 = pneg %p72
    $region35: #{attention_lstm_forward.3} parent=1 // pred_check_branch
      %75 = sbr.rel (%p73) target = $region37
    $region36: #{attention_lstm_forward.3} parent=1 // pred_region
      %76 = vst [vmem:[#allocation2] sm:$0xff] 0.0
      %77 = vst [vmem:[#allocation3] sm:$0xff] 0.0
    $region37: #{attention_lstm_forward.3} parent=1 // pred_fallthru
      _
    %v78 = vld [vmem:[#allocation5] sm:$0xf]
    %v79 = vld [vmem:[#allocation5 + $0x4] sm:$0xf]
    %v80 = vld [vmem:[#allocation5 + $0x8] sm:$0xf]
    %v81 = vld [vmem:[#allocation5 + $0xc] sm:$0xf]
    %v82 = vld [vmem:[#allocation5 + $0x10] sm:$0xf]
    %v83 = vld [vmem:[#allocation5 + $0x14] sm:$0xf]
    %v84 = vld [vmem:[#allocation5 + $0x18] sm:$0xf]
    %v85 = vld [vmem:[#allocation5 + $0x1c] sm:$0xf]
    %v86 = vld [vmem:[#allocation8] sm:$0xff]
    %v87 = vld [vmem:[#allocation8 + $0x8] sm:$0xff]
    %v88 = vld [vmem:[#allocation8 + $0x10] sm:$0xff]
    %v89 = vld [vmem:[#allocation8 + $0x18] sm:$0xff]
    %v90 = vld [vmem:[#allocation8 + $0x20] sm:$0xff]
    %v91 = vld [vmem:[#allocation8 + $0x28] sm:$0xff]
    %v92 = vld [vmem:[#allocation8 + $0x30] sm:$0xff]
    %v93 = vld [vmem:[#allocation8 + $0x38] sm:$0xff]
    %v94 = vld [vmem:[#allocation8 + $0x40] sm:$0xff]
    %v95 = vld [vmem:[#allocation8 + $0x48] sm:$0xff]
    %v96 = vld [vmem:[#allocation8 + $0x50] sm:$0xff]
    %v97 = vld [vmem:[#allocation8 + $0x58] sm:$0xff]
    %v98 = vld [vmem:[#allocation8 + $0x60] sm:$0xff]
    %v99 = vld [vmem:[#allocation8 + $0x68] sm:$0xff]
    %v100 = vld [vmem:[#allocation8 + $0x70] sm:$0xff]
    %v101 = vld [vmem:[#allocation8 + $0x78] sm:$0xff]
    %v102 = vld [vmem:[#allocation8 + $0x80] sm:$0xff]
    %v103 = vld [vmem:[#allocation8 + $0x88] sm:$0xff]
    %v104 = vld [vmem:[#allocation8 + $0x90] sm:$0xff]
    %v105 = vld [vmem:[#allocation8 + $0x98] sm:$0xff]
    %v106 = vld [vmem:[#allocation8 + $0xa0] sm:$0xff]
    %v107 = vld [vmem:[#allocation8 + $0xa8] sm:$0xff]
    %v108 = vld [vmem:[#allocation8 + $0xb0] sm:$0xff]
    %v109 = vld [vmem:[#allocation8 + $0xb8] sm:$0xff]
    %v110 = vld [vmem:[#allocation8 + $0xc0] sm:$0xff]
    %v111 = vld [vmem:[#allocation8 + $0xc8] sm:$0xff]
    %v112 = vld [vmem:[#allocation8 + $0xd0] sm:$0xff]
    %v113 = vld [vmem:[#allocation8 + $0xd8] sm:$0xff]
    %v114 = vld [vmem:[#allocation8 + $0xe0] sm:$0xff]
    %v115 = vld [vmem:[#allocation8 + $0xe8] sm:$0xff]
    %v116 = vld [vmem:[#allocation8 + $0xf0] sm:$0xff]
    %v117 = vld [vmem:[#allocation8 + $0xf8] sm:$0xff]
    %v118 = vld [vmem:[#allocation11] sm:$0xf]
    %v120 = vlaneseq
    %v121 = vshrl.u32 %v120, 7
    %v122 = vsub.s32 0, %v121
    %v123 = vrot.slane %v118, %v122
    %v124 = vlaneseq
    %v125 = vshrl.u32 %v124, 7
    %v126 = vsub.s32 1, %v125
    %v127 = vrot.slane %v118, %v126
    %v128 = vlaneseq
    %v129 = vshrl.u32 %v128, 7
    %v130 = vsub.s32 2, %v129
    %v131 = vrot.slane %v118, %v130
    %v132 = vlaneseq
    %v133 = vshrl.u32 %v132, 7
    %v134 = vsub.s32 3, %v133
    %v135 = vrot.slane %v118, %v134
    %v148 = vunpack.c.l.b16 %v78
    %v149 = vunpack.c.l.b16 %v79
    %v150 = vunpack.c.l.b16 %v80
    %v151 = vunpack.c.l.b16 %v81
    %v152 = vunpack.c.l.b16 %v82
    %v153 = vunpack.c.l.b16 %v83
    %v154 = vunpack.c.l.b16 %v84
    %v155 = vunpack.c.l.b16 %v85
    %v156 = vpack.c.b16 %v149, %v148
    %v157 = vpack.c.b16 %v151, %v150
    %v158 = vpack.c.b16 %v153, %v152
    %v159 = vpack.c.b16 %v155, %v154
    %v196 = vunpack.c.l.b16 %v86
    %v197 = vunpack.c.h.b16 %v86
    %v198 = vunpack.c.l.b16 %v87
    %v199 = vunpack.c.h.b16 %v87
    %v200 = vunpack.c.l.b16 %v88
    %v201 = vunpack.c.h.b16 %v88
    %v202 = vunpack.c.l.b16 %v89
    %v203 = vunpack.c.h.b16 %v89
    %v204 = vunpack.c.l.b16 %v90
    %v205 = vunpack.c.h.b16 %v90
    %v206 = vunpack.c.l.b16 %v91
    %v207 = vunpack.c.h.b16 %v91
    %v208 = vunpack.c.l.b16 %v92
    %v209 = vunpack.c.h.b16 %v92
    %v210 = vunpack.c.l.b16 %v93
    %v211 = vunpack.c.h.b16 %v93
    %v212 = vunpack.c.l.b16 %v94
    %v213 = vunpack.c.h.b16 %v94
    %v214 = vunpack.c.l.b16 %v95
    %v215 = vunpack.c.h.b16 %v95
    %v216 = vunpack.c.l.b16 %v96
    %v217 = vunpack.c.h.b16 %v96
    %v218 = vunpack.c.l.b16 %v97
    %v219 = vunpack.c.h.b16 %v97
    %v220 = vunpack.c.l.b16 %v98
    %v221 = vunpack.c.h.b16 %v98
    %v222 = vunpack.c.l.b16 %v99
    %v223 = vunpack.c.h.b16 %v99
    %v224 = vunpack.c.l.b16 %v100
    %v225 = vunpack.c.h.b16 %v100
    %v226 = vunpack.c.l.b16 %v101
    %v227 = vunpack.c.h.b16 %v101
    %v228 = vunpack.c.l.b16 %v102
    %v229 = vunpack.c.h.b16 %v102
    %v230 = vunpack.c.l.b16 %v103
    %v231 = vunpack.c.h.b16 %v103
    %v232 = vunpack.c.l.b16 %v104
    %v233 = vunpack.c.h.b16 %v104
    %v234 = vunpack.c.l.b16 %v105
    %v235 = vunpack.c.h.b16 %v105
    %v236 = vunpack.c.l.b16 %v106
    %v237 = vunpack.c.h.b16 %v106
    %v238 = vunpack.c.l.b16 %v107
    %v239 = vunpack.c.h.b16 %v107
    %v240 = vunpack.c.l.b16 %v108
    %v241 = vunpack.c.h.b16 %v108
    %v242 = vunpack.c.l.b16 %v109
    %v243 = vunpack.c.h.b16 %v109
    %v244 = vunpack.c.l.b16 %v110
    %v245 = vunpack.c.h.b16 %v110
    %v246 = vunpack.c.l.b16 %v111
    %v247 = vunpack.c.h.b16 %v111
    %v248 = vunpack.c.l.b16 %v112
    %v249 = vunpack.c.h.b16 %v112
    %v250 = vunpack.c.l.b16 %v113
    %v251 = vunpack.c.h.b16 %v113
    %v252 = vunpack.c.l.b16 %v114
    %v253 = vunpack.c.h.b16 %v114
    %v254 = vunpack.c.l.b16 %v115
    %v255 = vunpack.c.h.b16 %v115
    %v256 = vunpack.c.l.b16 %v116
    %v257 = vunpack.c.h.b16 %v116
    %v258 = vunpack.c.l.b16 %v117
    %v259 = vunpack.c.h.b16 %v117
    %v260 = vpack.c.b16 %v200, %v196
    %v261 = vpack.c.b16 %v201, %v197
    %v262 = vpack.c.b16 %v202, %v198
    %v263 = vpack.c.b16 %v203, %v199
    %v264 = vpack.c.b16 %v208, %v204
    %v265 = vpack.c.b16 %v209, %v205
    %v266 = vpack.c.b16 %v210, %v206
    %v267 = vpack.c.b16 %v211, %v207
    %v268 = vpack.c.b16 %v216, %v212
    %v269 = vpack.c.b16 %v217, %v213
    %v270 = vpack.c.b16 %v218, %v214
    %v271 = vpack.c.b16 %v219, %v215
    %v272 = vpack.c.b16 %v224, %v220
    %v273 = vpack.c.b16 %v225, %v221
    %v274 = vpack.c.b16 %v226, %v222
    %v275 = vpack.c.b16 %v227, %v223
    %v276 = vpack.c.b16 %v232, %v228
    %v277 = vpack.c.b16 %v233, %v229
    %v278 = vpack.c.b16 %v234, %v230
    %v279 = vpack.c.b16 %v235, %v231
    %v280 = vpack.c.b16 %v240, %v236
    %v281 = vpack.c.b16 %v241, %v237
    %v282 = vpack.c.b16 %v242, %v238
    %v283 = vpack.c.b16 %v243, %v239
    %v284 = vpack.c.b16 %v248, %v244
    %v285 = vpack.c.b16 %v249, %v245
    %v286 = vpack.c.b16 %v250, %v246
    %v287 = vpack.c.b16 %v251, %v247
    %v288 = vpack.c.b16 %v256, %v252
    %v289 = vpack.c.b16 %v257, %v253
    %v290 = vpack.c.b16 %v258, %v254
    %v291 = vpack.c.b16 %v259, %v255
    %324 = vmatprep.subr.bf16.mxu0 %v261
    %325 = vmatpush1.bf16.msra.mxu0 %v260
    %326 = vmatprep.subr.bf16.mxu0 %v265
    %327 = vmatpush1.bf16.msra.mxu0 %v264
    %328 = vmatprep.subr.bf16.mxu0 %v269
    %329 = vmatpush1.bf16.msra.mxu0 %v268
    %330 = vmatprep.subr.bf16.mxu0 %v273
    %331 = vmatpush1.bf16.msra.mxu0 %v272
    %332 = vmatprep.subr.bf16.mxu0 %v277
    %333 = vmatpush1.bf16.msra.mxu0 %v276
    %334 = vmatprep.subr.bf16.mxu0 %v281
    %335 = vmatpush1.bf16.msra.mxu0 %v280
    %336 = vmatprep.subr.bf16.mxu0 %v285
    %337 = vmatpush1.bf16.msra.mxu0 %v284
    %338 = vmatprep.subr.bf16.mxu0 %v289
    %339 = vmatpush1.bf16.msra.mxu0 %v288
    %340 = vmatprep.subr.bf16.mxu0 0
    %341 = vmatpush1.bf16.msra.mxu0 0
    %342 = vmatprep.subr.bf16.mxu0 0
    %343 = vmatpush1.bf16.msra.mxu0 0
    %344 = vmatprep.subr.bf16.mxu0 0
    %345 = vmatpush1.bf16.msra.mxu0 0
    %346 = vmatprep.subr.bf16.mxu0 0
    %347 = vmatpush1.bf16.msra.mxu0 0
    %348 = vmatprep.subr.bf16.mxu0 0
    %349 = vmatpush1.bf16.msra.mxu0 0
    %350 = vmatprep.subr.bf16.mxu0 0
    %351 = vmatpush1.bf16.msra.mxu0 0
    %352 = vmatprep.subr.bf16.mxu0 0
    %353 = vmatpush1.bf16.msra.mxu0 0
    %354 = vmatprep.subr.bf16.mxu0 0
    %355 = vmatpush1.bf16.msra.mxu0 0
    %356 = vmatprep.mubr.bf16.mxu0 0
    %357 = vmatmul.mubr.bf16.gmra.mrb[0].mxu0 %v156
    %v358 = vpop.f32.mrb[0].mxu0
    %v359 = vadd.f32 %v123, %v358
    %v360 = vpop.f32.mrb[0].mxu0
    %v361 = vadd.f32 %v127, %v360
    %v362 = vpop.f32.mrb[0].mxu0
    %v363 = vadd.f32 %v123, %v362
    %v364 = vpop.f32.mrb[0].mxu0
    %v365 = vadd.f32 %v127, %v364
    %366 = vmatprep.mubr.bf16.mxu0 0
    %367 = vmatmul.mubr.bf16.gmra.mrb[0].mxu0 %v157
    %v368 = vpop.f32.mrb[0].mxu0
    %v369 = vadd.f32 %v123, %v368
    %v370 = vpop.f32.mrb[0].mxu0
    %v371 = vadd.f32 %v127, %v370
    %v372 = vpop.f32.mrb[0].mxu0
    %v373 = vadd.f32 %v123, %v372
    %v374 = vpop.f32.mrb[0].mxu0
    %v375 = vadd.f32 %v127, %v374
    %376 = vmatprep.mubr.bf16.mxu0 0
    %377 = vmatmul.mubr.bf16.gmra.mrb[0].mxu0 %v158
    %v378 = vpop.f32.mrb[0].mxu0
    %v379 = vadd.f32 %v123, %v378
    %v380 = vpop.f32.mrb[0].mxu0
    %v381 = vadd.f32 %v127, %v380
    %v382 = vpop.f32.mrb[0].mxu0
    %v383 = vadd.f32 %v123, %v382
    %v384 = vpop.f32.mrb[0].mxu0
    %v385 = vadd.f32 %v127, %v384
    %386 = vmatprep.mubr.bf16.mxu0 0
    %387 = vmatmul.mubr.bf16.gmra.mrb[0].mxu0 %v159
    %v388 = vpop.f32.mrb[0].mxu0
    %v389 = vadd.f32 %v123, %v388
    %v390 = vpop.f32.mrb[0].mxu0
    %v391 = vadd.f32 %v127, %v390
    %v392 = vpop.f32.mrb[0].mxu0
    %v393 = vadd.f32 %v123, %v392
    %v394 = vpop.f32.mrb[0].mxu0
    %v395 = vadd.f32 %v127, %v394
    %396 = vdwg.mxu0
    %397 = vmatprep.subr.bf16.mxu0 %v263
    %398 = vmatpush1.bf16.msra.mxu0 %v262
    %399 = vmatprep.subr.bf16.mxu0 %v267
    %400 = vmatpush1.bf16.msra.mxu0 %v266
    %401 = vmatprep.subr.bf16.mxu0 %v271
    %402 = vmatpush1.bf16.msra.mxu0 %v270
    %403 = vmatprep.subr.bf16.mxu0 %v275
    %404 = vmatpush1.bf16.msra.mxu0 %v274
    %405 = vmatprep.subr.bf16.mxu0 %v279
    %406 = vmatpush1.bf16.msra.mxu0 %v278
    %407 = vmatprep.subr.bf16.mxu0 %v283
    %408 = vmatpush1.bf16.msra.mxu0 %v282
    %409 = vmatprep.subr.bf16.mxu0 %v287
    %410 = vmatpush1.bf16.msra.mxu0 %v286
    %411 = vmatprep.subr.bf16.mxu0 %v291
    %412 = vmatpush1.bf16.msra.mxu0 %v290
    %413 = vmatprep.subr.bf16.mxu0 0
    %414 = vmatpush1.bf16.msra.mxu0 0
    %415 = vmatprep.subr.bf16.mxu0 0
    %416 = vmatpush1.bf16.msra.mxu0 0
    %417 = vmatprep.subr.bf16.mxu0 0
    %418 = vmatpush1.bf16.msra.mxu0 0
    %419 = vmatprep.subr.bf16.mxu0 0
    %420 = vmatpush1.bf16.msra.mxu0 0
    %421 = vmatprep.subr.bf16.mxu0 0
    %422 = vmatpush1.bf16.msra.mxu0 0
    %423 = vmatprep.subr.bf16.mxu0 0
    %424 = vmatpush1.bf16.msra.mxu0 0
    %425 = vmatprep.subr.bf16.mxu0 0
    %426 = vmatpush1.bf16.msra.mxu0 0
    %427 = vmatprep.subr.bf16.mxu0 0
    %428 = vmatpush1.bf16.msra.mxu0 0
    %429 = vmatprep.mubr.bf16.mxu0 0
    %430 = vmatmul.mubr.bf16.gmra.mrb[0].mxu0 %v156
    %v431 = vpop.f32.mrb[0].mxu0
    %v432 = vadd.f32 %v131, %v431
    %v433 = vpop.f32.mrb[0].mxu0
    %v434 = vadd.f32 %v135, %v433
    %v435 = vpop.f32.mrb[0].mxu0
    %v436 = vadd.f32 %v131, %v435
    %v437 = vpop.f32.mrb[0].mxu0
    %v438 = vadd.f32 %v135, %v437
    %439 = vmatprep.mubr.bf16.mxu0 0
    %440 = vmatmul.mubr.bf16.gmra.mrb[0].mxu0 %v157
    %v441 = vpop.f32.mrb[0].mxu0
    %v442 = vadd.f32 %v131, %v441
    %v443 = vpop.f32.mrb[0].mxu0
    %v444 = vadd.f32 %v135, %v443
    %v445 = vpop.f32.mrb[0].mxu0
    %v446 = vadd.f32 %v131, %v445
    %v447 = vpop.f32.mrb[0].mxu0
    %v448 = vadd.f32 %v135, %v447
    %449 = vmatprep.mubr.bf16.mxu0 0
    %450 = vmatmul.mubr.bf16.gmra.mrb[0].mxu0 %v158
    %v451 = vpop.f32.mrb[0].mxu0
    %v452 = vadd.f32 %v131, %v451
    %v453 = vpop.f32.mrb[0].mxu0
    %v454 = vadd.f32 %v135, %v453
    %v455 = vpop.f32.mrb[0].mxu0
    %v456 = vadd.f32 %v131, %v455
    %v457 = vpop.f32.mrb[0].mxu0
    %v458 = vadd.f32 %v135, %v457
    %459 = vmatprep.mubr.bf16.mxu0 0
    %460 = vmatmul.mubr.bf16.gmra.mrb[0].mxu0 %v159
    %v461 = vpop.f32.mrb[0].mxu0
    %v462 = vadd.f32 %v131, %v461
    %v463 = vpop.f32.mrb[0].mxu0
    %v464 = vadd.f32 %v135, %v463
    %v465 = vpop.f32.mrb[0].mxu0
    %v466 = vadd.f32 %v131, %v465
    %v467 = vpop.f32.mrb[0].mxu0
    %v468 = vadd.f32 %v135, %v467
    %469 = vdwg.mxu0
    %470 = vst [vmem:[#allocation4] sm:$0xff] %v359
    %471 = vst [vmem:[#allocation4 + $0x8] sm:$0xff] %v361
    %472 = vst [vmem:[#allocation4 + $0x10] sm:$0xff] %v432
    %473 = vst [vmem:[#allocation4 + $0x18] sm:$0xff] %v434
    %474 = vst [vmem:[#allocation4 + $0x20] sm:$0xff] %v363
    %475 = vst [vmem:[#allocation4 + $0x28] sm:$0xff] %v365
    %476 = vst [vmem:[#allocation4 + $0x30] sm:$0xff] %v436
    %477 = vst [vmem:[#allocation4 + $0x38] sm:$0xff] %v438
    %478 = vst [vmem:[#allocation4 + $0x40] sm:$0xff] %v369
    %479 = vst [vmem:[#allocation4 + $0x48] sm:$0xff] %v371
    %480 = vst [vmem:[#allocation4 + $0x50] sm:$0xff] %v442
    %481 = vst [vmem:[#allocation4 + $0x58] sm:$0xff] %v444
    %482 = vst [vmem:[#allocation4 + $0x60] sm:$0xff] %v373
    %483 = vst [vmem:[#allocation4 + $0x68] sm:$0xff] %v375
    %484 = vst [vmem:[#allocation4 + $0x70] sm:$0xff] %v446
    %485 = vst [vmem:[#allocation4 + $0x78] sm:$0xff] %v448
    %486 = vst [vmem:[#allocation4 + $0x80] sm:$0xff] %v379
    %487 = vst [vmem:[#allocation4 + $0x88] sm:$0xff] %v381
    %488 = vst [vmem:[#allocation4 + $0x90] sm:$0xff] %v452
    %489 = vst [vmem:[#allocation4 + $0x98] sm:$0xff] %v454
    %490 = vst [vmem:[#allocation4 + $0xa0] sm:$0xff] %v383
    %491 = vst [vmem:[#allocation4 + $0xa8] sm:$0xff] %v385
    %492 = vst [vmem:[#allocation4 + $0xb0] sm:$0xff] %v456
    %493 = vst [vmem:[#allocation4 + $0xb8] sm:$0xff] %v458
    %494 = vst [vmem:[#allocation4 + $0xc0] sm:$0xff] %v389
    %495 = vst [vmem:[#allocation4 + $0xc8] sm:$0xff] %v391
    %496 = vst [vmem:[#allocation4 + $0xd0] sm:$0xff] %v462
    %497 = vst [vmem:[#allocation4 + $0xd8] sm:$0xff] %v464
    %498 = vst [vmem:[#allocation4 + $0xe0] sm:$0xff] %v393
    %499 = vst [vmem:[#allocation4 + $0xe8] sm:$0xff] %v395
    %500 = vst [vmem:[#allocation4 + $0xf0] sm:$0xff] %v466
    %501 = vst [vmem:[#allocation4 + $0xf8] sm:$0xff] %v468
    %v502 = vld [vmem:[#allocation10] sm:$0xff]
    %v503 = vld [vmem:[#allocation10 + $0x8] sm:$0xff]
    %v504 = vld [vmem:[#allocation10 + $0x10] sm:$0xff]
    %v505 = vld [vmem:[#allocation10 + $0x18] sm:$0xff]
    %v506 = vld [vmem:[#allocation10 + $0x20] sm:$0xff]
    %v507 = vld [vmem:[#allocation10 + $0x28] sm:$0xff]
    %v508 = vld [vmem:[#allocation10 + $0x30] sm:$0xff]
    %v509 = vld [vmem:[#allocation10 + $0x38] sm:$0xff]
    %v510 = vld [vmem:[#allocation10 + $0x40] sm:$0xff]
    %v511 = vld [vmem:[#allocation10 + $0x48] sm:$0xff]
    %v512 = vld [vmem:[#allocation10 + $0x50] sm:$0xff]
    %v513 = vld [vmem:[#allocation10 + $0x58] sm:$0xff]
    %v514 = vld [vmem:[#allocation10 + $0x60] sm:$0xff]
    %v515 = vld [vmem:[#allocation10 + $0x68] sm:$0xff]
    %v516 = vld [vmem:[#allocation10 + $0x70] sm:$0xff]
    %v517 = vld [vmem:[#allocation10 + $0x78] sm:$0xff]
    %v518 = vld [vmem:[#allocation10 + $0x80] sm:$0xff]
    %v519 = vld [vmem:[#allocation10 + $0x88] sm:$0xff]
    %v520 = vld [vmem:[#allocation10 + $0x90] sm:$0xff]
    %v521 = vld [vmem:[#allocation10 + $0x98] sm:$0xff]
    %v522 = vld [vmem:[#allocation10 + $0xa0] sm:$0xff]
    %v523 = vld [vmem:[#allocation10 + $0xa8] sm:$0xff]
    %v524 = vld [vmem:[#allocation10 + $0xb0] sm:$0xff]
    %v525 = vld [vmem:[#allocation10 + $0xb8] sm:$0xff]
    %v526 = vld [vmem:[#allocation10 + $0xc0] sm:$0xff]
    %v527 = vld [vmem:[#allocation10 + $0xc8] sm:$0xff]
    %v528 = vld [vmem:[#allocation10 + $0xd0] sm:$0xff]
    %v529 = vld [vmem:[#allocation10 + $0xd8] sm:$0xff]
    %v530 = vld [vmem:[#allocation10 + $0xe0] sm:$0xff]
    %v531 = vld [vmem:[#allocation10 + $0xe8] sm:$0xff]
    %v532 = vld [vmem:[#allocation10 + $0xf0] sm:$0xff]
    %v533 = vld [vmem:[#allocation10 + $0xf8] sm:$0xff]
    %v534 = vld [vmem:[#allocation2] sm:$0xff]
    %v535 = vld [vmem:[#allocation3] sm:$0xff]
    %v536 = vld [vmem:[#allocation4] sm:$0xff]
    %v537 = vld [vmem:[#allocation4 + $0x8] sm:$0xff]
    %v538 = vld [vmem:[#allocation4 + $0x10] sm:$0xff]
    %v539 = vld [vmem:[#allocation4 + $0x18] sm:$0xff]
    %v540 = vpack.c.bf16 %v534, %v534
    %v573 = vunpack.c.l.b16 %v502
    %v574 = vunpack.c.h.b16 %v502
    %v575 = vunpack.c.l.b16 %v503
    %v576 = vunpack.c.h.b16 %v503
    %v577 = vunpack.c.l.b16 %v504
    %v578 = vunpack.c.h.b16 %v504
    %v579 = vunpack.c.l.b16 %v505
    %v580 = vunpack.c.h.b16 %v505
    %v581 = vunpack.c.l.b16 %v506
    %v582 = vunpack.c.h.b16 %v506
    %v583 = vunpack.c.l.b16 %v507
    %v584 = vunpack.c.h.b16 %v507
    %v585 = vunpack.c.l.b16 %v508
    %v586 = vunpack.c.h.b16 %v508
    %v587 = vunpack.c.l.b16 %v509
    %v588 = vunpack.c.h.b16 %v509
    %v589 = vunpack.c.l.b16 %v510
    %v590 = vunpack.c.h.b16 %v510
    %v591 = vunpack.c.l.b16 %v511
    %v592 = vunpack.c.h.b16 %v511
    %v593 = vunpack.c.l.b16 %v512
    %v594 = vunpack.c.h.b16 %v512
    %v595 = vunpack.c.l.b16 %v513
    %v596 = vunpack.c.h.b16 %v513
    %v597 = vunpack.c.l.b16 %v514
    %v598 = vunpack.c.h.b16 %v514
    %v599 = vunpack.c.l.b16 %v515
    %v600 = vunpack.c.h.b16 %v515
    %v601 = vunpack.c.l.b16 %v516
    %v602 = vunpack.c.h.b16 %v516
    %v603 = vunpack.c.l.b16 %v517
    %v604 = vunpack.c.h.b16 %v517
    %v605 = vunpack.c.l.b16 %v518
    %v606 = vunpack.c.h.b16 %v518
    %v607 = vunpack.c.l.b16 %v519
    %v608 = vunpack.c.h.b16 %v519
    %v609 = vunpack.c.l.b16 %v520
    %v610 = vunpack.c.h.b16 %v520
    %v611 = vunpack.c.l.b16 %v521
    %v612 = vunpack.c.h.b16 %v521
    %v613 = vunpack.c.l.b16 %v522
    %v614 = vunpack.c.h.b16 %v522
    %v615 = vunpack.c.l.b16 %v523
    %v616 = vunpack.c.h.b16 %v523
    %v617 = vunpack.c.l.b16 %v524
    %v618 = vunpack.c.h.b16 %v524
    %v619 = vunpack.c.l.b16 %v525
    %v620 = vunpack.c.h.b16 %v525
    %v621 = vunpack.c.l.b16 %v526
    %v622 = vunpack.c.h.b16 %v526
    %v623 = vunpack.c.l.b16 %v527
    %v624 = vunpack.c.h.b16 %v527
    %v625 = vunpack.c.l.b16 %v528
    %v626 = vunpack.c.h.b16 %v528
    %v627 = vunpack.c.l.b16 %v529
    %v628 = vunpack.c.h.b16 %v529
    %v629 = vunpack.c.l.b16 %v530
    %v630 = vunpack.c.h.b16 %v530
    %v631 = vunpack.c.l.b16 %v531
    %v632 = vunpack.c.h.b16 %v531
    %v633 = vunpack.c.l.b16 %v532
    %v634 = vunpack.c.h.b16 %v532
    %v635 = vunpack.c.l.b16 %v533
    %v636 = vunpack.c.h.b16 %v533
    %v637 = vpack.c.b16 %v577, %v573
    %v638 = vpack.c.b16 %v578, %v574
    %v639 = vpack.c.b16 %v579, %v575
    %v640 = vpack.c.b16 %v580, %v576
    %v641 = vpack.c.b16 %v585, %v581
    %v642 = vpack.c.b16 %v586, %v582
    %v643 = vpack.c.b16 %v587, %v583
    %v644 = vpack.c.b16 %v588, %v584
    %v645 = vpack.c.b16 %v593, %v589
    %v646 = vpack.c.b16 %v594, %v590
    %v647 = vpack.c.b16 %v595, %v591
    %v648 = vpack.c.b16 %v596, %v592
    %v649 = vpack.c.b16 %v601, %v597
    %v650 = vpack.c.b16 %v602, %v598
    %v651 = vpack.c.b16 %v603, %v599
    %v652 = vpack.c.b16 %v604, %v600
    %v653 = vpack.c.b16 %v609, %v605
    %v654 = vpack.c.b16 %v610, %v606
    %v655 = vpack.c.b16 %v611, %v607
    %v656 = vpack.c.b16 %v612, %v608
    %v657 = vpack.c.b16 %v617, %v613
    %v658 = vpack.c.b16 %v618, %v614
    %v659 = vpack.c.b16 %v619, %v615
    %v660 = vpack.c.b16 %v620, %v616
    %v661 = vpack.c.b16 %v625, %v621
    %v662 = vpack.c.b16 %v626, %v622
    %v663 = vpack.c.b16 %v627, %v623
    %v664 = vpack.c.b16 %v628, %v624
    %v665 = vpack.c.b16 %v633, %v629
    %v666 = vpack.c.b16 %v634, %v630
    %v667 = vpack.c.b16 %v635, %v631
    %v668 = vpack.c.b16 %v636, %v632
    %701 = vmatprep.subr.bf16.mxu0 %v638
    %702 = vmatpush1.bf16.msra.mxu0 %v637
    %703 = vmatprep.subr.bf16.mxu0 %v642
    %704 = vmatpush1.bf16.msra.mxu0 %v641
    %705 = vmatprep.subr.bf16.mxu0 %v646
    %706 = vmatpush1.bf16.msra.mxu0 %v645
    %707 = vmatprep.subr.bf16.mxu0 %v650
    %708 = vmatpush1.bf16.msra.mxu0 %v649
    %709 = vmatprep.subr.bf16.mxu0 %v654
    %710 = vmatpush1.bf16.msra.mxu0 %v653
    %711 = vmatprep.subr.bf16.mxu0 %v658
    %712 = vmatpush1.bf16.msra.mxu0 %v657
    %713 = vmatprep.subr.bf16.mxu0 %v662
    %714 = vmatpush1.bf16.msra.mxu0 %v661
    %715 = vmatprep.subr.bf16.mxu0 %v666
    %716 = vmatpush1.bf16.msra.mxu0 %v665
    %717 = vmatprep.subr.bf16.mxu0 0
    %718 = vmatpush1.bf16.msra.mxu0 0
    %719 = vmatprep.subr.bf16.mxu0 0
    %720 = vmatpush1.bf16.msra.mxu0 0
    %721 = vmatprep.subr.bf16.mxu0 0
    %722 = vmatpush1.bf16.msra.mxu0 0
    %723 = vmatprep.subr.bf16.mxu0 0
    %724 = vmatpush1.bf16.msra.mxu0 0
    %725 = vmatprep.subr.bf16.mxu0 0
    %726 = vmatpush1.bf16.msra.mxu0 0
    %727 = vmatprep.subr.bf16.mxu0 0
    %728 = vmatpush1.bf16.msra.mxu0 0
    %729 = vmatprep.subr.bf16.mxu0 0
    %730 = vmatpush1.bf16.msra.mxu0 0
    %731 = vmatprep.subr.bf16.mxu0 0
    %732 = vmatpush1.bf16.msra.mxu0 0
    %733 = vmatprep.mubr.bf16.mxu0 0
    %734 = vmatmul.mubr.bf16.gmra.mrb[0].mxu0 %v540
    %v735 = vpop.f32.mrb[0].mxu0
    %v736 = vadd.f32 0.0, %v735
    %v737 = vpop.f32.mrb[0].mxu0
    %v738 = vadd.f32 0.0, %v737
    %v739 = vpop.f32.mrb[0].mxu0
    %v740 = vpop.f32.mrb[0].mxu0
    %741 = vdwg.mxu0
    %742 = vmatprep.subr.bf16.mxu0 %v640
    %743 = vmatpush1.bf16.msra.mxu0 %v639
    %744 = vmatprep.subr.bf16.mxu0 %v644
    %745 = vmatpush1.bf16.msra.mxu0 %v643
    %746 = vmatprep.subr.bf16.mxu0 %v648
    %747 = vmatpush1.bf16.msra.mxu0 %v647
    %748 = vmatprep.subr.bf16.mxu0 %v652
    %749 = vmatpush1.bf16.msra.mxu0 %v651
    %750 = vmatprep.subr.bf16.mxu0 %v656
    %751 = vmatpush1.bf16.msra.mxu0 %v655
    %752 = vmatprep.subr.bf16.mxu0 %v660
    %753 = vmatpush1.bf16.msra.mxu0 %v659
    %754 = vmatprep.subr.bf16.mxu0 %v664
    %755 = vmatpush1.bf16.msra.mxu0 %v663
    %756 = vmatprep.subr.bf16.mxu0 %v668
    %757 = vmatpush1.bf16.msra.mxu0 %v667
    %758 = vmatprep.subr.bf16.mxu0 0
    %759 = vmatpush1.bf16.msra.mxu0 0
    %760 = vmatprep.subr.bf16.mxu0 0
    %761 = vmatpush1.bf16.msra.mxu0 0
    %762 = vmatprep.subr.bf16.mxu0 0
    %763 = vmatpush1.bf16.msra.mxu0 0
    %764 = vmatprep.subr.bf16.mxu0 0
    %765 = vmatpush1.bf16.msra.mxu0 0
    %766 = vmatprep.subr.bf16.mxu0 0
    %767 = vmatpush1.bf16.msra.mxu0 0
    %768 = vmatprep.subr.bf16.mxu0 0
    %769 = vmatpush1.bf16.msra.mxu0 0
    %770 = vmatprep.subr.bf16.mxu0 0
    %771 = vmatpush1.bf16.msra.mxu0 0
    %772 = vmatprep.subr.bf16.mxu0 0
    %773 = vmatpush1.bf16.msra.mxu0 0
    %774 = vmatprep.mubr.bf16.mxu0 0
    %775 = vmatmul.mubr.bf16.gmra.mrb[0].mxu0 %v540
    %v776 = vpop.f32.mrb[0].mxu0
    %v777 = vadd.f32 0.0, %v776
    %v778 = vpop.f32.mrb[0].mxu0
    %v779 = vadd.f32 0.0, %v778
    %v780 = vpop.f32.mrb[0].mxu0
    %v781 = vpop.f32.mrb[0].mxu0
    %782 = vdwg.mxu0
    %v783 = vadd.f32 %v536, %v736
    %v784 = vadd.f32 %v537, %v738
    %v785 = vadd.f32 %v538, %v777
    %v786 = vadd.f32 %v539, %v779
    %v787 = vxor.u32 %v783, 2147483648
    %v788 = vxor.u32 %v784, 2147483648
    %v789 = vxor.u32 %v785, 2147483648
    %v790 = vmul.f32 %v787, 1.442695
    %v791 = vpow.pop %v790
    %v792 = vmul.f32 %v788, 1.442695
    %v793 = vpow.pop %v792
    %v794 = vmul.f32 %v789, 1.442695
    %v795 = vpow.pop %v794
    %v796 = vadd.f32 %v791, 1.0
    %v797 = vadd.f32 %v793, 1.0
    %v798 = vadd.f32 %v795, 1.0
    %v799 = vrcp.pop %v796
    %v800 = vmul.f32 1.0, %v799
    %v801 = vrcp.pop %v797
    %v802 = vmul.f32 1.0, %v801
    %v803 = vrcp.pop %v798
    %v804 = vmul.f32 1.0, %v803
    %v805 = vtanh.pop %v786
    %v806 = vmul.f32 %v802, %v535
    %v807 = vmul.f32 %v800, %v805
    %v808 = vadd.f32 %v806, %v807
    %v809 = vtanh.pop %v808
    %v810 = vmul.f32 %v804, %v809
    %v811 = vpack.c.bf16 %v810, %v810
    %812 = vst [vmem:[#allocation13] sm:$0xf] %v811
    %v813 = vld [vmem:[#allocation4 + $0x20] sm:$0xff]
    %v814 = vld [vmem:[#allocation4 + $0x28] sm:$0xff]
    %v815 = vld [vmem:[#allocation4 + $0x30] sm:$0xff]
    %v816 = vld [vmem:[#allocation4 + $0x38] sm:$0xff]
    %817 = vmatprep.subr.bf16.mxu0 %v638
    %818 = vmatpush1.bf16.msra.mxu0 %v637
    %819 = vmatprep.subr.bf16.mxu0 %v642
    %820 = vmatpush1.bf16.msra.mxu0 %v641
    %821 = vmatprep.subr.bf16.mxu0 %v646
    %822 = vmatpush1.bf16.msra.mxu0 %v645
    %823 = vmatprep.subr.bf16.mxu0 %v650
    %824 = vmatpush1.bf16.msra.mxu0 %v649
    %825 = vmatprep.subr.bf16.mxu0 %v654
    %826 = vmatpush1.bf16.msra.mxu0 %v653
    %827 = vmatprep.subr.bf16.mxu0 %v658
    %828 = vmatpush1.bf16.msra.mxu0 %v657
    %829 = vmatprep.subr.bf16.mxu0 %v662
    %830 = vmatpush1.bf16.msra.mxu0 %v661
    %831 = vmatprep.subr.bf16.mxu0 %v666
    %832 = vmatpush1.bf16.msra.mxu0 %v665
    %833 = vmatprep.subr.bf16.mxu0 0
    %834 = vmatpush1.bf16.msra.mxu0 0
    %835 = vmatprep.subr.bf16.mxu0 0
    %836 = vmatpush1.bf16.msra.mxu0 0
    %837 = vmatprep.subr.bf16.mxu0 0
    %838 = vmatpush1.bf16.msra.mxu0 0
    %839 = vmatprep.subr.bf16.mxu0 0
    %840 = vmatpush1.bf16.msra.mxu0 0
    %841 = vmatprep.subr.bf16.mxu0 0
    %842 = vmatpush1.bf16.msra.mxu0 0
    %843 = vmatprep.subr.bf16.mxu0 0
    %844 = vmatpush1.bf16.msra.mxu0 0
    %845 = vmatprep.subr.bf16.mxu0 0
    %846 = vmatpush1.bf16.msra.mxu0 0
    %847 = vmatprep.subr.bf16.mxu0 0
    %848 = vmatpush1.bf16.msra.mxu0 0
    %849 = vmatprep.mubr.bf16.mxu0 0
    %850 = vmatmul.mubr.bf16.gmra.mrb[0].mxu0 %v811
    %v851 = vpop.f32.mrb[0].mxu0
    %v852 = vadd.f32 0.0, %v851
    %v853 = vpop.f32.mrb[0].mxu0
    %v854 = vadd.f32 0.0, %v853
    %v855 = vpop.f32.mrb[0].mxu0
    %v856 = vpop.f32.mrb[0].mxu0
    %857 = vdwg.mxu0
    %858 = vmatprep.subr.bf16.mxu0 %v640
    %859 = vmatpush1.bf16.msra.mxu0 %v639
    %860 = vmatprep.subr.bf16.mxu0 %v644
    %861 = vmatpush1.bf16.msra.mxu0 %v643
    %862 = vmatprep.subr.bf16.mxu0 %v648
    %863 = vmatpush1.bf16.msra.mxu0 %v647
    %864 = vmatprep.subr.bf16.mxu0 %v652
    %865 = vmatpush1.bf16.msra.mxu0 %v651
    %866 = vmatprep.subr.bf16.mxu0 %v656
    %867 = vmatpush1.bf16.msra.mxu0 %v655
    %868 = vmatprep.subr.bf16.mxu0 %v660
    %869 = vmatpush1.bf16.msra.mxu0 %v659
    %870 = vmatprep.subr.bf16.mxu0 %v664
    %871 = vmatpush1.bf16.msra.mxu0 %v663
    %872 = vmatprep.subr.bf16.mxu0 %v668
    %873 = vmatpush1.bf16.msra.mxu0 %v667
    %874 = vmatprep.subr.bf16.mxu0 0
    %875 = vmatpush1.bf16.msra.mxu0 0
    %876 = vmatprep.subr.bf16.mxu0 0
    %877 = vmatpush1.bf16.msra.mxu0 0
    %878 = vmatprep.subr.bf16.mxu0 0
    %879 = vmatpush1.bf16.msra.mxu0 0
    %880 = vmatprep.subr.bf16.mxu0 0
    %881 = vmatpush1.bf16.msra.mxu0 0
    %882 = vmatprep.subr.bf16.mxu0 0
    %883 = vmatpush1.bf16.msra.mxu0 0
    %884 = vmatprep.subr.bf16.mxu0 0
    %885 = vmatpush1.bf16.msra.mxu0 0
    %886 = vmatprep.subr.bf16.mxu0 0
    %887 = vmatpush1.bf16.msra.mxu0 0
    %888 = vmatprep.subr.bf16.mxu0 0
    %889 = vmatpush1.bf16.msra.mxu0 0
    %890 = vmatprep.mubr.bf16.mxu0 0
    %891 = vmatmul.mubr.bf16.gmra.mrb[0].mxu0 %v811
    %v892 = vpop.f32.mrb[0].mxu0
    %v893 = vadd.f32 0.0, %v892
    %v894 = vpop.f32.mrb[0].mxu0
    %v895 = vadd.f32 0.0, %v894
    %v896 = vpop.f32.mrb[0].mxu0
    %v897 = vpop.f32.mrb[0].mxu0
    %898 = vdwg.mxu0
    %v899 = vadd.f32 %v813, %v852
    %v900 = vadd.f32 %v814, %v854
    %v901 = vadd.f32 %v815, %v893
    %v902 = vadd.f32 %v816, %v895
    %v903 = vxor.u32 %v899, 2147483648
    %v904 = vxor.u32 %v900, 2147483648
    %v905 = vxor.u32 %v901, 2147483648
    %v906 = vmul.f32 %v903, 1.442695
    %v907 = vpow.pop %v906
    %v908 = vmul.f32 %v904, 1.442695
    %v909 = vpow.pop %v908
    %v910 = vmul.f32 %v905, 1.442695
    %v911 = vpow.pop %v910
    %v912 = vadd.f32 %v907, 1.0
    %v913 = vadd.f32 %v909, 1.0
    %v914 = vadd.f32 %v911, 1.0
    %v915 = vrcp.pop %v912
    %v916 = vmul.f32 1.0, %v915
    %v917 = vrcp.pop %v913
    %v918 = vmul.f32 1.0, %v917
    %v919 = vrcp.pop %v914
    %v920 = vmul.f32 1.0, %v919
    %v921 = vtanh.pop %v902
    %v922 = vmul.f32 %v918, %v808
    %v923 = vmul.f32 %v916, %v921
    %v924 = vadd.f32 %v922, %v923
    %v925 = vtanh.pop %v924
    %v926 = vmul.f32 %v920, %v925
    %v927 = vpack.c.bf16 %v926, %v926
    %928 = vst [vmem:[#allocation13 + $0x4] sm:$0xf] %v927
    %v929 = vld [vmem:[#allocation4 + $0x40] sm:$0xff]
    %v930 = vld [vmem:[#allocation4 + $0x48] sm:$0xff]
    %v931 = vld [vmem:[#allocation4 + $0x50] sm:$0xff]
    %v932 = vld [vmem:[#allocation4 + $0x58] sm:$0xff]
    %933 = vmatprep.subr.bf16.mxu0 %v638
    %934 = vmatpush1.bf16.msra.mxu0 %v637
    %935 = vmatprep.subr.bf16.mxu0 %v642
    %936 = vmatpush1.bf16.msra.mxu0 %v641
    %937 = vmatprep.subr.bf16.mxu0 %v646
    %938 = vmatpush1.bf16.msra.mxu0 %v645
    %939 = vmatprep.subr.bf16.mxu0 %v650
    %940 = vmatpush1.bf16.msra.mxu0 %v649
    %941 = vmatprep.subr.bf16.mxu0 %v654
    %942 = vmatpush1.bf16.msra.mxu0 %v653
    %943 = vmatprep.subr.bf16.mxu0 %v658
    %944 = vmatpush1.bf16.msra.mxu0 %v657
    %945 = vmatprep.subr.bf16.mxu0 %v662
    %946 = vmatpush1.bf16.msra.mxu0 %v661
    %947 = vmatprep.subr.bf16.mxu0 %v666
    %948 = vmatpush1.bf16.msra.mxu0 %v665
    %949 = vmatprep.subr.bf16.mxu0 0
    %950 = vmatpush1.bf16.msra.mxu0 0
    %951 = vmatprep.subr.bf16.mxu0 0
    %952 = vmatpush1.bf16.msra.mxu0 0
    %953 = vmatprep.subr.bf16.mxu0 0
    %954 = vmatpush1.bf16.msra.mxu0 0
    %955 = vmatprep.subr.bf16.mxu0 0
    %956 = vmatpush1.bf16.msra.mxu0 0
    %957 = vmatprep.subr.bf16.mxu0 0
    %958 = vmatpush1.bf16.msra.mxu0 0
    %959 = vmatprep.subr.bf16.mxu0 0
    %960 = vmatpush1.bf16.msra.mxu0 0
    %961 = vmatprep.subr.bf16.mxu0 0
    %962 = vmatpush1.bf16.msra.mxu0 0
    %963 = vmatprep.subr.bf16.mxu0 0
    %964 = vmatpush1.bf16.msra.mxu0 0
    %965 = vmatprep.mubr.bf16.mxu0 0
    %966 = vmatmul.mubr.bf16.gmra.mrb[0].mxu0 %v927
    %v967 = vpop.f32.mrb[0].mxu0
    %v968 = vadd.f32 0.0, %v967
    %v969 = vpop.f32.mrb[0].mxu0
    %v970 = vadd.f32 0.0, %v969
    %v971 = vpop.f32.mrb[0].mxu0
    %v972 = vpop.f32.mrb[0].mxu0
    %973 = vdwg.mxu0
    %974 = vmatprep.subr.bf16.mxu0 %v640
    %975 = vmatpush1.bf16.msra.mxu0 %v639
    %976 = vmatprep.subr.bf16.mxu0 %v644
    %977 = vmatpush1.bf16.msra.mxu0 %v643
    %978 = vmatprep.subr.bf16.mxu0 %v648
    %979 = vmatpush1.bf16.msra.mxu0 %v647
    %980 = vmatprep.subr.bf16.mxu0 %v652
    %981 = vmatpush1.bf16.msra.mxu0 %v651
    %982 = vmatprep.subr.bf16.mxu0 %v656
    %983 = vmatpush1.bf16.msra.mxu0 %v655
    %984 = vmatprep.subr.bf16.mxu0 %v660
    %985 = vmatpush1.bf16.msra.mxu0 %v659
    %986 = vmatprep.subr.bf16.mxu0 %v664
    %987 = vmatpush1.bf16.msra.mxu0 %v663
    %988 = vmatprep.subr.bf16.mxu0 %v668
    %989 = vmatpush1.bf16.msra.mxu0 %v667
    %990 = vmatprep.subr.bf16.mxu0 0
    %991 = vmatpush1.bf16.msra.mxu0 0
    %992 = vmatprep.subr.bf16.mxu0 0
    %993 = vmatpush1.bf16.msra.mxu0 0
    %994 = vmatprep.subr.bf16.mxu0 0
    %995 = vmatpush1.bf16.msra.mxu0 0
    %996 = vmatprep.subr.bf16.mxu0 0
    %997 = vmatpush1.bf16.msra.mxu0 0
    %998 = vmatprep.subr.bf16.mxu0 0
    %999 = vmatpush1.bf16.msra.mxu0 0
    %1000 = vmatprep.subr.bf16.mxu0 0
    %1001 = vmatpush1.bf16.msra.mxu0 0
    %1002 = vmatprep.subr.bf16.mxu0 0
    %1003 = vmatpush1.bf16.msra.mxu0 0
    %1004 = vmatprep.subr.bf16.mxu0 0
    %1005 = vmatpush1.bf16.msra.mxu0 0
    %1006 = vmatprep.mubr.bf16.mxu0 0
    %1007 = vmatmul.mubr.bf16.gmra.mrb[0].mxu0 %v927
    %v1008 = vpop.f32.mrb[0].mxu0
    %v1009 = vadd.f32 0.0, %v1008
    %v1010 = vpop.f32.mrb[0].mxu0
    %v1011 = vadd.f32 0.0, %v1010
    %v1012 = vpop.f32.mrb[0].mxu0
    %v1013 = vpop.f32.mrb[0].mxu0
    %1014 = vdwg.mxu0
    %v1015 = vadd.f32 %v929, %v968
    %v1016 = vadd.f32 %v930, %v970
    %v1017 = vadd.f32 %v931, %v1009
    %v1018 = vadd.f32 %v932, %v1011
    %v1019 = vxor.u32 %v1015, 2147483648
    %v1020 = vxor.u32 %v1016, 2147483648
    %v1021 = vxor.u32 %v1017, 2147483648
    %v1022 = vmul.f32 %v1019, 1.442695
    %v1023 = vpow.pop %v1022
    %v1024 = vmul.f32 %v1020, 1.442695
    %v1025 = vpow.pop %v1024
    %v1026 = vmul.f32 %v1021, 1.442695
    %v1027 = vpow.pop %v1026
    %v1028 = vadd.f32 %v1023, 1.0
    %v1029 = vadd.f32 %v1025, 1.0
    %v1030 = vadd.f32 %v1027, 1.0
    %v1031 = vrcp.pop %v1028
    %v1032 = vmul.f32 1.0, %v1031
    %v1033 = vrcp.pop %v1029
    %v1034 = vmul.f32 1.0, %v1033
    %v1035 = vrcp.pop %v1030
    %v1036 = vmul.f32 1.0, %v1035
    %v1037 = vtanh.pop %v1018
    %v1038 = vmul.f32 %v1034, %v924
    %v1039 = vmul.f32 %v1032, %v1037
    %v1040 = vadd.f32 %v1038, %v1039
    %v1041 = vtanh.pop %v1040
    %v1042 = vmul.f32 %v1036, %v1041
    %v1043 = vpack.c.bf16 %v1042, %v1042
    %1044 = vst [vmem:[#allocation13 + $0x8] sm:$0xf] %v1043
    %v1045 = vld [vmem:[#allocation4 + $0x60] sm:$0xff]
    %v1046 = vld [vmem:[#allocation4 + $0x68] sm:$0xff]
    %v1047 = vld [vmem:[#allocation4 + $0x70] sm:$0xff]
    %v1048 = vld [vmem:[#allocation4 + $0x78] sm:$0xff]
    %1049 = vmatprep.subr.bf16.mxu0 %v638
    %1050 = vmatpush1.bf16.msra.mxu0 %v637
    %1051 = vmatprep.subr.bf16.mxu0 %v642
    %1052 = vmatpush1.bf16.msra.mxu0 %v641
    %1053 = vmatprep.subr.bf16.mxu0 %v646
    %1054 = vmatpush1.bf16.msra.mxu0 %v645
    %1055 = vmatprep.subr.bf16.mxu0 %v650
    %1056 = vmatpush1.bf16.msra.mxu0 %v649
    %1057 = vmatprep.subr.bf16.mxu0 %v654
    %1058 = vmatpush1.bf16.msra.mxu0 %v653
    %1059 = vmatprep.subr.bf16.mxu0 %v658
    %1060 = vmatpush1.bf16.msra.mxu0 %v657
    %1061 = vmatprep.subr.bf16.mxu0 %v662
    %1062 = vmatpush1.bf16.msra.mxu0 %v661
    %1063 = vmatprep.subr.bf16.mxu0 %v666
    %1064 = vmatpush1.bf16.msra.mxu0 %v665
    %1065 = vmatprep.subr.bf16.mxu0 0
    %1066 = vmatpush1.bf16.msra.mxu0 0
    %1067 = vmatprep.subr.bf16.mxu0 0
    %1068 = vmatpush1.bf16.msra.mxu0 0
    %1069 = vmatprep.subr.bf16.mxu0 0
    %1070 = vmatpush1.bf16.msra.mxu0 0
    %1071 = vmatprep.subr.bf16.mxu0 0
    %1072 = vmatpush1.bf16.msra.mxu0 0
    %1073 = vmatprep.subr.bf16.mxu0 0
    %1074 = vmatpush1.bf16.msra.mxu0 0
    %1075 = vmatprep.subr.bf16.mxu0 0
    %1076 = vmatpush1.bf16.msra.mxu0 0
    %1077 = vmatprep.subr.bf16.mxu0 0
    %1078 = vmatpush1.bf16.msra.mxu0 0
    %1079 = vmatprep.subr.bf16.mxu0 0
    %1080 = vmatpush1.bf16.msra.mxu0 0
    %1081 = vmatprep.mubr.bf16.mxu0 0
    %1082 = vmatmul.mubr.bf16.gmra.mrb[0].mxu0 %v1043
    %v1083 = vpop.f32.mrb[0].mxu0
    %v1084 = vadd.f32 0.0, %v1083
    %v1085 = vpop.f32.mrb[0].mxu0
    %v1086 = vadd.f32 0.0, %v1085
    %v1087 = vpop.f32.mrb[0].mxu0
    %v1088 = vpop.f32.mrb[0].mxu0
    %1089 = vdwg.mxu0
    %1090 = vmatprep.subr.bf16.mxu0 %v640
    %1091 = vmatpush1.bf16.msra.mxu0 %v639
    %1092 = vmatprep.subr.bf16.mxu0 %v644
    %1093 = vmatpush1.bf16.msra.mxu0 %v643
    %1094 = vmatprep.subr.bf16.mxu0 %v648
    %1095 = vmatpush1.bf16.msra.mxu0 %v647
    %1096 = vmatprep.subr.bf16.mxu0 %v652
    %1097 = vmatpush1.bf16.msra.mxu0 %v651
    %1098 = vmatprep.subr.bf16.mxu0 %v656
    %1099 = vmatpush1.bf16.msra.mxu0 %v655
    %1100 = vmatprep.subr.bf16.mxu0 %v660
    %1101 = vmatpush1.bf16.msra.mxu0 %v659
    %1102 = vmatprep.subr.bf16.mxu0 %v664
    %1103 = vmatpush1.bf16.msra.mxu0 %v663
    %1104 = vmatprep.subr.bf16.mxu0 %v668
    %1105 = vmatpush1.bf16.msra.mxu0 %v667
    %1106 = vmatprep.subr.bf16.mxu0 0
    %1107 = vmatpush1.bf16.msra.mxu0 0
    %1108 = vmatprep.subr.bf16.mxu0 0
    %1109 = vmatpush1.bf16.msra.mxu0 0
    %1110 = vmatprep.subr.bf16.mxu0 0
    %1111 = vmatpush1.bf16.msra.mxu0 0
    %1112 = vmatprep.subr.bf16.mxu0 0
    %1113 = vmatpush1.bf16.msra.mxu0 0
    %1114 = vmatprep.subr.bf16.mxu0 0
    %1115 = vmatpush1.bf16.msra.mxu0 0
    %1116 = vmatprep.subr.bf16.mxu0 0
    %1117 = vmatpush1.bf16.msra.mxu0 0
    %1118 = vmatprep.subr.bf16.mxu0 0
    %1119 = vmatpush1.bf16.msra.mxu0 0
    %1120 = vmatprep.subr.bf16.mxu0 0
    %1121 = vmatpush1.bf16.msra.mxu0 0
    %1122 = vmatprep.mubr.bf16.mxu0 0
    %1123 = vmatmul.mubr.bf16.gmra.mrb[0].mxu0 %v1043
    %v1124 = vpop.f32.mrb[0].mxu0
    %v1125 = vadd.f32 0.0, %v1124
    %v1126 = vpop.f32.mrb[0].mxu0
    %v1127 = vadd.f32 0.0, %v1126
    %v1128 = vpop.f32.mrb[0].mxu0
    %v1129 = vpop.f32.mrb[0].mxu0
    %1130 = vdwg.mxu0
    %v1131 = vadd.f32 %v1045, %v1084
    %v1132 = vadd.f32 %v1046, %v1086
    %v1133 = vadd.f32 %v1047, %v1125
    %v1134 = vadd.f32 %v1048, %v1127
    %v1135 = vxor.u32 %v1131, 2147483648
    %v1136 = vxor.u32 %v1132, 2147483648
    %v1137 = vxor.u32 %v1133, 2147483648
    %v1138 = vmul.f32 %v1135, 1.442695
    %v1139 = vpow.pop %v1138
    %v1140 = vmul.f32 %v1136, 1.442695
    %v1141 = vpow.pop %v1140
    %v1142 = vmul.f32 %v1137, 1.442695
    %v1143 = vpow.pop %v1142
    %v1144 = vadd.f32 %v1139, 1.0
    %v1145 = vadd.f32 %v1141, 1.0
    %v1146 = vadd.f32 %v1143, 1.0
    %v1147 = vrcp.pop %v1144
    %v1148 = vmul.f32 1.0, %v1147
    %v1149 = vrcp.pop %v1145
    %v1150 = vmul.f32 1.0, %v1149
    %v1151 = vrcp.pop %v1146
    %v1152 = vmul.f32 1.0, %v1151
    %v1153 = vtanh.pop %v1134
    %v1154 = vmul.f32 %v1150, %v1040
    %v1155 = vmul.f32 %v1148, %v1153
    %v1156 = vadd.f32 %v1154, %v1155
    %v1157 = vtanh.pop %v1156
    %v1158 = vmul.f32 %v1152, %v1157
    %v1159 = vpack.c.bf16 %v1158, %v1158
    %1160 = vst [vmem:[#allocation13 + $0xc] sm:$0xf] %v1159
    %v1161 = vld [vmem:[#allocation4 + $0x80] sm:$0xff]
    %v1162 = vld [vmem:[#allocation4 + $0x88] sm:$0xff]
    %v1163 = vld [vmem:[#allocation4 + $0x90] sm:$0xff]
    %v1164 = vld [vmem:[#allocation4 + $0x98] sm:$0xff]
    %1165 = vmatprep.subr.bf16.mxu0 %v638
    %1166 = vmatpush1.bf16.msra.mxu0 %v637
    %1167 = vmatprep.subr.bf16.mxu0 %v642
    %1168 = vmatpush1.bf16.msra.mxu0 %v641
    %1169 = vmatprep.subr.bf16.mxu0 %v646
    %1170 = vmatpush1.bf16.msra.mxu0 %v645
    %1171 = vmatprep.subr.bf16.mxu0 %v650
    %1172 = vmatpush1.bf16.msra.mxu0 %v649
    %1173 = vmatprep.subr.bf16.mxu0 %v654
    %1174 = vmatpush1.bf16.msra.mxu0 %v653
    %1175 = vmatprep.subr.bf16.mxu0 %v658
    %1176 = vmatpush1.bf16.msra.mxu0 %v657
    %1177 = vmatprep.subr.bf16.mxu0 %v662
    %1178 = vmatpush1.bf16.msra.mxu0 %v661
    %1179 = vmatprep.subr.bf16.mxu0 %v666
    %1180 = vmatpush1.bf16.msra.mxu0 %v665
    %1181 = vmatprep.subr.bf16.mxu0 0
    %1182 = vmatpush1.bf16.msra.mxu0 0
    %1183 = vmatprep.subr.bf16.mxu0 0
    %1184 = vmatpush1.bf16.msra.mxu0 0
    %1185 = vmatprep.subr.bf16.mxu0 0
    %1186 = vmatpush1.bf16.msra.mxu0 0
    %1187 = vmatprep.subr.bf16.mxu0 0
    %1188 = vmatpush1.bf16.msra.mxu0 0
    %1189 = vmatprep.subr.bf16.mxu0 0
    %1190 = vmatpush1.bf16.msra.mxu0 0
    %1191 = vmatprep.subr.bf16.mxu0 0
    %1192 = vmatpush1.bf16.msra.mxu0 0
    %1193 = vmatprep.subr.bf16.mxu0 0
    %1194 = vmatpush1.bf16.msra.mxu0 0
    %1195 = vmatprep.subr.bf16.mxu0 0
    %1196 = vmatpush1.bf16.msra.mxu0 0
    %1197 = vmatprep.mubr.bf16.mxu0 0
    %1198 = vmatmul.mubr.bf16.gmra.mrb[0].mxu0 %v1159
    %v1199 = vpop.f32.mrb[0].mxu0
    %v1200 = vadd.f32 0.0, %v1199
    %v1201 = vpop.f32.mrb[0].mxu0
    %v1202 = vadd.f32 0.0, %v1201
    %v1203 = vpop.f32.mrb[0].mxu0
    %v1204 = vpop.f32.mrb[0].mxu0
    %1205 = vdwg.mxu0
    %1206 = vmatprep.subr.bf16.mxu0 %v640
    %1207 = vmatpush1.bf16.msra.mxu0 %v639
    %1208 = vmatprep.subr.bf16.mxu0 %v644
    %1209 = vmatpush1.bf16.msra.mxu0 %v643
    %1210 = vmatprep.subr.bf16.mxu0 %v648
    %1211 = vmatpush1.bf16.msra.mxu0 %v647
    %1212 = vmatprep.subr.bf16.mxu0 %v652
    %1213 = vmatpush1.bf16.msra.mxu0 %v651
    %1214 = vmatprep.subr.bf16.mxu0 %v656
    %1215 = vmatpush1.bf16.msra.mxu0 %v655
    %1216 = vmatprep.subr.bf16.mxu0 %v660
    %1217 = vmatpush1.bf16.msra.mxu0 %v659
    %1218 = vmatprep.subr.bf16.mxu0 %v664
    %1219 = vmatpush1.bf16.msra.mxu0 %v663
    %1220 = vmatprep.subr.bf16.mxu0 %v668
    %1221 = vmatpush1.bf16.msra.mxu0 %v667
    %1222 = vmatprep.subr.bf16.mxu0 0
    %1223 = vmatpush1.bf16.msra.mxu0 0
    %1224 = vmatprep.subr.bf16.mxu0 0
    %1225 = vmatpush1.bf16.msra.mxu0 0
    %1226 = vmatprep.subr.bf16.mxu0 0
    %1227 = vmatpush1.bf16.msra.mxu0 0
    %1228 = vmatprep.subr.bf16.mxu0 0
    %1229 = vmatpush1.bf16.msra.mxu0 0
    %1230 = vmatprep.subr.bf16.mxu0 0
    %1231 = vmatpush1.bf16.msra.mxu0 0
    %1232 = vmatprep.subr.bf16.mxu0 0
    %1233 = vmatpush1.bf16.msra.mxu0 0
    %1234 = vmatprep.subr.bf16.mxu0 0
    %1235 = vmatpush1.bf16.msra.mxu0 0
    %1236 = vmatprep.subr.bf16.mxu0 0
    %1237 = vmatpush1.bf16.msra.mxu0 0
    %1238 = vmatprep.mubr.bf16.mxu0 0
    %1239 = vmatmul.mubr.bf16.gmra.mrb[0].mxu0 %v1159
    %v1240 = vpop.f32.mrb[0].mxu0
    %v1241 = vadd.f32 0.0, %v1240
    %v1242 = vpop.f32.mrb[0].mxu0
    %v1243 = vadd.f32 0.0, %v1242
    %v1244 = vpop.f32.mrb[0].mxu0
    %v1245 = vpop.f32.mrb[0].mxu0
    %1246 = vdwg.mxu0
    %v1247 = vadd.f32 %v1161, %v1200
    %v1248 = vadd.f32 %v1162, %v1202
    %v1249 = vadd.f32 %v1163, %v1241
    %v1250 = vadd.f32 %v1164, %v1243
    %v1251 = vxor.u32 %v1247, 2147483648
    %v1252 = vxor.u32 %v1248, 2147483648
    %v1253 = vxor.u32 %v1249, 2147483648
    %v1254 = vmul.f32 %v1251, 1.442695
    %v1255 = vpow.pop %v1254
    %v1256 = vmul.f32 %v1252, 1.442695
    %v1257 = vpow.pop %v1256
    %v1258 = vmul.f32 %v1253, 1.442695
    %v1259 = vpow.pop %v1258
    %v1260 = vadd.f32 %v1255, 1.0
    %v1261 = vadd.f32 %v1257, 1.0
    %v1262 = vadd.f32 %v1259, 1.0
    %v1263 = vrcp.pop %v1260
    %v1264 = vmul.f32 1.0, %v1263
    %v1265 = vrcp.pop %v1261
    %v1266 = vmul.f32 1.0, %v1265
    %v1267 = vrcp.pop %v1262
    %v1268 = vmul.f32 1.0, %v1267
    %v1269 = vtanh.pop %v1250
    %v1270 = vmul.f32 %v1266, %v1156
    %v1271 = vmul.f32 %v1264, %v1269
    %v1272 = vadd.f32 %v1270, %v1271
    %v1273 = vtanh.pop %v1272
    %v1274 = vmul.f32 %v1268, %v1273
    %v1275 = vpack.c.bf16 %v1274, %v1274
    %1276 = vst [vmem:[#allocation13 + $0x10] sm:$0xf] %v1275
    %v1277 = vld [vmem:[#allocation4 + $0xa0] sm:$0xff]
    %v1278 = vld [vmem:[#allocation4 + $0xa8] sm:$0xff]
    %v1279 = vld [vmem:[#allocation4 + $0xb0] sm:$0xff]
    %v1280 = vld [vmem:[#allocation4 + $0xb8] sm:$0xff]
    %1281 = vmatprep.subr.bf16.mxu0 %v638
    %1282 = vmatpush1.bf16.msra.mxu0 %v637
    %1283 = vmatprep.subr.bf16.mxu0 %v642
    %1284 = vmatpush1.bf16.msra.mxu0 %v641
    %1285 = vmatprep.subr.bf16.mxu0 %v646
    %1286 = vmatpush1.bf16.msra.mxu0 %v645
    %1287 = vmatprep.subr.bf16.mxu0 %v650
    %1288 = vmatpush1.bf16.msra.mxu0 %v649
    %1289 = vmatprep.subr.bf16.mxu0 %v654
    %1290 = vmatpush1.bf16.msra.mxu0 %v653
    %1291 = vmatprep.subr.bf16.mxu0 %v658
    %1292 = vmatpush1.bf16.msra.mxu0 %v657
    %1293 = vmatprep.subr.bf16.mxu0 %v662
    %1294 = vmatpush1.bf16.msra.mxu0 %v661
    %1295 = vmatprep.subr.bf16.mxu0 %v666
    %1296 = vmatpush1.bf16.msra.mxu0 %v665
    %1297 = vmatprep.subr.bf16.mxu0 0
    %1298 = vmatpush1.bf16.msra.mxu0 0
    %1299 = vmatprep.subr.bf16.mxu0 0
    %1300 = vmatpush1.bf16.msra.mxu0 0
    %1301 = vmatprep.subr.bf16.mxu0 0
    %1302 = vmatpush1.bf16.msra.mxu0 0
    %1303 = vmatprep.subr.bf16.mxu0 0
    %1304 = vmatpush1.bf16.msra.mxu0 0
    %1305 = vmatprep.subr.bf16.mxu0 0
    %1306 = vmatpush1.bf16.msra.mxu0 0
    %1307 = vmatprep.subr.bf16.mxu0 0
    %1308 = vmatpush1.bf16.msra.mxu0 0
    %1309 = vmatprep.subr.bf16.mxu0 0
    %1310 = vmatpush1.bf16.msra.mxu0 0
    %1311 = vmatprep.subr.bf16.mxu0 0
    %1312 = vmatpush1.bf16.msra.mxu0 0
    %1313 = vmatprep.mubr.bf16.mxu0 0
    %1314 = vmatmul.mubr.bf16.gmra.mrb[0].mxu0 %v1275
    %v1315 = vpop.f32.mrb[0].mxu0
    %v1316 = vadd.f32 0.0, %v1315
    %v1317 = vpop.f32.mrb[0].mxu0
    %v1318 = vadd.f32 0.0, %v1317
    %v1319 = vpop.f32.mrb[0].mxu0
    %v1320 = vpop.f32.mrb[0].mxu0
    %1321 = vdwg.mxu0
    %1322 = vmatprep.subr.bf16.mxu0 %v640
    %1323 = vmatpush1.bf16.msra.mxu0 %v639
    %1324 = vmatprep.subr.bf16.mxu0 %v644
    %1325 = vmatpush1.bf16.msra.mxu0 %v643
    %1326 = vmatprep.subr.bf16.mxu0 %v648
    %1327 = vmatpush1.bf16.msra.mxu0 %v647
    %1328 = vmatprep.subr.bf16.mxu0 %v652
    %1329 = vmatpush1.bf16.msra.mxu0 %v651
    %1330 = vmatprep.subr.bf16.mxu0 %v656
    %1331 = vmatpush1.bf16.msra.mxu0 %v655
    %1332 = vmatprep.subr.bf16.mxu0 %v660
    %1333 = vmatpush1.bf16.msra.mxu0 %v659
    %1334 = vmatprep.subr.bf16.mxu0 %v664
    %1335 = vmatpush1.bf16.msra.mxu0 %v663
    %1336 = vmatprep.subr.bf16.mxu0 %v668
    %1337 = vmatpush1.bf16.msra.mxu0 %v667
    %1338 = vmatprep.subr.bf16.mxu0 0
    %1339 = vmatpush1.bf16.msra.mxu0 0
    %1340 = vmatprep.subr.bf16.mxu0 0
    %1341 = vmatpush1.bf16.msra.mxu0 0
    %1342 = vmatprep.subr.bf16.mxu0 0
    %1343 = vmatpush1.bf16.msra.mxu0 0
    %1344 = vmatprep.subr.bf16.mxu0 0
    %1345 = vmatpush1.bf16.msra.mxu0 0
    %1346 = vmatprep.subr.bf16.mxu0 0
    %1347 = vmatpush1.bf16.msra.mxu0 0
    %1348 = vmatprep.subr.bf16.mxu0 0
    %1349 = vmatpush1.bf16.msra.mxu0 0
    %1350 = vmatprep.subr.bf16.mxu0 0
    %1351 = vmatpush1.bf16.msra.mxu0 0
    %1352 = vmatprep.subr.bf16.mxu0 0
    %1353 = vmatpush1.bf16.msra.mxu0 0
    %1354 = vmatprep.mubr.bf16.mxu0 0
    %1355 = vmatmul.mubr.bf16.gmra.mrb[0].mxu0 %v1275
    %v1356 = vpop.f32.mrb[0].mxu0
    %v1357 = vadd.f32 0.0, %v1356
    %v1358 = vpop.f32.mrb[0].mxu0
    %v1359 = vadd.f32 0.0, %v1358
    %v1360 = vpop.f32.mrb[0].mxu0
    %v1361 = vpop.f32.mrb[0].mxu0
    %1362 = vdwg.mxu0
    %v1363 = vadd.f32 %v1277, %v1316
    %v1364 = vadd.f32 %v1278, %v1318
    %v1365 = vadd.f32 %v1279, %v1357
    %v1366 = vadd.f32 %v1280, %v1359
    %v1367 = vxor.u32 %v1363, 2147483648
    %v1368 = vxor.u32 %v1364, 2147483648
    %v1369 = vxor.u32 %v1365, 2147483648
    %v1370 = vmul.f32 %v1367, 1.442695
    %v1371 = vpow.pop %v1370
    %v1372 = vmul.f32 %v1368, 1.442695
    %v1373 = vpow.pop %v1372
    %v1374 = vmul.f32 %v1369, 1.442695
    %v1375 = vpow.pop %v1374
    %v1376 = vadd.f32 %v1371, 1.0
    %v1377 = vadd.f32 %v1373, 1.0
    %v1378 = vadd.f32 %v1375, 1.0
    %v1379 = vrcp.pop %v1376
    %v1380 = vmul.f32 1.0, %v1379
    %v1381 = vrcp.pop %v1377
    %v1382 = vmul.f32 1.0, %v1381
    %v1383 = vrcp.pop %v1378
    %v1384 = vmul.f32 1.0, %v1383
    %v1385 = vtanh.pop %v1366
    %v1386 = vmul.f32 %v1382, %v1272
    %v1387 = vmul.f32 %v1380, %v1385
    %v1388 = vadd.f32 %v1386, %v1387
    %v1389 = vtanh.pop %v1388
    %v1390 = vmul.f32 %v1384, %v1389
    %v1391 = vpack.c.bf16 %v1390, %v1390
    %1392 = vst [vmem:[#allocation13 + $0x14] sm:$0xf] %v1391
    %v1393 = vld [vmem:[#allocation4 + $0xc0] sm:$0xff]
    %v1394 = vld [vmem:[#allocation4 + $0xc8] sm:$0xff]
    %v1395 = vld [vmem:[#allocation4 + $0xd0] sm:$0xff]
    %v1396 = vld [vmem:[#allocation4 + $0xd8] sm:$0xff]
    %1397 = vmatprep.subr.bf16.mxu0 %v638
    %1398 = vmatpush1.bf16.msra.mxu0 %v637
    %1399 = vmatprep.subr.bf16.mxu0 %v642
    %1400 = vmatpush1.bf16.msra.mxu0 %v641
    %1401 = vmatprep.subr.bf16.mxu0 %v646
    %1402 = vmatpush1.bf16.msra.mxu0 %v645
    %1403 = vmatprep.subr.bf16.mxu0 %v650
    %1404 = vmatpush1.bf16.msra.mxu0 %v649
    %1405 = vmatprep.subr.bf16.mxu0 %v654
    %1406 = vmatpush1.bf16.msra.mxu0 %v653
    %1407 = vmatprep.subr.bf16.mxu0 %v658
    %1408 = vmatpush1.bf16.msra.mxu0 %v657
    %1409 = vmatprep.subr.bf16.mxu0 %v662
    %1410 = vmatpush1.bf16.msra.mxu0 %v661
    %1411 = vmatprep.subr.bf16.mxu0 %v666
    %1412 = vmatpush1.bf16.msra.mxu0 %v665
    %1413 = vmatprep.subr.bf16.mxu0 0
    %1414 = vmatpush1.bf16.msra.mxu0 0
    %1415 = vmatprep.subr.bf16.mxu0 0
    %1416 = vmatpush1.bf16.msra.mxu0 0
    %1417 = vmatprep.subr.bf16.mxu0 0
    %1418 = vmatpush1.bf16.msra.mxu0 0
    %1419 = vmatprep.subr.bf16.mxu0 0
    %1420 = vmatpush1.bf16.msra.mxu0 0
    %1421 = vmatprep.subr.bf16.mxu0 0
    %1422 = vmatpush1.bf16.msra.mxu0 0
    %1423 = vmatprep.subr.bf16.mxu0 0
    %1424 = vmatpush1.bf16.msra.mxu0 0
    %1425 = vmatprep.subr.bf16.mxu0 0
    %1426 = vmatpush1.bf16.msra.mxu0 0
    %1427 = vmatprep.subr.bf16.mxu0 0
    %1428 = vmatpush1.bf16.msra.mxu0 0
    %1429 = vmatprep.mubr.bf16.mxu0 0
    %1430 = vmatmul.mubr.bf16.gmra.mrb[0].mxu0 %v1391
    %v1431 = vpop.f32.mrb[0].mxu0
    %v1432 = vadd.f32 0.0, %v1431
    %v1433 = vpop.f32.mrb[0].mxu0
    %v1434 = vadd.f32 0.0, %v1433
    %v1435 = vpop.f32.mrb[0].mxu0
    %v1436 = vpop.f32.mrb[0].mxu0
    %1437 = vdwg.mxu0
    %1438 = vmatprep.subr.bf16.mxu0 %v640
    %1439 = vmatpush1.bf16.msra.mxu0 %v639
    %1440 = vmatprep.subr.bf16.mxu0 %v644
    %1441 = vmatpush1.bf16.msra.mxu0 %v643
    %1442 = vmatprep.subr.bf16.mxu0 %v648
    %1443 = vmatpush1.bf16.msra.mxu0 %v647
    %1444 = vmatprep.subr.bf16.mxu0 %v652
    %1445 = vmatpush1.bf16.msra.mxu0 %v651
    %1446 = vmatprep.subr.bf16.mxu0 %v656
    %1447 = vmatpush1.bf16.msra.mxu0 %v655
    %1448 = vmatprep.subr.bf16.mxu0 %v660
    %1449 = vmatpush1.bf16.msra.mxu0 %v659
    %1450 = vmatprep.subr.bf16.mxu0 %v664
    %1451 = vmatpush1.bf16.msra.mxu0 %v663
    %1452 = vmatprep.subr.bf16.mxu0 %v668
    %1453 = vmatpush1.bf16.msra.mxu0 %v667
    %1454 = vmatprep.subr.bf16.mxu0 0
    %1455 = vmatpush1.bf16.msra.mxu0 0
    %1456 = vmatprep.subr.bf16.mxu0 0
    %1457 = vmatpush1.bf16.msra.mxu0 0
    %1458 = vmatprep.subr.bf16.mxu0 0
    %1459 = vmatpush1.bf16.msra.mxu0 0
    %1460 = vmatprep.subr.bf16.mxu0 0
    %1461 = vmatpush1.bf16.msra.mxu0 0
    %1462 = vmatprep.subr.bf16.mxu0 0
    %1463 = vmatpush1.bf16.msra.mxu0 0
    %1464 = vmatprep.subr.bf16.mxu0 0
    %1465 = vmatpush1.bf16.msra.mxu0 0
    %1466 = vmatprep.subr.bf16.mxu0 0
    %1467 = vmatpush1.bf16.msra.mxu0 0
    %1468 = vmatprep.subr.bf16.mxu0 0
    %1469 = vmatpush1.bf16.msra.mxu0 0
    %1470 = vmatprep.mubr.bf16.mxu0 0
    %1471 = vmatmul.mubr.bf16.gmra.mrb[0].mxu0 %v1391
    %v1472 = vpop.f32.mrb[0].mxu0
    %v1473 = vadd.f32 0.0, %v1472
    %v1474 = vpop.f32.mrb[0].mxu0
    %v1475 = vadd.f32 0.0, %v1474
    %v1476 = vpop.f32.mrb[0].mxu0
    %v1477 = vpop.f32.mrb[0].mxu0
    %1478 = vdwg.mxu0
    %v1479 = vadd.f32 %v1393, %v1432
    %v1480 = vadd.f32 %v1394, %v1434
    %v1481 = vadd.f32 %v1395, %v1473
    %v1482 = vadd.f32 %v1396, %v1475
    %v1483 = vxor.u32 %v1479, 2147483648
    %v1484 = vxor.u32 %v1480, 2147483648
    %v1485 = vxor.u32 %v1481, 2147483648
    %v1486 = vmul.f32 %v1483, 1.442695
    %v1487 = vpow.pop %v1486
    %v1488 = vmul.f32 %v1484, 1.442695
    %v1489 = vpow.pop %v1488
    %v1490 = vmul.f32 %v1485, 1.442695
    %v1491 = vpow.pop %v1490
    %v1492 = vadd.f32 %v1487, 1.0
    %v1493 = vadd.f32 %v1489, 1.0
    %v1494 = vadd.f32 %v1491, 1.0
    %v1495 = vrcp.pop %v1492
    %v1496 = vmul.f32 1.0, %v1495
    %v1497 = vrcp.pop %v1493
    %v1498 = vmul.f32 1.0, %v1497
    %v1499 = vrcp.pop %v1494
    %v1500 = vmul.f32 1.0, %v1499
    %v1501 = vtanh.pop %v1482
    %v1502 = vmul.f32 %v1498, %v1388
    %v1503 = vmul.f32 %v1496, %v1501
    %v1504 = vadd.f32 %v1502, %v1503
    %v1505 = vtanh.pop %v1504
    %v1506 = vmul.f32 %v1500, %v1505
    %v1507 = vpack.c.bf16 %v1506, %v1506
    %1508 = vst [vmem:[#allocation13 + $0x18] sm:$0xf] %v1507
    %v1509 = vld [vmem:[#allocation4 + $0xe0] sm:$0xff]
    %v1510 = vld [vmem:[#allocation4 + $0xe8] sm:$0xff]
    %v1511 = vld [vmem:[#allocation4 + $0xf0] sm:$0xff]
    %v1512 = vld [vmem:[#allocation4 + $0xf8] sm:$0xff]
    %1513 = vmatprep.subr.bf16.mxu0 %v638
    %1514 = vmatpush1.bf16.msra.mxu0 %v637
    %1515 = vmatprep.subr.bf16.mxu0 %v642
    %1516 = vmatpush1.bf16.msra.mxu0 %v641
    %1517 = vmatprep.subr.bf16.mxu0 %v646
    %1518 = vmatpush1.bf16.msra.mxu0 %v645
    %1519 = vmatprep.subr.bf16.mxu0 %v650
    %1520 = vmatpush1.bf16.msra.mxu0 %v649
    %1521 = vmatprep.subr.bf16.mxu0 %v654
    %1522 = vmatpush1.bf16.msra.mxu0 %v653
    %1523 = vmatprep.subr.bf16.mxu0 %v658
    %1524 = vmatpush1.bf16.msra.mxu0 %v657
    %1525 = vmatprep.subr.bf16.mxu0 %v662
    %1526 = vmatpush1.bf16.msra.mxu0 %v661
    %1527 = vmatprep.subr.bf16.mxu0 %v666
    %1528 = vmatpush1.bf16.msra.mxu0 %v665
    %1529 = vmatprep.subr.bf16.mxu0 0
    %1530 = vmatpush1.bf16.msra.mxu0 0
    %1531 = vmatprep.subr.bf16.mxu0 0
    %1532 = vmatpush1.bf16.msra.mxu0 0
    %1533 = vmatprep.subr.bf16.mxu0 0
    %1534 = vmatpush1.bf16.msra.mxu0 0
    %1535 = vmatprep.subr.bf16.mxu0 0
    %1536 = vmatpush1.bf16.msra.mxu0 0
    %1537 = vmatprep.subr.bf16.mxu0 0
    %1538 = vmatpush1.bf16.msra.mxu0 0
    %1539 = vmatprep.subr.bf16.mxu0 0
    %1540 = vmatpush1.bf16.msra.mxu0 0
    %1541 = vmatprep.subr.bf16.mxu0 0
    %1542 = vmatpush1.bf16.msra.mxu0 0
    %1543 = vmatprep.subr.bf16.mxu0 0
    %1544 = vmatpush1.bf16.msra.mxu0 0
    %1545 = vmatprep.mubr.bf16.mxu0 0
    %1546 = vmatmul.mubr.bf16.gmra.mrb[0].mxu0 %v1507
    %v1547 = vpop.f32.mrb[0].mxu0
    %v1548 = vadd.f32 0.0, %v1547
    %v1549 = vpop.f32.mrb[0].mxu0
    %v1550 = vadd.f32 0.0, %v1549
    %v1551 = vpop.f32.mrb[0].mxu0
    %v1552 = vpop.f32.mrb[0].mxu0
    %1553 = vdwg.mxu0
    %1554 = vmatprep.subr.bf16.mxu0 %v640
    %1555 = vmatpush1.bf16.msra.mxu0 %v639
    %1556 = vmatprep.subr.bf16.mxu0 %v644
    %1557 = vmatpush1.bf16.msra.mxu0 %v643
    %1558 = vmatprep.subr.bf16.mxu0 %v648
    %1559 = vmatpush1.bf16.msra.mxu0 %v647
    %1560 = vmatprep.subr.bf16.mxu0 %v652
    %1561 = vmatpush1.bf16.msra.mxu0 %v651
    %1562 = vmatprep.subr.bf16.mxu0 %v656
    %1563 = vmatpush1.bf16.msra.mxu0 %v655
    %1564 = vmatprep.subr.bf16.mxu0 %v660
    %1565 = vmatpush1.bf16.msra.mxu0 %v659
    %1566 = vmatprep.subr.bf16.mxu0 %v664
    %1567 = vmatpush1.bf16.msra.mxu0 %v663
    %1568 = vmatprep.subr.bf16.mxu0 %v668
    %1569 = vmatpush1.bf16.msra.mxu0 %v667
    %1570 = vmatprep.subr.bf16.mxu0 0
    %1571 = vmatpush1.bf16.msra.mxu0 0
    %1572 = vmatprep.subr.bf16.mxu0 0
    %1573 = vmatpush1.bf16.msra.mxu0 0
    %1574 = vmatprep.subr.bf16.mxu0 0
    %1575 = vmatpush1.bf16.msra.mxu0 0
    %1576 = vmatprep.subr.bf16.mxu0 0
    %1577 = vmatpush1.bf16.msra.mxu0 0
    %1578 = vmatprep.subr.bf16.mxu0 0
    %1579 = vmatpush1.bf16.msra.mxu0 0
    %1580 = vmatprep.subr.bf16.mxu0 0
    %1581 = vmatpush1.bf16.msra.mxu0 0
    %1582 = vmatprep.subr.bf16.mxu0 0
    %1583 = vmatpush1.bf16.msra.mxu0 0
    %1584 = vmatprep.subr.bf16.mxu0 0
    %1585 = vmatpush1.bf16.msra.mxu0 0
    %1586 = vmatprep.mubr.bf16.mxu0 0
    %1587 = vmatmul.mubr.bf16.gmra.mrb[0].mxu0 %v1507
    %v1588 = vpop.f32.mrb[0].mxu0
    %v1589 = vadd.f32 0.0, %v1588
    %v1590 = vpop.f32.mrb[0].mxu0
    %v1591 = vadd.f32 0.0, %v1590
    %v1592 = vpop.f32.mrb[0].mxu0
    %v1593 = vpop.f32.mrb[0].mxu0
    %1594 = vdwg.mxu0
    %v1595 = vadd.f32 %v1509, %v1548
    %v1596 = vadd.f32 %v1510, %v1550
    %v1597 = vadd.f32 %v1511, %v1589
    %v1598 = vadd.f32 %v1512, %v1591
    %v1599 = vxor.u32 %v1595, 2147483648
    %v1600 = vxor.u32 %v1596, 2147483648
    %v1601 = vxor.u32 %v1597, 2147483648
    %v1602 = vmul.f32 %v1599, 1.442695
    %v1603 = vpow.pop %v1602
    %v1604 = vmul.f32 %v1600, 1.442695
    %v1605 = vpow.pop %v1604
    %v1606 = vmul.f32 %v1601, 1.442695
    %v1607 = vpow.pop %v1606
    %v1608 = vadd.f32 %v1603, 1.0
    %v1609 = vadd.f32 %v1605, 1.0
    %v1610 = vadd.f32 %v1607, 1.0
    %v1611 = vrcp.pop %v1608
    %v1612 = vmul.f32 1.0, %v1611
    %v1613 = vrcp.pop %v1609
    %v1614 = vmul.f32 1.0, %v1613
    %v1615 = vrcp.pop %v1610
    %v1616 = vmul.f32 1.0, %v1615
    %v1617 = vtanh.pop %v1598
    %v1618 = vmul.f32 %v1614, %v1504
    %v1619 = vmul.f32 %v1612, %v1617
    %v1620 = vadd.f32 %v1618, %v1619
    %v1621 = vtanh.pop %v1620
    %v1622 = vmul.f32 %v1616, %v1621
    %v1623 = vpack.c.bf16 %v1622, %v1622
    %1624 = vst [vmem:[#allocation13 + $0x1c] sm:$0xf] %v1623
    %1625 = vst [vmem:[#allocation2] sm:$0xff] %v1622
    %1626 = vst [vmem:[#allocation3] sm:$0xff] %v1620
    // Predicated region
    $region38: #{attention_lstm_forward.3} parent=1 // pred_check
      _
    $region39: #{attention_lstm_forward.3} parent=1 // pred_check_branch
      %1628 = sbr.rel (0) target = $region41
    $region40: #{attention_lstm_forward.3} parent=1 // pred_region
      %s1630 = ssub.s32 512, 512
      %1631 = vsyncadd [#allocation7], %s1630
      %s1632 = sshll.u32 [#allocation13], 4
      %s1633 = int_to_ptr.vmem [resolvable:$true] %s1632
      %1638 = dma.vmem_to_hbm [thread:$0]  %s1633, 512, %s4, [#allocation7], 64, 64, 4
    $region41: #{attention_lstm_forward.3} parent=1 // pred_fallthru
      _
    // Predicated region
    $region42: #{attention_lstm_forward.3} parent=1 // pred_check
      _
    $region43: #{attention_lstm_forward.3} parent=1 // pred_check_branch
      %1640 = sbr.rel (0) target = $region45
    $region44: #{attention_lstm_forward.3} parent=1 // pred_region
      %1641 = dma.done [#allocation7], 512
    $region45: #{attention_lstm_forward.3} parent=1 // pred_fallthru
      _
    %1642 = vsyncpa [#allocation6], 1
    %1643 = vsyncpa [#allocation9], 1
    %1644 = vsyncpa [#allocation12], 1
    %1645 = vsyncpa [#allocation7], 1

</llo_original>
